<compile_context>
chip_gen: v7x
topology: tpu7x:2x2x1
jax: 0.10.0
libtpu: 0.0.40
codegen_flags: <defaults>
</compile_context>

<pallas_src>
import jax
import jax.numpy as jnp
from jax.experimental import pallas as pl
from jax.experimental.pallas import tpu as pltpu


VAL_LANES = 128  # lane-dense slab width for the value-head output


def _gelu(x):
    # tanh-approximate GELU (EUP-friendly; rides free slots under MXU work).
    c = 0.7978845608028654  # sqrt(2/pi)
    return 0.5 * x * (1.0 + jnp.tanh(c * (x + 0.044715 * x * x * x)))


def _policy_value_kernel(
    x_ref, wp1_ref, bp1_ref, wlm_ref, blm_ref, wc1_ref, bc1_ref, ws_ref,
    pol_ref, val_ref,
    h_ref, acc_ref, vacc_ref,
):
    j = pl.program_id(1)          # vocab (N) tile
    k = pl.program_id(2)          # hidden (K) reduction tile
    num_k = pl.num_programs(2)

    # ---- j == 0: stream BOTH backbones over the k axis --------------------
    # Each k step produces one (tm, tk) column of gelu(x@W+b) for both paths:
    # the policy column is cached in bf16 scratch for the tiled LM head below,
    # the critic column is reduced against w_score into the value accumulator.
    @pl.when(j == 0)
    def _():
        x = x_ref[...]                                             # (tm, H) bf16
        hp = jnp.dot(x, wp1_ref[...], preferred_element_type=jnp.float32)
        hp = _gelu(hp + bp1_ref[...])                              # (tm, tk) f32
        h_ref[k] = hp.astype(jnp.bfloat16)

        hc = jnp.dot(x, wc1_ref[...], preferred_element_type=jnp.float32)
        hc = _gelu(hc + bc1_ref[...])                              # (tm, tk) f32
        pv = jnp.sum(hc * ws_ref[...], axis=-1, keepdims=True)     # (tm, 1) f32
        prev = jnp.where(k == 0, jnp.zeros_like(vacc_ref[...]), vacc_ref[...])
        vacc_ref[...] = prev + pv

    # ---- Policy LM head: tiled K reduction into an f32 accumulator --------
    @pl.when(k == 0)
    def _():
        acc_ref[...] = jnp.zeros_like(acc_ref)

    acc_ref[...] += jnp.dot(h_ref[k], wlm_ref[...],
                            preferred_element_type=jnp.float32)

    @pl.when(k == num_k - 1)
    def _():
        pol_ref[...] = (acc_ref[...] + blm_ref[...]).astype(pol_ref.dtype)
        # Value slab: lane-dense broadcast of the (tm, 1) accumulator (the
        # wrapper slices lane 0).  vacc is final by the first time this fires
        # (j == 0, k == num_k-1); later writes are idempotent VMEM stores.
        val_ref[...] = jnp.broadcast_to(
            vacc_ref[...], val_ref.shape).astype(val_ref.dtype)


def _chip_kind():
    try:
        return jax.devices()[0].device_kind.lower()
    except Exception:
        return ""


def _default_tiles(kind):
    # v5e: 4x128^2 MXU, single vst slot -> tk=128, wide N tiles.
    if "v5 lite" in kind or "v5e" in kind or "v5litepod" in kind:
        return 512, 512, 128            # tm, tn, tk
    # v6e / v7x (and fallback): 256-deep MXU -> tk=256.
    return 512, 256, 256


def _vmem_limit(kind):
    try:
        cap = int(pltpu.get_tpu_info().vmem_capacity_bytes)
    except Exception:
        cap = 64 * 1024 * 1024 if "v7" in kind else 128 * 1024 * 1024
    # Leave headroom for compiler-internal scratch / semaphores.
    return min(int(cap * 0.8), 100 * 1024 * 1024)


def fused_policy_value(x2d, Wp1, bp1, Wlm, blm, Wc1, bc1, wscore,
                       *, tm=None, tn=None, tk=None, out_dtype=jnp.bfloat16):
    """x2d:(M,H) bf16; Wp1/Wc1:(H,H) bf16; Wlm:(H,V) bf16; biases f32 rows.

    Returns (policy_logits (M,V), value_slab (M,128) [lane 0 holds the value]).
    """
    M, H = x2d.shape
    V = Wlm.shape[1]
    kind = _chip_kind()
    dtm, dtn, dtk = _default_tiles(kind)
    tm = dtm if tm is None else tm
    tn = dtn if tn is None else tn
    tk = dtk if tk is None else tk
    tm, tn, tk = min(tm, M), min(tn, V), min(tk, H)
    # v7x has 2 TensorCores: ensure the "parallel" M axis has >= 2 tiles.
    if "v7" in kind and M // tm < 2 and M % 16 == 0:
        tm = M // 2
    # TODO(synk): pad M/V/H (pl.cdiv grid + masked edge tiles) for shapes that
    # do not tile evenly (e.g. vocab 50257 / 128256); demo shapes divide.
    assert M % tm == 0 and V % tn == 0 and H % tk == 0, "shapes must tile evenly"
    num_k = H // tk
    grid = (M // tm, V // tn, num_k)

    # Backbone-weight tiles are only consumed at j == 0; for j > 0 the index
    # map "parks" on the last k tile so the same data is never re-DMA'd
    # (Pallas skips the copy when the block index is unchanged).
    def bb_map(i, j, k):
        return (0, jnp.minimum(k + j * num_k, num_k - 1))

    return pl.pallas_call(
        _policy_value_kernel,
        out_shape=(
            jax.ShapeDtypeStruct((M, V), out_dtype),            # policy logits
            jax.ShapeDtypeStruct((M, VAL_LANES), jnp.float32),  # value slab
        ),
        grid_spec=pltpu.PrefetchScalarGridSpec(
            num_scalar_prefetch=0,
            grid=grid,
            in_specs=[
                pl.BlockSpec((tm, H), lambda i, j, k: (i, 0)),   # x (per M-tile)
                pl.BlockSpec((H, tk), bb_map),                   # Wp1 column tile
                pl.BlockSpec((1, tk), bb_map),                   # bp1 tile
                pl.BlockSpec((tk, tn), lambda i, j, k: (k, j)),  # W_lm tile
                pl.BlockSpec((1, tn), lambda i, j, k: (0, j)),   # b_lm tile
                pl.BlockSpec((H, tk), bb_map),                   # Wc1 column tile
                pl.BlockSpec((1, tk), bb_map),                   # bc1 tile
                pl.BlockSpec((1, tk), bb_map),                   # w_score tile
            ],
            out_specs=[
                pl.BlockSpec((tm, tn), lambda i, j, k: (i, j)),         # policy
                pl.BlockSpec((tm, VAL_LANES), lambda i, j, k: (i, 0)),  # value
            ],
            scratch_shapes=[
                pltpu.VMEM((num_k, tm, tk), jnp.bfloat16),  # cached gelu(x@Wp1+bp1)
                pltpu.VMEM((tm, tn), jnp.float32),          # LM-head accumulator
                pltpu.VMEM((tm, 1), jnp.float32),           # value accumulator
            ],
        ),
        compiler_params=pltpu.CompilerParams(
            # M axis parallel (megacore on v7x); V must stay arbitrary because
            # the cached hidden state is only computed at j==0; K = reduction.
            dimension_semantics=("parallel", "arbitrary", "arbitrary"),
            vmem_limit_bytes=_vmem_limit(kind),
        ),
    )(x2d, Wp1, bp1, Wlm, blm, Wc1, bc1, wscore)


class PolicyAndValueWrapperPallas:
    """JAX/Pallas analogue of PolicyAndValueWrapper.forward."""

    def __init__(self, hidden, vocab, key):
        kp1, kb1, kpl, kbl, kc1, kb2, ksc = jax.random.split(key, 7)
        s = 0.02
        # bf16 weights for the MXU (accumulation stays f32 in-kernel).
        self.Wp1 = (jax.random.normal(kp1, (hidden, hidden)) * s).astype(jnp.bfloat16)
        self.bp1 = (jax.random.normal(kb1, (1, hidden)) * s).astype(jnp.float32)
        self.Wlm = (jax.random.normal(kpl, (hidden, vocab)) * s).astype(jnp.bfloat16)
        self.blm = (jax.random.normal(kbl, (1, vocab)) * s).astype(jnp.float32)
        self.Wc1 = (jax.random.normal(kc1, (hidden, hidden)) * s).astype(jnp.bfloat16)
        self.bc1 = (jax.random.normal(kb2, (1, hidden)) * s).astype(jnp.float32)
        # HF-style `score` head (no bias): f32 row, applied on the VPU.
        self.wscore = (jax.random.normal(ksc, (1, hidden)) * s).astype(jnp.float32)

    def __call__(self, x, out_dtype=jnp.bfloat16):
        # x: (B, S, H) embeddings -> ((B, S, V) policy logits, (B, S, 1) values)
        B, S, H = x.shape
        x2d = x.reshape(B * S, H).astype(jnp.bfloat16)
        pol, val_slab = fused_policy_value(
            x2d, self.Wp1, self.bp1, self.Wlm, self.blm,
            self.Wc1, self.bc1, self.wscore, out_dtype=out_dtype)
        V = self.Wlm.shape[1]
        # value head comes back as a lane-dense (M, 128) slab; lane 0 is the value.
        return pol.reshape(B, S, V), val_slab[:, :1].reshape(B, S, 1)

    # TODO(synk): gradient_checkpointing_enable is a training-time HF toggle; no
    # inference-kernel equivalent.


def _reference(model, x):
    """Pure-JAX reference mirroring the kernel's bf16 operand rounding."""
    B, S, H = x.shape
    hi = jax.lax.Precision.HIGHEST
    x2d = x.reshape(B * S, H).astype(jnp.bfloat16).astype(jnp.float32)
    Wp1 = model.Wp1.astype(jnp.float32)
    Wlm = model.Wlm.astype(jnp.float32)
    Wc1 = model.Wc1.astype(jnp.float32)

    hp = _gelu(jnp.dot(x2d, Wp1, precision=hi) + model.bp1)
    hp = hp.astype(jnp.bfloat16).astype(jnp.float32)          # kernel caches h in bf16
    pol = jnp.dot(hp, Wlm, precision=hi) + model.blm

    hc = _gelu(jnp.dot(x2d, Wc1, precision=hi) + model.bc1)
    val = jnp.sum(hc * model.wscore, axis=-1, keepdims=True)
    return pol.reshape(B, S, -1), val.reshape(B, S, 1)


if __name__ == "__main__":
    # Small but tiling-friendly shapes: M = B*S = 128, H = 256, V = 512.
    B, S, H, V = 2, 64, 256, 512
    key = jax.random.PRNGKey(0)
    kx, kw = jax.random.split(key)
    x = jax.random.normal(kx, (B, S, H), dtype=jnp.float32)

    model = PolicyAndValueWrapperPallas(H, V, kw)

    policy_logits, value_logits = model(x)
    jax.block_until_ready((policy_logits, value_logits))

    ref_pol, ref_val = _reference(model, x)
    assert policy_logits.shape == (B, S, V)
    assert value_logits.shape == (B, S, 1)

    # Policy logits are bf16 by default; compare against a bf16-rounded reference.
    pol_f32 = policy_logits.astype(jnp.float32)
    ref_pol_cast = ref_pol.astype(policy_logits.dtype).astype(jnp.float32)
    assert jnp.allclose(pol_f32, ref_pol_cast, atol=2e-2, rtol=2e-2), \
        float(jnp.max(jnp.abs(pol_f32 - ref_pol_cast)))
    assert jnp.allclose(value_logits, ref_val, atol=1e-2, rtol=1e-2), \
        float(jnp.max(jnp.abs(value_logits - ref_val)))

    print("KERNEL_OK")
</pallas_src>

<mosaic_0001>
module attributes {stable_mosaic.version = 11 : i64} {
  func.func @_policy_value_kernel(%arg0: i32, %arg1: i32, %arg2: i32, %arg3: memref<128x256xbf16, #tpu.memory_space<vmem>>, %arg4: memref<256x256xbf16, #tpu.memory_space<vmem>>, %arg5: memref<1x256xf32, #tpu.memory_space<vmem>>, %arg6: memref<256x256xbf16, #tpu.memory_space<vmem>>, %arg7: memref<1x256xf32, #tpu.memory_space<vmem>>, %arg8: memref<256x256xbf16, #tpu.memory_space<vmem>>, %arg9: memref<1x256xf32, #tpu.memory_space<vmem>>, %arg10: memref<1x256xf32, #tpu.memory_space<vmem>>, %arg11: memref<128x256xbf16, #tpu.memory_space<vmem>>, %arg12: memref<128x128xf32, #tpu.memory_space<vmem>>, %arg13: memref<1x128x256xbf16, #tpu.memory_space<vmem>>, %arg14: memref<128x256xf32, #tpu.memory_space<vmem>>, %arg15: memref<128x1xf32, #tpu.memory_space<vmem>>) attributes {dimension_semantics = [#tpu.dimension_semantics<parallel>, #tpu.dimension_semantics<arbitrary>, #tpu.dimension_semantics<arbitrary>], iteration_bounds = array<i64: 1, 2, 1>, scalar_prefetch = 0 : i64, scratch_operands = 3 : i64, tpu.core_type = #tpu.core_type<tc>, window_params = [{transform_indices = @transform_0, window_bounds = array<i64: 128, 256>}, {transform_indices = @transform_1, window_bounds = array<i64: 256, 256>}, {transform_indices = @transform_2, window_bounds = array<i64: 1, 256>}, {transform_indices = @transform_3, window_bounds = array<i64: 256, 256>}, {transform_indices = @transform_4, window_bounds = array<i64: 1, 256>}, {transform_indices = @transform_5, window_bounds = array<i64: 256, 256>}, {transform_indices = @transform_6, window_bounds = array<i64: 1, 256>}, {transform_indices = @transform_7, window_bounds = array<i64: 1, 256>}, {transform_indices = @transform_8, window_bounds = array<i64: 128, 256>}, {transform_indices = @transform_9, window_bounds = array<i64: 128, 128>}]} {
    %c0_i32 = arith.constant 0 : i32
    %0 = arith.cmpi eq, %arg1, %c0_i32 : i32
    %1 = arith.extui %0 : i1 to i32
    %c0_i32_0 = arith.constant 0 : i32
    %2 = arith.cmpi ne, %1, %c0_i32_0 : i32
    scf.if %2 {
      %c0_12 = arith.constant 0 : index
      %c0_13 = arith.constant 0 : index
      %17 = vector.load %arg3[%c0_12, %c0_13] : memref<128x256xbf16, #tpu.memory_space<vmem>>, vector<128x256xbf16>
      %c0_14 = arith.constant 0 : index
      %c0_15 = arith.constant 0 : index
      %18 = vector.load %arg4[%c0_14, %c0_15] : memref<256x256xbf16, #tpu.memory_space<vmem>>, vector<256x256xbf16>
      %cst_16 = arith.constant dense<0.000000e+00> : vector<128x256xf32>
      %19 = tpu.matmul %17, %18, %cst_16 {dimension_numbers = #tpu.dot_dimension_numbers<[1], [0], [0], [1], [0, 0, 1, 1], [], []>} : vector<128x256xbf16>, vector<256x256xbf16>, vector<128x256xf32> -> vector<128x256xf32>
      %c0_17 = arith.constant 0 : index
      %c0_18 = arith.constant 0 : index
      %20 = vector.load %arg5[%c0_17, %c0_18] : memref<1x256xf32, #tpu.memory_space<vmem>>, vector<1x256xf32>
      %21 = vector.broadcast %20 : vector<1x256xf32> to vector<128x256xf32>
      %22 = arith.addf %19, %21 : vector<128x256xf32>
      %cst_19 = arith.constant 5.000000e-01 : f32
      %23 = vector.broadcast %cst_19 : f32 to vector<128x256xf32>
      %24 = arith.mulf %23, %22 : vector<128x256xf32>
      %cst_20 = arith.constant 4.471500e-02 : f32
      %25 = vector.broadcast %cst_20 : f32 to vector<128x256xf32>
      %26 = arith.mulf %25, %22 : vector<128x256xf32>
      %27 = arith.mulf %26, %22 : vector<128x256xf32>
      %28 = arith.mulf %27, %22 : vector<128x256xf32>
      %29 = arith.addf %22, %28 : vector<128x256xf32>
      %cst_21 = arith.constant 0.797884583 : f32
      %30 = vector.broadcast %cst_21 : f32 to vector<128x256xf32>
      %31 = arith.mulf %30, %29 : vector<128x256xf32>
      %32 = math.tanh %31 : vector<128x256xf32>
      %cst_22 = arith.constant 1.000000e+00 : f32
      %33 = vector.broadcast %cst_22 : f32 to vector<128x256xf32>
      %34 = arith.addf %33, %32 : vector<128x256xf32>
      %35 = arith.mulf %24, %34 : vector<128x256xf32>
      %36 = arith.truncf %35 : vector<128x256xf32> to vector<128x256xbf16>
      %37 = arith.index_cast %arg2 : i32 to index
      %c0_23 = arith.constant 0 : index
      %c0_24 = arith.constant 0 : index
      %38 = vector.load %arg13[%37, %c0_23, %c0_24] : memref<1x128x256xbf16, #tpu.memory_space<vmem>>, vector<1x128x256xbf16>
      %39 = vector.shape_cast %38 : vector<1x128x256xbf16> to vector<128x256xbf16>
      %40 = vector.shape_cast %36 : vector<128x256xbf16> to vector<1x128x256xbf16>
      tpu.vector_store %arg13[%37, %c0_23, %c0_24], %40 {strides = array<i32>} : memref<1x128x256xbf16, #tpu.memory_space<vmem>>, vector<1x128x256xbf16>,
      %c0_25 = arith.constant 0 : index
      %c0_26 = arith.constant 0 : index
      %41 = vector.load %arg8[%c0_25, %c0_26] : memref<256x256xbf16, #tpu.memory_space<vmem>>, vector<256x256xbf16>
      %cst_27 = arith.constant dense<0.000000e+00> : vector<128x256xf32>
      %42 = tpu.matmul %17, %41, %cst_27 {dimension_numbers = #tpu.dot_dimension_numbers<[1], [0], [0], [1], [0, 0, 1, 1], [], []>} : vector<128x256xbf16>, vector<256x256xbf16>, vector<128x256xf32> -> vector<128x256xf32>
      %c0_28 = arith.constant 0 : index
      %c0_29 = arith.constant 0 : index
      %43 = vector.load %arg9[%c0_28, %c0_29] : memref<1x256xf32, #tpu.memory_space<vmem>>, vector<1x256xf32>
      %44 = vector.broadcast %43 : vector<1x256xf32> to vector<128x256xf32>
      %45 = arith.addf %42, %44 : vector<128x256xf32>
      %cst_30 = arith.constant 5.000000e-01 : f32
      %46 = vector.broadcast %cst_30 : f32 to vector<128x256xf32>
      %47 = arith.mulf %46, %45 : vector<128x256xf32>
      %cst_31 = arith.constant 4.471500e-02 : f32
      %48 = vector.broadcast %cst_31 : f32 to vector<128x256xf32>
      %49 = arith.mulf %48, %45 : vector<128x256xf32>
      %50 = arith.mulf %49, %45 : vector<128x256xf32>
      %51 = arith.mulf %50, %45 : vector<128x256xf32>
      %52 = arith.addf %45, %51 : vector<128x256xf32>
      %cst_32 = arith.constant 0.797884583 : f32
      %53 = vector.broadcast %cst_32 : f32 to vector<128x256xf32>
      %54 = arith.mulf %53, %52 : vector<128x256xf32>
      %55 = math.tanh %54 : vector<128x256xf32>
      %cst_33 = arith.constant 1.000000e+00 : f32
      %56 = vector.broadcast %cst_33 : f32 to vector<128x256xf32>
      %57 = arith.addf %56, %55 : vector<128x256xf32>
      %58 = arith.mulf %47, %57 : vector<128x256xf32>
      %c0_34 = arith.constant 0 : index
      %c0_35 = arith.constant 0 : index
      %59 = vector.load %arg10[%c0_34, %c0_35] : memref<1x256xf32, #tpu.memory_space<vmem>>, vector<1x256xf32>
      %60 = vector.broadcast %59 : vector<1x256xf32> to vector<128x256xf32>
      %61 = arith.mulf %58, %60 : vector<128x256xf32>
      %cst_36 = arith.constant dense<0.000000e+00> : vector<128xf32>
      %62 = vector.multi_reduction <add>, %61, %cst_36 [1] : vector<128x256xf32> to vector<128xf32>
      %63 = vector.shape_cast %62 : vector<128xf32> to vector<128x1xf32>
      %c0_i32_37 = arith.constant 0 : i32
      %64 = arith.cmpi eq, %arg2, %c0_i32_37 : i32
      %cst_38 = arith.constant 0.000000e+00 : f32
      %65 = vector.broadcast %cst_38 : f32 to vector<128x1xf32>
      %c0_39 = arith.constant 0 : index
      %c0_40 = arith.constant 0 : index
      %66 = vector.load %arg15[%c0_39, %c0_40] : memref<128x1xf32, #tpu.memory_space<vmem>>, vector<128x1xf32>
      %67 = arith.select %64, %65, %66 : vector<128x1xf32>
      %68 = arith.addf %67, %63 : vector<128x1xf32>
      %c0_41 = arith.constant 0 : index
      %c0_42 = arith.constant 0 : index
      %69 = vector.load %arg15[%c0_41, %c0_42] : memref<128x1xf32, #tpu.memory_space<vmem>>, vector<128x1xf32>
      tpu.vector_store %arg15[%c0_41, %c0_42], %68 {strides = array<i32>} : memref<128x1xf32, #tpu.memory_space<vmem>>, vector<128x1xf32>,
    } else {
    }
    %c0_i32_1 = arith.constant 0 : i32
    %3 = arith.cmpi eq, %arg2, %c0_i32_1 : i32
    %4 = arith.extui %3 : i1 to i32
    %c0_i32_2 = arith.constant 0 : i32
    %5 = arith.cmpi ne, %4, %c0_i32_2 : i32
    scf.if %5 {
      %cst_12 = arith.constant 0.000000e+00 : f32
      %17 = vector.broadcast %cst_12 : f32 to vector<128x256xf32>
      %c0_13 = arith.constant 0 : index
      %c0_14 = arith.constant 0 : index
      %18 = vector.load %arg14[%c0_13, %c0_14] : memref<128x256xf32, #tpu.memory_space<vmem>>, vector<128x256xf32>
      tpu.vector_store %arg14[%c0_13, %c0_14], %17 {strides = array<i32>} : memref<128x256xf32, #tpu.memory_space<vmem>>, vector<128x256xf32>,
    } else {
    }
    %c0 = arith.constant 0 : index
    %c0_3 = arith.constant 0 : index
    %6 = vector.load %arg14[%c0, %c0_3] : memref<128x256xf32, #tpu.memory_space<vmem>>, vector<128x256xf32>
    %7 = arith.index_cast %arg2 : i32 to index
    %c0_4 = arith.constant 0 : index
    %c0_5 = arith.constant 0 : index
    %8 = vector.load %arg13[%7, %c0_4, %c0_5] : memref<1x128x256xbf16, #tpu.memory_space<vmem>>, vector<1x128x256xbf16>
    %9 = vector.shape_cast %8 : vector<1x128x256xbf16> to vector<128x256xbf16>
    %c0_6 = arith.constant 0 : index
    %c0_7 = arith.constant 0 : index
    %10 = vector.load %arg6[%c0_6, %c0_7] : memref<256x256xbf16, #tpu.memory_space<vmem>>, vector<256x256xbf16>
    %cst = arith.constant dense<0.000000e+00> : vector<128x256xf32>
    %11 = tpu.matmul %9, %10, %cst {dimension_numbers = #tpu.dot_dimension_numbers<[1], [0], [0], [1], [0, 0, 1, 1], [], []>} : vector<128x256xbf16>, vector<256x256xbf16>, vector<128x256xf32> -> vector<128x256xf32>
    %12 = arith.addf %6, %11 : vector<128x256xf32>
    %c0_8 = arith.constant 0 : index
    %c0_9 = arith.constant 0 : index
    %13 = vector.load %arg14[%c0_8, %c0_9] : memref<128x256xf32, #tpu.memory_space<vmem>>, vector<128x256xf32>
    tpu.vector_store %arg14[%c0_8, %c0_9], %12 {strides = array<i32>} : memref<128x256xf32, #tpu.memory_space<vmem>>, vector<128x256xf32>,
    %c0_i32_10 = arith.constant 0 : i32
    %14 = arith.cmpi eq, %arg2, %c0_i32_10 : i32
    %15 = arith.extui %14 : i1 to i32
    %c0_i32_11 = arith.constant 0 : i32
    %16 = arith.cmpi ne, %15, %c0_i32_11 : i32
    scf.if %16 {
      %c0_12 = arith.constant 0 : index
      %c0_13 = arith.constant 0 : index
      %17 = vector.load %arg14[%c0_12, %c0_13] : memref<128x256xf32, #tpu.memory_space<vmem>>, vector<128x256xf32>
      %c0_14 = arith.constant 0 : index
      %c0_15 = arith.constant 0 : index
      %18 = vector.load %arg7[%c0_14, %c0_15] : memref<1x256xf32, #tpu.memory_space<vmem>>, vector<1x256xf32>
      %19 = vector.broadcast %18 : vector<1x256xf32> to vector<128x256xf32>
      %20 = arith.addf %17, %19 : vector<128x256xf32>
      %21 = arith.truncf %20 : vector<128x256xf32> to vector<128x256xbf16>
      %c0_16 = arith.constant 0 : index
      %c0_17 = arith.constant 0 : index
      %22 = vector.load %arg11[%c0_16, %c0_17] : memref<128x256xbf16, #tpu.memory_space<vmem>>, vector<128x256xbf16>
      tpu.vector_store %arg11[%c0_16, %c0_17], %21 {strides = array<i32>} : memref<128x256xbf16, #tpu.memory_space<vmem>>, vector<128x256xbf16>,
      %c0_18 = arith.constant 0 : index
      %c0_19 = arith.constant 0 : index
      %23 = vector.load %arg15[%c0_18, %c0_19] : memref<128x1xf32, #tpu.memory_space<vmem>>, vector<128x1xf32>
      %24 = vector.shape_cast %23 : vector<128x1xf32> to vector<128x1xf32>
      %25 = vector.broadcast %24 : vector<128x1xf32> to vector<128x128xf32>
      %c0_20 = arith.constant 0 : index
      %c0_21 = arith.constant 0 : index
      %26 = vector.load %arg12[%c0_20, %c0_21] : memref<128x128xf32, #tpu.memory_space<vmem>>, vector<128x128xf32>
      tpu.vector_store %arg12[%c0_20, %c0_21], %25 {strides = array<i32>} : memref<128x128xf32, #tpu.memory_space<vmem>>, vector<128x128xf32>,
    } else {
    }
    return
  }
  func.func @transform_0(%arg0: i32, %arg1: i32, %arg2: i32) -> (i32, i32) {
    %c0_i32 = arith.constant 0 : i32
    %c0_i32_0 = arith.constant 0 : i32
    return %arg0, %c0_i32 : i32, i32
  }
  func.func @transform_1(%arg0: i32, %arg1: i32, %arg2: i32) -> (i32, i32) {
    %c1_i32 = arith.constant 1 : i32
    %0 = arith.muli %arg1, %c1_i32 : i32
    %1 = arith.addi %arg2, %0 : i32
    %c0_i32 = arith.constant 0 : i32
    %2 = arith.minsi %1, %c0_i32 : i32
    %c0_i32_0 = arith.constant 0 : i32
    %c0_i32_1 = arith.constant 0 : i32
    return %c0_i32_0, %2 : i32, i32
  }
  func.func @transform_2(%arg0: i32, %arg1: i32, %arg2: i32) -> (i32, i32) {
    %c1_i32 = arith.constant 1 : i32
    %0 = arith.muli %arg1, %c1_i32 : i32
    %1 = arith.addi %arg2, %0 : i32
    %c0_i32 = arith.constant 0 : i32
    %2 = arith.minsi %1, %c0_i32 : i32
    %c0_i32_0 = arith.constant 0 : i32
    %c0_i32_1 = arith.constant 0 : i32
    return %c0_i32_0, %2 : i32, i32
  }
  func.func @transform_3(%arg0: i32, %arg1: i32, %arg2: i32) -> (i32, i32) {
    %c0_i32 = arith.constant 0 : i32
    return %arg2, %arg1 : i32, i32
  }
  func.func @transform_4(%arg0: i32, %arg1: i32, %arg2: i32) -> (i32, i32) {
    %c0_i32 = arith.constant 0 : i32
    %c0_i32_0 = arith.constant 0 : i32
    return %c0_i32, %arg1 : i32, i32
  }
  func.func @transform_5(%arg0: i32, %arg1: i32, %arg2: i32) -> (i32, i32) {
    %c1_i32 = arith.constant 1 : i32
    %0 = arith.muli %arg1, %c1_i32 : i32
    %1 = arith.addi %arg2, %0 : i32
    %c0_i32 = arith.constant 0 : i32
    %2 = arith.minsi %1, %c0_i32 : i32
    %c0_i32_0 = arith.constant 0 : i32
    %c0_i32_1 = arith.constant 0 : i32
    return %c0_i32_0, %2 : i32, i32
  }
  func.func @transform_6(%arg0: i32, %arg1: i32, %arg2: i32) -> (i32, i32) {
    %c1_i32 = arith.constant 1 : i32
    %0 = arith.muli %arg1, %c1_i32 : i32
    %1 = arith.addi %arg2, %0 : i32
    %c0_i32 = arith.constant 0 : i32
    %2 = arith.minsi %1, %c0_i32 : i32
    %c0_i32_0 = arith.constant 0 : i32
    %c0_i32_1 = arith.constant 0 : i32
    return %c0_i32_0, %2 : i32, i32
  }
  func.func @transform_7(%arg0: i32, %arg1: i32, %arg2: i32) -> (i32, i32) {
    %c1_i32 = arith.constant 1 : i32
    %0 = arith.muli %arg1, %c1_i32 : i32
    %1 = arith.addi %arg2, %0 : i32
    %c0_i32 = arith.constant 0 : i32
    %2 = arith.minsi %1, %c0_i32 : i32
    %c0_i32_0 = arith.constant 0 : i32
    %c0_i32_1 = arith.constant 0 : i32
    return %c0_i32_0, %2 : i32, i32
  }
  func.func @transform_8(%arg0: i32, %arg1: i32, %arg2: i32) -> (i32, i32) {
    %c0_i32 = arith.constant 0 : i32
    return %arg0, %arg1 : i32, i32
  }
  func.func @transform_9(%arg0: i32, %arg1: i32, %arg2: i32) -> (i32, i32) {
    %c0_i32 = arith.constant 0 : i32
    %c0_i32_0 = arith.constant 0 : i32
    return %arg0, %c0_i32 : i32, i32
  }
}

</mosaic_0001>

<llo_original>
// kernel: tpu_custom_call.1
$region0: #{tpu_custom_call.1}
  #allocation0 [shape = 'u32[]', space=smem, size = 0x4, offset = 0x4, fixed_abs, tag = 'smem constant byte address 0x4 - core index']
  #allocation1 [shape = 'u32[144,128]{1,0:T(1,128)}', space=vmem, size = 0x12000, scoped, tag = 'internal scratch']
  #allocation2 [shape = 'bf16[1,128,256]{2,1,0:T(16,128)(2,1)}', space=vmem, size = 0x10000, scoped, tag = 'scratch operand']
  #allocation3 [shape = 'f32[128,256]{1,0:T(8,128)}', space=vmem, size = 0x20000, scoped, tag = 'scratch operand']
  #allocation4 [shape = 'f32[128,1]{1,0:T(8,128)}', space=vmem, size = 0x10000, scoped, tag = 'scratch operand']
  %s0 = inlined_call_operand.hbm [shape: bf16[128,256], index: 0, kind: input, shape index: {}]
  %s1 = inlined_call_operand.hbm [shape: bf16[256,256], index: 1, kind: input, shape index: {}]
  %s2 = inlined_call_operand.hbm [shape: f32[1,256], index: 2, kind: input, shape index: {}]
  %s3 = inlined_call_operand.hbm [shape: bf16[256,512], index: 3, kind: input, shape index: {}]
  %s4 = inlined_call_operand.hbm [shape: f32[1,512], index: 4, kind: input, shape index: {}]
  %s5 = inlined_call_operand.hbm [shape: bf16[256,256], index: 5, kind: input, shape index: {}]
  %s6 = inlined_call_operand.hbm [shape: f32[1,256], index: 6, kind: input, shape index: {}]
  %s7 = inlined_call_operand.hbm [shape: f32[1,256], index: 7, kind: input, shape index: {}]
  %s8 = inlined_call_operand.hbm [shape: bf16[128,512], index: 8, kind: output, shape index: {0}]
  %s9 = inlined_call_operand.hbm [shape: f32[128,128], index: 9, kind: output, shape index: {1}]
  %10 = xla_tuple %s8, %s9
  %s11 = sld [smem:[#allocation0]]
  $region117: #{tpu_custom_call.1} parent=0
    _
  %s13 = ssub.s32 1, %s11
  %s14 = scalar_select 0, %s13, %s11
  $region1: #{tpu_custom_call.1} parent=0
    #allocation5 [shape = 'u8[65536]{0}', space=vmem, size = 0x10000, scoped, tag = 'input window, operand 0, single buffered']
    #allocation6 [shape = 's32[2]{0}', space=sflag, size = 0x8, scoped, tag = 'scoped memory for tpu_custom_call.1']
    #allocation7 [shape = 's32[2]{0}', space=sflag, size = 0x8, scoped, tag = 'scoped memory for tpu_custom_call.1']
    #allocation8 [shape = 'u8[262144]{0}', space=vmem, size = 0x40000, scoped, tag = 'input window, operand 1']
    #allocation9 [shape = 's32[2]{0}', space=sflag, size = 0x8, scoped, tag = 'scoped memory for tpu_custom_call.1']
    #allocation10 [shape = 'u8[2048]{0}', space=vmem, size = 0x800, scoped, tag = 'input window, operand 2']
    #allocation11 [shape = 'u8[262144]{0}', space=vmem, size = 0x40000, scoped, tag = 'input window, operand 3']
    #allocation12 [shape = 's32[2]{0}', space=sflag, size = 0x8, scoped, tag = 'scoped memory for tpu_custom_call.1']
    #allocation13 [shape = 'u8[2048]{0}', space=vmem, size = 0x800, scoped, tag = 'input window, operand 4']
    #allocation14 [shape = 'u8[262144]{0}', space=vmem, size = 0x40000, scoped, tag = 'input window, operand 5']
    #allocation15 [shape = 's32[2]{0}', space=sflag, size = 0x8, scoped, tag = 'scoped memory for tpu_custom_call.1']
    #allocation16 [shape = 'u8[2048]{0}', space=vmem, size = 0x800, scoped, tag = 'input window, operand 6']
    #allocation17 [shape = 'u8[2048]{0}', space=vmem, size = 0x800, scoped, tag = 'input window, operand 7']
    #allocation18 [shape = 's32[2]{0}', space=sflag, size = 0x8, scoped, tag = 'scoped memory for tpu_custom_call.1']
    #allocation19 [shape = 'u8[131072]{0}', space=vmem, size = 0x20000, scoped, tag = 'output window, operand 0']
    #allocation20 [shape = 'u8[65536]{0}', space=vmem, size = 0x10000, scoped, tag = 'output window, operand 1, single buffered']
    #allocation21 [shape = 's32[1]{0}', space=sflag, size = 0x4, scoped, tag = 'scoped memory for tpu_custom_call.1']
    %15 = vsyncpa [#allocation6], 0
    %16 = vsyncpa [#allocation9], 0
    %s17 = scalar_lea.sflag [#allocation9], 1
    %18 = vsyncpa %s17, 0
    %19 = vsyncpa [#allocation12], 0
    %s20 = scalar_lea.sflag [#allocation12], 1
    %21 = vsyncpa %s20, 0
    %22 = vsyncpa [#allocation15], 0
    %s23 = scalar_lea.sflag [#allocation15], 1
    %24 = vsyncpa %s23, 0
    %25 = vsyncpa [#allocation18], 0
    %s26 = scalar_lea.sflag [#allocation18], 1
    %27 = vsyncpa %s26, 0
    %28 = vsyncpa [#allocation7], 0
    %s29 = scalar_lea.sflag [#allocation7], 1
    %30 = vsyncpa %s29, 0
    %31 = vsyncpa [#allocation21], 0
    loop: start=0, step=1, limit=4
    $region2: #{tpu_custom_call.1} parent=1 // loop_pre_header
      _
    $region3: #{tpu_custom_call.1} parent=1 // loop_header
      %s33 = sphi 0, %s37
      %p34 = scmp.ge.s32.totalorder %s33, 4
      %s40 = sphi 0, %s59
      %s41 = sphi 0, %s55
      %s42 = sphi 0, %s51
      %s43 = sphi 0, %s40
      %s44 = sphi 0, %s41
      %s45 = sphi 0, %s42
      %s46 = sphi 0, %s43
      %s47 = sphi 0, %s44
      %s48 = sphi 0, %s45
      %s62 = sphi 0, %s64
      %s65 = sphi 0, %s62
      %s66 = sphi 0, %s65
      %s82 = sphi 0, %s66
      %s94 = sphi 0, %s96
      %s97 = sphi 0, %s94
      %s98 = sphi 0, %s97
      %s114 = sphi 0, %s98
      %s126 = sphi 0, %s128
      %s129 = sphi 0, %s126
      %s130 = sphi 0, %s129
      %s146 = sphi 0, %s130
      %s154 = sphi 0, %s156
      %s157 = sphi 0, %s154
      %s158 = sphi 0, %s157
      %s174 = sphi 0, %s158
      %s180 = sphi 0, %s182
      %s183 = sphi 0, %s180
      %s184 = sphi 0, %s183
      %s200 = sphi 0, %s184
      %s212 = sphi 0, %s214
      %s215 = sphi 0, %s212
      %s216 = sphi 0, %s215
      %s232 = sphi 0, %s216
      %s244 = sphi 0, %s246
      %s247 = sphi 0, %s244
      %s248 = sphi 0, %s247
      %s264 = sphi 0, %s248
      %s276 = sphi 0, %s278
      %s279 = sphi 0, %s276
      %s280 = sphi 0, %s279
      %s296 = sphi 0, %s280
      %s304 = sphi 0, %s306
      %s307 = sphi 0, %s304
      %s308 = sphi 0, %s307
      %s324 = sphi 0, %s308
      %s330 = sphi 0, %s332
      %s333 = sphi 0, %s330
      %s334 = sphi 0, %s333
      %s350 = sphi 0, %s334
    $region4: #{tpu_custom_call.1} parent=1 // loop_header_branch
      %36 = sbr.rel (%p34) target = $region8
    $region5: #{tpu_custom_call.1} parent=1 // loop_body
      %s38 = ssub.s32 %s33, 1
      %s39 = ssub.s32 %s33, 2
      %s49 = sadd.s32 1, %s42
      %p50 = scmp.ge.s32.totalorder %s49, 1
      %s51 = scalar_select %p50, 0, %s49
      %s52 = sadd.s32 1, %s41
      %s53 = scalar_select %p50, %s52, %s41
      %p54 = scmp.ge.s32.totalorder %s53, 2
      %s55 = scalar_select %p54, 0, %s53
      %s56 = sadd.s32 1, %s40
      %s57 = scalar_select %p54, %s56, %s40
      %p58 = scmp.ge.s32.totalorder %s57, 1
      %s59 = scalar_select %p58, 0, %s57
      %s60 = ssub.s32 %s40, %s59
      %p61 = scmp.eq.s32.totalorder %s60, 0
      %s63 = sadd.s32 %s62, 1
      %s64 = scalar_select %p61, %s62, %s63
      %p67 = pneg %p61
      %p68 = scmp.eq.s32.totalorder %s33, 1
      %p69 = por %p67, %p68
      %p70 = scmp.ne.s32.totalorder %s62, %s65
      %p71 = scmp.eq.s32.totalorder %s33, 0
      %p72 = por %p70, %p71
      %p73 = scmp.ne.s32.totalorder %s62, %s65
      %p74 = scmp.eq.s32.totalorder %s38, 1
      %p75 = por %p73, %p74
      %p76 = scmp.ne.s32.totalorder %s65, %s66
      %p77 = scmp.eq.s32.totalorder %s38, 0
      %p78 = por %p76, %p77
      %p79 = scmp.ne.s32.totalorder %s65, %s66
      %p80 = scmp.eq.s32.totalorder %s39, 1
      %p81 = por %p79, %p80
      %p83 = scmp.ne.s32.totalorder %s66, %s82
      %p84 = scmp.eq.s32.totalorder %s39, 0
      %p85 = por %p83, %p84
      %s86 = sadd.s32 %s42, %s41
      %p87 = scmp.lt.s32.totalorder %s86, 0
      %s88 = scalar_select %p87, %s86, 0
      %s89 = sadd.s32 %s51, %s55
      %p90 = scmp.lt.s32.totalorder %s89, 0
      %s91 = scalar_select %p90, %s89, 0
      %s92 = ssub.s32 %s88, %s91
      %p93 = scmp.eq.s32.totalorder %s92, 0
      %s95 = sadd.s32 %s94, 1
      %s96 = scalar_select %p93, %s94, %s95
      %p99 = pneg %p93
      %p100 = scmp.eq.s32.totalorder %s33, 1
      %p101 = por %p99, %p100
      %p102 = scmp.ne.s32.totalorder %s94, %s97
      %p103 = scmp.eq.s32.totalorder %s33, 0
      %p104 = por %p102, %p103
      %p105 = scmp.ne.s32.totalorder %s94, %s97
      %p106 = scmp.eq.s32.totalorder %s38, 1
      %p107 = por %p105, %p106
      %p108 = scmp.ne.s32.totalorder %s97, %s98
      %p109 = scmp.eq.s32.totalorder %s38, 0
      %p110 = por %p108, %p109
      %p111 = scmp.ne.s32.totalorder %s97, %s98
      %p112 = scmp.eq.s32.totalorder %s39, 1
      %p113 = por %p111, %p112
      %p115 = scmp.ne.s32.totalorder %s98, %s114
      %p116 = scmp.eq.s32.totalorder %s39, 0
      %p117 = por %p115, %p116
      %s118 = sadd.s32 %s42, %s41
      %p119 = scmp.lt.s32.totalorder %s118, 0
      %s120 = scalar_select %p119, %s118, 0
      %s121 = sadd.s32 %s51, %s55
      %p122 = scmp.lt.s32.totalorder %s121, 0
      %s123 = scalar_select %p122, %s121, 0
      %s124 = ssub.s32 %s120, %s123
      %p125 = scmp.eq.s32.totalorder %s124, 0
      %s127 = sadd.s32 %s126, 1
      %s128 = scalar_select %p125, %s126, %s127
      %p131 = pneg %p125
      %p132 = scmp.eq.s32.totalorder %s33, 1
      %p133 = por %p131, %p132
      %p134 = scmp.ne.s32.totalorder %s126, %s129
      %p135 = scmp.eq.s32.totalorder %s33, 0
      %p136 = por %p134, %p135
      %p137 = scmp.ne.s32.totalorder %s126, %s129
      %p138 = scmp.eq.s32.totalorder %s38, 1
      %p139 = por %p137, %p138
      %p140 = scmp.ne.s32.totalorder %s129, %s130
      %p141 = scmp.eq.s32.totalorder %s38, 0
      %p142 = por %p140, %p141
      %p143 = scmp.ne.s32.totalorder %s129, %s130
      %p144 = scmp.eq.s32.totalorder %s39, 1
      %p145 = por %p143, %p144
      %p147 = scmp.ne.s32.totalorder %s130, %s146
      %p148 = scmp.eq.s32.totalorder %s39, 0
      %p149 = por %p147, %p148
      %s150 = ssub.s32 %s42, %s51
      %s151 = ssub.s32 %s41, %s55
      %s152 = sor.u32 %s150, %s151
      %p153 = scmp.eq.s32.totalorder %s152, 0
      %s155 = sadd.s32 %s154, 1
      %s156 = scalar_select %p153, %s154, %s155
      %p159 = pneg %p153
      %p160 = scmp.eq.s32.totalorder %s33, 1
      %p161 = por %p159, %p160
      %p162 = scmp.ne.s32.totalorder %s154, %s157
      %p163 = scmp.eq.s32.totalorder %s33, 0
      %p164 = por %p162, %p163
      %p165 = scmp.ne.s32.totalorder %s154, %s157
      %p166 = scmp.eq.s32.totalorder %s38, 1
      %p167 = por %p165, %p166
      %p168 = scmp.ne.s32.totalorder %s157, %s158
      %p169 = scmp.eq.s32.totalorder %s38, 0
      %p170 = por %p168, %p169
      %p171 = scmp.ne.s32.totalorder %s157, %s158
      %p172 = scmp.eq.s32.totalorder %s39, 1
      %p173 = por %p171, %p172
      %p175 = scmp.ne.s32.totalorder %s158, %s174
      %p176 = scmp.eq.s32.totalorder %s39, 0
      %p177 = por %p175, %p176
      %s178 = ssub.s32 %s41, %s55
      %p179 = scmp.eq.s32.totalorder %s178, 0
      %s181 = sadd.s32 %s180, 1
      %s182 = scalar_select %p179, %s180, %s181
      %p185 = pneg %p179
      %p186 = scmp.eq.s32.totalorder %s33, 1
      %p187 = por %p185, %p186
      %p188 = scmp.ne.s32.totalorder %s180, %s183
      %p189 = scmp.eq.s32.totalorder %s33, 0
      %p190 = por %p188, %p189
      %p191 = scmp.ne.s32.totalorder %s180, %s183
      %p192 = scmp.eq.s32.totalorder %s38, 1
      %p193 = por %p191, %p192
      %p194 = scmp.ne.s32.totalorder %s183, %s184
      %p195 = scmp.eq.s32.totalorder %s38, 0
      %p196 = por %p194, %p195
      %p197 = scmp.ne.s32.totalorder %s183, %s184
      %p198 = scmp.eq.s32.totalorder %s39, 1
      %p199 = por %p197, %p198
      %p201 = scmp.ne.s32.totalorder %s184, %s200
      %p202 = scmp.eq.s32.totalorder %s39, 0
      %p203 = por %p201, %p202
      %s204 = sadd.s32 %s42, %s41
      %p205 = scmp.lt.s32.totalorder %s204, 0
      %s206 = scalar_select %p205, %s204, 0
      %s207 = sadd.s32 %s51, %s55
      %p208 = scmp.lt.s32.totalorder %s207, 0
      %s209 = scalar_select %p208, %s207, 0
      %s210 = ssub.s32 %s206, %s209
      %p211 = scmp.eq.s32.totalorder %s210, 0
      %s213 = sadd.s32 %s212, 1
      %s214 = scalar_select %p211, %s212, %s213
      %p217 = pneg %p211
      %p218 = scmp.eq.s32.totalorder %s33, 1
      %p219 = por %p217, %p218
      %p220 = scmp.ne.s32.totalorder %s212, %s215
      %p221 = scmp.eq.s32.totalorder %s33, 0
      %p222 = por %p220, %p221
      %p223 = scmp.ne.s32.totalorder %s212, %s215
      %p224 = scmp.eq.s32.totalorder %s38, 1
      %p225 = por %p223, %p224
      %p226 = scmp.ne.s32.totalorder %s215, %s216
      %p227 = scmp.eq.s32.totalorder %s38, 0
      %p228 = por %p226, %p227
      %p229 = scmp.ne.s32.totalorder %s215, %s216
      %p230 = scmp.eq.s32.totalorder %s39, 1
      %p231 = por %p229, %p230
      %p233 = scmp.ne.s32.totalorder %s216, %s232
      %p234 = scmp.eq.s32.totalorder %s39, 0
      %p235 = por %p233, %p234
      %s236 = sadd.s32 %s42, %s41
      %p237 = scmp.lt.s32.totalorder %s236, 0
      %s238 = scalar_select %p237, %s236, 0
      %s239 = sadd.s32 %s51, %s55
      %p240 = scmp.lt.s32.totalorder %s239, 0
      %s241 = scalar_select %p240, %s239, 0
      %s242 = ssub.s32 %s238, %s241
      %p243 = scmp.eq.s32.totalorder %s242, 0
      %s245 = sadd.s32 %s244, 1
      %s246 = scalar_select %p243, %s244, %s245
      %p249 = pneg %p243
      %p250 = scmp.eq.s32.totalorder %s33, 1
      %p251 = por %p249, %p250
      %p252 = scmp.ne.s32.totalorder %s244, %s247
      %p253 = scmp.eq.s32.totalorder %s33, 0
      %p254 = por %p252, %p253
      %p255 = scmp.ne.s32.totalorder %s244, %s247
      %p256 = scmp.eq.s32.totalorder %s38, 1
      %p257 = por %p255, %p256
      %p258 = scmp.ne.s32.totalorder %s247, %s248
      %p259 = scmp.eq.s32.totalorder %s38, 0
      %p260 = por %p258, %p259
      %p261 = scmp.ne.s32.totalorder %s247, %s248
      %p262 = scmp.eq.s32.totalorder %s39, 1
      %p263 = por %p261, %p262
      %p265 = scmp.ne.s32.totalorder %s248, %s264
      %p266 = scmp.eq.s32.totalorder %s39, 0
      %p267 = por %p265, %p266
      %s268 = sadd.s32 %s42, %s41
      %p269 = scmp.lt.s32.totalorder %s268, 0
      %s270 = scalar_select %p269, %s268, 0
      %s271 = sadd.s32 %s51, %s55
      %p272 = scmp.lt.s32.totalorder %s271, 0
      %s273 = scalar_select %p272, %s271, 0
      %s274 = ssub.s32 %s270, %s273
      %p275 = scmp.eq.s32.totalorder %s274, 0
      %s277 = sadd.s32 %s276, 1
      %s278 = scalar_select %p275, %s276, %s277
      %p281 = pneg %p275
      %p282 = scmp.eq.s32.totalorder %s33, 1
      %p283 = por %p281, %p282
      %p284 = scmp.ne.s32.totalorder %s276, %s279
      %p285 = scmp.eq.s32.totalorder %s33, 0
      %p286 = por %p284, %p285
      %p287 = scmp.ne.s32.totalorder %s276, %s279
      %p288 = scmp.eq.s32.totalorder %s38, 1
      %p289 = por %p287, %p288
      %p290 = scmp.ne.s32.totalorder %s279, %s280
      %p291 = scmp.eq.s32.totalorder %s38, 0
      %p292 = por %p290, %p291
      %p293 = scmp.ne.s32.totalorder %s279, %s280
      %p294 = scmp.eq.s32.totalorder %s39, 1
      %p295 = por %p293, %p294
      %p297 = scmp.ne.s32.totalorder %s280, %s296
      %p298 = scmp.eq.s32.totalorder %s39, 0
      %p299 = por %p297, %p298
      %s300 = ssub.s32 %s40, %s59
      %s301 = ssub.s32 %s41, %s55
      %s302 = sor.u32 %s300, %s301
      %p303 = scmp.eq.s32.totalorder %s302, 0
      %s305 = sadd.s32 %s304, 1
      %s306 = scalar_select %p303, %s304, %s305
      %p309 = pneg %p303
      %p310 = scmp.eq.s32.totalorder %s33, 1
      %p311 = por %p309, %p310
      %p312 = scmp.ne.s32.totalorder %s304, %s307
      %p313 = scmp.eq.s32.totalorder %s33, 0
      %p314 = por %p312, %p313
      %p315 = scmp.ne.s32.totalorder %s304, %s307
      %p316 = scmp.eq.s32.totalorder %s38, 1
      %p317 = por %p315, %p316
      %p318 = scmp.ne.s32.totalorder %s307, %s308
      %p319 = scmp.eq.s32.totalorder %s38, 0
      %p320 = por %p318, %p319
      %p321 = scmp.ne.s32.totalorder %s307, %s308
      %p322 = scmp.eq.s32.totalorder %s39, 1
      %p323 = por %p321, %p322
      %p325 = scmp.ne.s32.totalorder %s308, %s324
      %p326 = scmp.eq.s32.totalorder %s39, 0
      %p327 = por %p325, %p326
      %s328 = ssub.s32 %s40, %s59
      %p329 = scmp.eq.s32.totalorder %s328, 0
      %s331 = sadd.s32 %s330, 1
      %s332 = scalar_select %p329, %s330, %s331
      %p335 = pneg %p329
      %p336 = scmp.eq.s32.totalorder %s33, 1
      %p337 = por %p335, %p336
      %p338 = scmp.ne.s32.totalorder %s330, %s333
      %p339 = scmp.eq.s32.totalorder %s33, 0
      %p340 = por %p338, %p339
      %p341 = scmp.ne.s32.totalorder %s330, %s333
      %p342 = scmp.eq.s32.totalorder %s38, 1
      %p343 = por %p341, %p342
      %p344 = scmp.ne.s32.totalorder %s333, %s334
      %p345 = scmp.eq.s32.totalorder %s38, 0
      %p346 = por %p344, %p345
      %p347 = scmp.ne.s32.totalorder %s333, %s334
      %p348 = scmp.eq.s32.totalorder %s39, 1
      %p349 = por %p347, %p348
      %p351 = scmp.ne.s32.totalorder %s334, %s350
      %p352 = scmp.eq.s32.totalorder %s39, 0
      %p353 = por %p351, %p352
      %p354 = scmp.le.s32.totalorder 1, %s33
      %p355 = scmp.lt.s32.totalorder %s33, 3
      %p356 = pnand %p354, %p355
      %p357 = pneg %p356
      // Predicated region
      $region9: #{tpu_custom_call.1} parent=5 // pred_check
        _
      $region10: #{tpu_custom_call.1} parent=5 // pred_check_branch
        %359 = sbr.rel (%p356) target = $region12
      $region11: #{tpu_custom_call.1} parent=5 // pred_region
        %s360 = ssub.s32 %s33, 1
        // Predicated region
        $region13: #{tpu_custom_call.1} parent=11 // pred_check
          %p361 = pneg %p78
        $region14: #{tpu_custom_call.1} parent=11 // pred_check_branch
          %363 = sbr.rel (%p361) target = $region16
        $region15: #{tpu_custom_call.1} parent=11 // pred_region
          %s364 = smul.u32 16, %s43
          %s366 = ssub.s32 2048, 2048
          %367 = vsyncadd [#allocation6], %s366
          %s368 = smul.addr %s364, 2
          %s369 = smul.addr %s368, 64
          %s370 = scalar_lea.hbm %s0, %s369
          %s371 = sshll.u32 [#allocation5], 4
          %s372 = int_to_ptr.vmem [resolvable:$true] %s371
          %377 = dma.hbm_to_vmem [thread:$0]  %s370, 2048, %s372, [#allocation6], 128, 128, 8
        $region16: #{tpu_custom_call.1} parent=11 // pred_fallthru
          _
      $region12: #{tpu_custom_call.1} parent=5 // pred_fallthru
        _
      %p378 = scmp.lt.s32.totalorder %s33, 2
      // Predicated region
      $region17: #{tpu_custom_call.1} parent=5 // pred_check
        %p379 = pneg %p378
      $region18: #{tpu_custom_call.1} parent=5 // pred_check_branch
        %381 = sbr.rel (%p379) target = $region20
      $region19: #{tpu_custom_call.1} parent=5 // pred_region
        // Predicated region
        $region21: #{tpu_custom_call.1} parent=19 // pred_check
          %p382 = pneg %p104
        $region22: #{tpu_custom_call.1} parent=19 // pred_check_branch
          %384 = sbr.rel (%p382) target = $region24
        $region23: #{tpu_custom_call.1} parent=19 // pred_region
          %s385 = sand.u32 %s33, 1
          %s386 = scalar_lea.sflag [#allocation9], %s385
          %s387 = sand.u32 %s94, 1
          %s388 = smul.addr %s387, 256
          %s389 = scalar_lea.vmem [#allocation8], %s388
          %s390 = sadd.s32 %s42, %s41
          %p391 = scmp.lt.s32.totalorder %s390, 0
          %s392 = scalar_select %p391, %s390, 0
          %s393 = smul.u32 2, %s392
          %s395 = ssub.s32 4096, 4096
          %396 = vsyncadd %s386, %s395
          %s397 = smul.addr %s393, 64
          %s398 = scalar_lea.hbm %s1, %s397
          %s399 = sshll.u32 %s389, 4
          %s400 = int_to_ptr.vmem [resolvable:$true] %s399
          %405 = dma.hbm_to_vmem [thread:$0]  %s398, 4096, %s400, %s386, 128, 128, 8
        $region24: #{tpu_custom_call.1} parent=19 // pred_fallthru
          _
        // Predicated region
        $region25: #{tpu_custom_call.1} parent=19 // pred_check
          %p406 = pneg %p136
        $region26: #{tpu_custom_call.1} parent=19 // pred_check_branch
          %408 = sbr.rel (%p406) target = $region28
        $region27: #{tpu_custom_call.1} parent=19 // pred_region
          %s409 = sand.u32 %s33, 1
          %s410 = scalar_lea.sflag [#allocation9], %s409
          %s411 = sand.u32 %s126, 1
          %s412 = smul.addr %s411, 2
          %s413 = scalar_lea.vmem [#allocation10], %s412
          %s414 = sadd.s32 %s42, %s41
          %p415 = scmp.lt.s32.totalorder %s414, 0
          %s416 = scalar_select %p415, %s414, 0
          %s417 = smul.u32 2, %s416
          %s419 = ssub.s32 32, 32
          %420 = vsyncadd %s410, %s419
          %s421 = smul.addr %s417, 16
          %s422 = scalar_lea.hbm %s2, %s421
          %s424 = sshll.u32 %s413, 4
          %s425 = int_to_ptr.vmem [resolvable:$true] %s424
          %427 = dma.hbm_to_vmem [thread:$0]  %s422, 32, %s425, %s410
        $region28: #{tpu_custom_call.1} parent=19 // pred_fallthru
          _
        // Predicated region
        $region29: #{tpu_custom_call.1} parent=19 // pred_check
          %p428 = pneg %p164
        $region30: #{tpu_custom_call.1} parent=19 // pred_check_branch
          %430 = sbr.rel (%p428) target = $region32
        $region31: #{tpu_custom_call.1} parent=19 // pred_region
          %s431 = sand.u32 %s33, 1
          %s432 = scalar_lea.sflag [#allocation12], %s431
          %s433 = sand.u32 %s154, 1
          %s434 = smul.addr %s433, 256
          %s435 = scalar_lea.vmem [#allocation11], %s434
          %s436 = smul.u32 32, %s42
          %s437 = smul.u32 2, %s41
          %s439 = ssub.s32 4096, 4096
          %440 = vsyncadd %s432, %s439
          %s441 = smul.addr %s436, 4
          %s442 = sadd.s32 %s437, %s441
          %s443 = smul.addr %s442, 64
          %s444 = scalar_lea.hbm %s3, %s443
          %s445 = sshll.u32 %s435, 4
          %s446 = int_to_ptr.vmem [resolvable:$true] %s445
          %451 = dma.hbm_to_vmem [thread:$0]  %s444, 4096, %s446, %s432, 256, 128, 8
        $region32: #{tpu_custom_call.1} parent=19 // pred_fallthru
          _
        // Predicated region
        $region33: #{tpu_custom_call.1} parent=19 // pred_check
          %p452 = pneg %p190
        $region34: #{tpu_custom_call.1} parent=19 // pred_check_branch
          %454 = sbr.rel (%p452) target = $region36
        $region35: #{tpu_custom_call.1} parent=19 // pred_region
          %s455 = sand.u32 %s33, 1
          %s456 = scalar_lea.sflag [#allocation12], %s455
          %s457 = sand.u32 %s180, 1
          %s458 = smul.addr %s457, 2
          %s459 = scalar_lea.vmem [#allocation13], %s458
          %s460 = smul.u32 2, %s41
          %s462 = ssub.s32 32, 32
          %463 = vsyncadd %s456, %s462
          %s464 = smul.addr %s460, 16
          %s465 = scalar_lea.hbm %s4, %s464
          %s467 = sshll.u32 %s459, 4
          %s468 = int_to_ptr.vmem [resolvable:$true] %s467
          %470 = dma.hbm_to_vmem [thread:$0]  %s465, 32, %s468, %s456
        $region36: #{tpu_custom_call.1} parent=19 // pred_fallthru
          _
        // Predicated region
        $region37: #{tpu_custom_call.1} parent=19 // pred_check
          %p471 = pneg %p222
        $region38: #{tpu_custom_call.1} parent=19 // pred_check_branch
          %473 = sbr.rel (%p471) target = $region40
        $region39: #{tpu_custom_call.1} parent=19 // pred_region
          %s474 = sand.u32 %s33, 1
          %s475 = scalar_lea.sflag [#allocation15], %s474
          %s476 = sand.u32 %s212, 1
          %s477 = smul.addr %s476, 256
          %s478 = scalar_lea.vmem [#allocation14], %s477
          %s479 = sadd.s32 %s42, %s41
          %p480 = scmp.lt.s32.totalorder %s479, 0
          %s481 = scalar_select %p480, %s479, 0
          %s482 = smul.u32 2, %s481
          %s484 = ssub.s32 4096, 4096
          %485 = vsyncadd %s475, %s484
          %s486 = smul.addr %s482, 64
          %s487 = scalar_lea.hbm %s5, %s486
          %s488 = sshll.u32 %s478, 4
          %s489 = int_to_ptr.vmem [resolvable:$true] %s488
          %494 = dma.hbm_to_vmem [thread:$0]  %s487, 4096, %s489, %s475, 128, 128, 8
        $region40: #{tpu_custom_call.1} parent=19 // pred_fallthru
          _
        // Predicated region
        $region41: #{tpu_custom_call.1} parent=19 // pred_check
          %p495 = pneg %p254
        $region42: #{tpu_custom_call.1} parent=19 // pred_check_branch
          %497 = sbr.rel (%p495) target = $region44
        $region43: #{tpu_custom_call.1} parent=19 // pred_region
          %s498 = sand.u32 %s33, 1
          %s499 = scalar_lea.sflag [#allocation15], %s498
          %s500 = sand.u32 %s244, 1
          %s501 = smul.addr %s500, 2
          %s502 = scalar_lea.vmem [#allocation16], %s501
          %s503 = sadd.s32 %s42, %s41
          %p504 = scmp.lt.s32.totalorder %s503, 0
          %s505 = scalar_select %p504, %s503, 0
          %s506 = smul.u32 2, %s505
          %s508 = ssub.s32 32, 32
          %509 = vsyncadd %s499, %s508
          %s510 = smul.addr %s506, 16
          %s511 = scalar_lea.hbm %s6, %s510
          %s513 = sshll.u32 %s502, 4
          %s514 = int_to_ptr.vmem [resolvable:$true] %s513
          %516 = dma.hbm_to_vmem [thread:$0]  %s511, 32, %s514, %s499
        $region44: #{tpu_custom_call.1} parent=19 // pred_fallthru
          _
        // Predicated region
        $region45: #{tpu_custom_call.1} parent=19 // pred_check
          %p517 = pneg %p286
        $region46: #{tpu_custom_call.1} parent=19 // pred_check_branch
          %519 = sbr.rel (%p517) target = $region48
        $region47: #{tpu_custom_call.1} parent=19 // pred_region
          %s520 = sand.u32 %s276, 1
          %s521 = scalar_lea.sflag [#allocation18], %s520
          %s522 = sand.u32 %s276, 1
          %s523 = smul.addr %s522, 2
          %s524 = scalar_lea.vmem [#allocation17], %s523
          %s525 = sadd.s32 %s42, %s41
          %p526 = scmp.lt.s32.totalorder %s525, 0
          %s527 = scalar_select %p526, %s525, 0
          %s528 = smul.u32 2, %s527
          %s530 = ssub.s32 32, 32
          %531 = vsyncadd %s521, %s530
          %s532 = smul.addr %s528, 16
          %s533 = scalar_lea.hbm %s7, %s532
          %s535 = sshll.u32 %s524, 4
          %s536 = int_to_ptr.vmem [resolvable:$true] %s535
          %538 = dma.hbm_to_vmem [thread:$0]  %s533, 32, %s536, %s521
        $region48: #{tpu_custom_call.1} parent=19 // pred_fallthru
          _
      $region20: #{tpu_custom_call.1} parent=5 // pred_fallthru
        _
      %p539 = scmp.le.s32.totalorder 1, %s33
      %p540 = scmp.lt.s32.totalorder %s33, 3
      %p541 = pnand %p539, %p540
      %p542 = pneg %p541
      // Predicated region
      $region49: #{tpu_custom_call.1} parent=5 // pred_check
        _
      $region50: #{tpu_custom_call.1} parent=5 // pred_check_branch
        %544 = sbr.rel (%p541) target = $region52
      $region51: #{tpu_custom_call.1} parent=5 // pred_region
        %s545 = ssub.s32 %s33, 1
        // Predicated region
        $region53: #{tpu_custom_call.1} parent=51 // pred_check
          %p546 = pneg %p78
        $region54: #{tpu_custom_call.1} parent=51 // pred_check_branch
          %548 = sbr.rel (%p546) target = $region56
        $region55: #{tpu_custom_call.1} parent=51 // pred_region
          %549 = dma.done [#allocation6], 2048
        $region56: #{tpu_custom_call.1} parent=51 // pred_fallthru
          _
        %s550 = sand.u32 %s38, 1
        %s551 = scalar_lea.sflag [#allocation9], %s550
        %s552 = sand.u32 %s97, 1
        %s553 = smul.addr %s552, 256
        %s554 = scalar_lea.vmem [#allocation8], %s553
        // Predicated region
        $region57: #{tpu_custom_call.1} parent=51 // pred_check
          %p555 = pneg %p110
        $region58: #{tpu_custom_call.1} parent=51 // pred_check_branch
          %557 = sbr.rel (%p555) target = $region60
        $region59: #{tpu_custom_call.1} parent=51 // pred_region
          %558 = dma.done %s551, 4096
        $region60: #{tpu_custom_call.1} parent=51 // pred_fallthru
          _
        %s559 = sand.u32 %s38, 1
        %s560 = scalar_lea.sflag [#allocation9], %s559
        %s561 = sand.u32 %s129, 1
        %s562 = smul.addr %s561, 2
        %s563 = scalar_lea.vmem [#allocation10], %s562
        // Predicated region
        $region61: #{tpu_custom_call.1} parent=51 // pred_check
          %p564 = pneg %p142
        $region62: #{tpu_custom_call.1} parent=51 // pred_check_branch
          %566 = sbr.rel (%p564) target = $region64
        $region63: #{tpu_custom_call.1} parent=51 // pred_region
          %567 = dma.done %s560, 32
        $region64: #{tpu_custom_call.1} parent=51 // pred_fallthru
          _
        %s568 = sand.u32 %s38, 1
        %s569 = scalar_lea.sflag [#allocation12], %s568
        %s570 = sand.u32 %s157, 1
        %s571 = smul.addr %s570, 256
        %s572 = scalar_lea.vmem [#allocation11], %s571
        // Predicated region
        $region65: #{tpu_custom_call.1} parent=51 // pred_check
          %p573 = pneg %p170
        $region66: #{tpu_custom_call.1} parent=51 // pred_check_branch
          %575 = sbr.rel (%p573) target = $region68
        $region67: #{tpu_custom_call.1} parent=51 // pred_region
          %576 = dma.done %s569, 4096
        $region68: #{tpu_custom_call.1} parent=51 // pred_fallthru
          _
        %s577 = sand.u32 %s38, 1
        %s578 = scalar_lea.sflag [#allocation12], %s577
        %s579 = sand.u32 %s183, 1
        %s580 = smul.addr %s579, 2
        %s581 = scalar_lea.vmem [#allocation13], %s580
        // Predicated region
        $region69: #{tpu_custom_call.1} parent=51 // pred_check
          %p582 = pneg %p196
        $region70: #{tpu_custom_call.1} parent=51 // pred_check_branch
          %584 = sbr.rel (%p582) target = $region72
        $region71: #{tpu_custom_call.1} parent=51 // pred_region
          %585 = dma.done %s578, 32
        $region72: #{tpu_custom_call.1} parent=51 // pred_fallthru
          _
        %s586 = sand.u32 %s38, 1
        %s587 = scalar_lea.sflag [#allocation15], %s586
        %s588 = sand.u32 %s215, 1
        %s589 = smul.addr %s588, 256
        %s590 = scalar_lea.vmem [#allocation14], %s589
        // Predicated region
        $region73: #{tpu_custom_call.1} parent=51 // pred_check
          %p591 = pneg %p228
        $region74: #{tpu_custom_call.1} parent=51 // pred_check_branch
          %593 = sbr.rel (%p591) target = $region76
        $region75: #{tpu_custom_call.1} parent=51 // pred_region
          %594 = dma.done %s587, 4096
        $region76: #{tpu_custom_call.1} parent=51 // pred_fallthru
          _
        %s595 = sand.u32 %s38, 1
        %s596 = scalar_lea.sflag [#allocation15], %s595
        %s597 = sand.u32 %s247, 1
        %s598 = smul.addr %s597, 2
        %s599 = scalar_lea.vmem [#allocation16], %s598
        // Predicated region
        $region77: #{tpu_custom_call.1} parent=51 // pred_check
          %p600 = pneg %p260
        $region78: #{tpu_custom_call.1} parent=51 // pred_check_branch
          %602 = sbr.rel (%p600) target = $region80
        $region79: #{tpu_custom_call.1} parent=51 // pred_region
          %603 = dma.done %s596, 32
        $region80: #{tpu_custom_call.1} parent=51 // pred_fallthru
          _
        %s604 = sand.u32 %s279, 1
        %s605 = scalar_lea.sflag [#allocation18], %s604
        %s606 = sand.u32 %s279, 1
        %s607 = smul.addr %s606, 2
        %s608 = scalar_lea.vmem [#allocation17], %s607
        // Predicated region
        $region81: #{tpu_custom_call.1} parent=51 // pred_check
          %p609 = pneg %p292
        $region82: #{tpu_custom_call.1} parent=51 // pred_check_branch
          %611 = sbr.rel (%p609) target = $region84
        $region83: #{tpu_custom_call.1} parent=51 // pred_region
          %612 = dma.done %s605, 32
        $region84: #{tpu_custom_call.1} parent=51 // pred_fallthru
          _
        %p613 = pneg %p78
        %p614 = pneg %p75
        %s615 = sand.u32 %s38, 1
        %s616 = scalar_lea.sflag [#allocation9], %s615
        %s617 = sand.u32 %s97, 1
        %s618 = smul.addr %s617, 256
        %s619 = scalar_lea.vmem [#allocation8], %s618
        %p620 = pneg %p110
        %p621 = pneg %p107
        %s622 = sand.u32 %s38, 1
        %s623 = scalar_lea.sflag [#allocation9], %s622
        %s624 = sand.u32 %s129, 1
        %s625 = smul.addr %s624, 2
        %s626 = scalar_lea.vmem [#allocation10], %s625
        %p627 = pneg %p142
        %p628 = pneg %p139
        %s629 = sand.u32 %s38, 1
        %s630 = scalar_lea.sflag [#allocation12], %s629
        %s631 = sand.u32 %s157, 1
        %s632 = smul.addr %s631, 256
        %s633 = scalar_lea.vmem [#allocation11], %s632
        %p634 = pneg %p170
        %p635 = pneg %p167
        %s636 = sand.u32 %s38, 1
        %s637 = scalar_lea.sflag [#allocation12], %s636
        %s638 = sand.u32 %s183, 1
        %s639 = smul.addr %s638, 2
        %s640 = scalar_lea.vmem [#allocation13], %s639
        %p641 = pneg %p196
        %p642 = pneg %p193
        %s643 = sand.u32 %s38, 1
        %s644 = scalar_lea.sflag [#allocation15], %s643
        %s645 = sand.u32 %s215, 1
        %s646 = smul.addr %s645, 256
        %s647 = scalar_lea.vmem [#allocation14], %s646
        %p648 = pneg %p228
        %p649 = pneg %p225
        %s650 = sand.u32 %s38, 1
        %s651 = scalar_lea.sflag [#allocation15], %s650
        %s652 = sand.u32 %s247, 1
        %s653 = smul.addr %s652, 2
        %s654 = scalar_lea.vmem [#allocation16], %s653
        %p655 = pneg %p260
        %p656 = pneg %p257
        %s657 = sand.u32 %s279, 1
        %s658 = scalar_lea.sflag [#allocation18], %s657
        %s659 = sand.u32 %s279, 1
        %s660 = smul.addr %s659, 2
        %s661 = scalar_lea.vmem [#allocation17], %s660
        %p662 = pneg %p292
        %p663 = pneg %p289
        %p664 = pneg %p320
        %p665 = pneg %p317
        %s666 = sand.u32 %s307, 1
        %s667 = scalar_lea.sflag [#allocation7], %s666
        %s668 = sand.u32 %s307, 1
        %s669 = smul.addr %s668, 128
        %s670 = scalar_lea.vmem [#allocation19], %s669
        %p671 = pneg %p346
        %p672 = pneg %p343
        %s673 = smul.u32 16, %s43
        %s674 = sadd.s32 %s45, %s44
        %p675 = scmp.lt.s32.totalorder %s674, 0
        %s676 = scalar_select %p675, %s674, 0
        %s677 = smul.u32 2, %s676
        %s678 = sadd.s32 %s45, %s44
        %p679 = scmp.lt.s32.totalorder %s678, 0
        %s680 = scalar_select %p679, %s678, 0
        %s681 = smul.u32 2, %s680
        %s682 = smul.u32 32, %s45
        %s683 = smul.u32 2, %s44
        %s684 = smul.u32 2, %s44
        %s685 = sadd.s32 %s45, %s44
        %p686 = scmp.lt.s32.totalorder %s685, 0
        %s687 = scalar_select %p686, %s685, 0
        %s688 = smul.u32 2, %s687
        %s689 = sadd.s32 %s45, %s44
        %p690 = scmp.lt.s32.totalorder %s689, 0
        %s691 = scalar_select %p690, %s689, 0
        %s692 = smul.u32 2, %s691
        %s693 = sadd.s32 %s45, %s44
        %p694 = scmp.lt.s32.totalorder %s693, 0
        %s695 = scalar_select %p694, %s693, 0
        %s696 = smul.u32 2, %s695
        %s697 = smul.u32 16, %s43
        %s698 = smul.u32 2, %s44
        %s699 = smul.u32 16, %s43
        %p700 = scmp.eq.s32.totalorder %s44, 0
        // Predicated region
        $region85: #{tpu_custom_call.1} parent=51 // pred_check
          %p701 = pneg %p700
        $region86: #{tpu_custom_call.1} parent=51 // pred_check_branch
          %703 = sbr.rel (%p701) target = $region88
        $region87: #{tpu_custom_call.1} parent=51 // pred_region
          %v704 = vld [vmem:[#allocation5] sm:$0xff]
          %v705 = vld [vmem:[#allocation5 + $0x8] sm:$0xff]
          %v706 = vld [vmem:[#allocation5 + $0x10] sm:$0xff]
          %v707 = vld [vmem:[#allocation5 + $0x18] sm:$0xff]
          %v708 = vld [vmem:[#allocation5 + $0x20] sm:$0xff]
          %v709 = vld [vmem:[#allocation5 + $0x28] sm:$0xff]
          %v710 = vld [vmem:[#allocation5 + $0x30] sm:$0xff]
          %v711 = vld [vmem:[#allocation5 + $0x38] sm:$0xff]
          %v712 = vld [vmem:[#allocation5 + $0x40] sm:$0xff]
          %v713 = vld [vmem:[#allocation5 + $0x48] sm:$0xff]
          %v714 = vld [vmem:[#allocation5 + $0x50] sm:$0xff]
          %v715 = vld [vmem:[#allocation5 + $0x58] sm:$0xff]
          %v716 = vld [vmem:[#allocation5 + $0x60] sm:$0xff]
          %v717 = vld [vmem:[#allocation5 + $0x68] sm:$0xff]
          %v718 = vld [vmem:[#allocation5 + $0x70] sm:$0xff]
          %v719 = vld [vmem:[#allocation5 + $0x78] sm:$0xff]
          %v720 = vld [vmem:[%s554] sm:$0xff]
          %v721 = vld [vmem:[%s554 + $0x8] sm:$0xff]
          %v722 = vld [vmem:[%s554 + $0x10] sm:$0xff]
          %v723 = vld [vmem:[%s554 + $0x18] sm:$0xff]
          %v724 = vld [vmem:[%s554 + $0x20] sm:$0xff]
          %v725 = vld [vmem:[%s554 + $0x28] sm:$0xff]
          %v726 = vld [vmem:[%s554 + $0x30] sm:$0xff]
          %v727 = vld [vmem:[%s554 + $0x38] sm:$0xff]
          %v728 = vld [vmem:[%s554 + $0x40] sm:$0xff]
          %v729 = vld [vmem:[%s554 + $0x48] sm:$0xff]
          %v730 = vld [vmem:[%s554 + $0x50] sm:$0xff]
          %v731 = vld [vmem:[%s554 + $0x58] sm:$0xff]
          %v732 = vld [vmem:[%s554 + $0x60] sm:$0xff]
          %v733 = vld [vmem:[%s554 + $0x68] sm:$0xff]
          %v734 = vld [vmem:[%s554 + $0x70] sm:$0xff]
          %v735 = vld [vmem:[%s554 + $0x78] sm:$0xff]
          %v736 = vld [vmem:[%s554 + $0x80] sm:$0xff]
          %v737 = vld [vmem:[%s554 + $0x88] sm:$0xff]
          %v738 = vld [vmem:[%s554 + $0x90] sm:$0xff]
          %v739 = vld [vmem:[%s554 + $0x98] sm:$0xff]
          %v740 = vld [vmem:[%s554 + $0xa0] sm:$0xff]
          %v741 = vld [vmem:[%s554 + $0xa8] sm:$0xff]
          %v742 = vld [vmem:[%s554 + $0xb0] sm:$0xff]
          %v743 = vld [vmem:[%s554 + $0xb8] sm:$0xff]
          %v744 = vld [vmem:[%s554 + $0xc0] sm:$0xff]
          %v745 = vld [vmem:[%s554 + $0xc8] sm:$0xff]
          %v746 = vld [vmem:[%s554 + $0xd0] sm:$0xff]
          %v747 = vld [vmem:[%s554 + $0xd8] sm:$0xff]
          %v748 = vld [vmem:[%s554 + $0xe0] sm:$0xff]
          %v749 = vld [vmem:[%s554 + $0xe8] sm:$0xff]
          %v750 = vld [vmem:[%s554 + $0xf0] sm:$0xff]
          %v751 = vld [vmem:[%s554 + $0xf8] sm:$0xff]
          %v752 = vld [vmem:[%s563] sm:$0x3]
          %v754 = vlaneseq
          %v755 = vshrl.u32 %v754, 7
          %v756 = vsub.s32 0, %v755
          %v757 = vrot.slane %v752, %v756
          %v758 = vlaneseq
          %v759 = vshrl.u32 %v758, 7
          %v760 = vsub.s32 1, %v759
          %v761 = vrot.slane %v752, %v760
          %v780 = vunpack.c.l.b16 %v704
          %v781 = vunpack.c.h.b16 %v704
          %v782 = vunpack.c.l.b16 %v705
          %v783 = vunpack.c.h.b16 %v705
          %v784 = vunpack.c.l.b16 %v706
          %v785 = vunpack.c.h.b16 %v706
          %v786 = vunpack.c.l.b16 %v707
          %v787 = vunpack.c.h.b16 %v707
          %v788 = vunpack.c.l.b16 %v708
          %v789 = vunpack.c.h.b16 %v708
          %v790 = vunpack.c.l.b16 %v709
          %v791 = vunpack.c.h.b16 %v709
          %v792 = vunpack.c.l.b16 %v710
          %v793 = vunpack.c.h.b16 %v710
          %v794 = vunpack.c.l.b16 %v711
          %v795 = vunpack.c.h.b16 %v711
          %v796 = vunpack.c.l.b16 %v712
          %v797 = vunpack.c.h.b16 %v712
          %v798 = vunpack.c.l.b16 %v713
          %v799 = vunpack.c.h.b16 %v713
          %v800 = vunpack.c.l.b16 %v714
          %v801 = vunpack.c.h.b16 %v714
          %v802 = vunpack.c.l.b16 %v715
          %v803 = vunpack.c.h.b16 %v715
          %v804 = vunpack.c.l.b16 %v716
          %v805 = vunpack.c.h.b16 %v716
          %v806 = vunpack.c.l.b16 %v717
          %v807 = vunpack.c.h.b16 %v717
          %v808 = vunpack.c.l.b16 %v718
          %v809 = vunpack.c.h.b16 %v718
          %v810 = vunpack.c.l.b16 %v719
          %v811 = vunpack.c.h.b16 %v719
          %v812 = vpack.c.b16 %v782, %v780
          %v813 = vpack.c.b16 %v783, %v781
          %v814 = vpack.c.b16 %v786, %v784
          %v815 = vpack.c.b16 %v787, %v785
          %v816 = vpack.c.b16 %v790, %v788
          %v817 = vpack.c.b16 %v791, %v789
          %v818 = vpack.c.b16 %v794, %v792
          %v819 = vpack.c.b16 %v795, %v793
          %v820 = vpack.c.b16 %v798, %v796
          %v821 = vpack.c.b16 %v799, %v797
          %v822 = vpack.c.b16 %v802, %v800
          %v823 = vpack.c.b16 %v803, %v801
          %v824 = vpack.c.b16 %v806, %v804
          %v825 = vpack.c.b16 %v807, %v805
          %v826 = vpack.c.b16 %v810, %v808
          %v827 = vpack.c.b16 %v811, %v809
          %v876 = vunpack.c.l.b16 %v720
          %v877 = vunpack.c.h.b16 %v720
          %v878 = vunpack.c.l.b16 %v721
          %v879 = vunpack.c.h.b16 %v721
          %v880 = vunpack.c.l.b16 %v722
          %v881 = vunpack.c.h.b16 %v722
          %v882 = vunpack.c.l.b16 %v723
          %v883 = vunpack.c.h.b16 %v723
          %v884 = vunpack.c.l.b16 %v724
          %v885 = vunpack.c.h.b16 %v724
          %v886 = vunpack.c.l.b16 %v725
          %v887 = vunpack.c.h.b16 %v725
          %v888 = vunpack.c.l.b16 %v726
          %v889 = vunpack.c.h.b16 %v726
          %v890 = vunpack.c.l.b16 %v727
          %v891 = vunpack.c.h.b16 %v727
          %v892 = vunpack.c.l.b16 %v728
          %v893 = vunpack.c.h.b16 %v728
          %v894 = vunpack.c.l.b16 %v729
          %v895 = vunpack.c.h.b16 %v729
          %v896 = vunpack.c.l.b16 %v730
          %v897 = vunpack.c.h.b16 %v730
          %v898 = vunpack.c.l.b16 %v731
          %v899 = vunpack.c.h.b16 %v731
          %v900 = vunpack.c.l.b16 %v732
          %v901 = vunpack.c.h.b16 %v732
          %v902 = vunpack.c.l.b16 %v733
          %v903 = vunpack.c.h.b16 %v733
          %v904 = vunpack.c.l.b16 %v734
          %v905 = vunpack.c.h.b16 %v734
          %v906 = vunpack.c.l.b16 %v735
          %v907 = vunpack.c.h.b16 %v735
          %v908 = vunpack.c.l.b16 %v736
          %v909 = vunpack.c.h.b16 %v736
          %v910 = vunpack.c.l.b16 %v737
          %v911 = vunpack.c.h.b16 %v737
          %v912 = vunpack.c.l.b16 %v738
          %v913 = vunpack.c.h.b16 %v738
          %v914 = vunpack.c.l.b16 %v739
          %v915 = vunpack.c.h.b16 %v739
          %v916 = vunpack.c.l.b16 %v740
          %v917 = vunpack.c.h.b16 %v740
          %v918 = vunpack.c.l.b16 %v741
          %v919 = vunpack.c.h.b16 %v741
          %v920 = vunpack.c.l.b16 %v742
          %v921 = vunpack.c.h.b16 %v742
          %v922 = vunpack.c.l.b16 %v743
          %v923 = vunpack.c.h.b16 %v743
          %v924 = vunpack.c.l.b16 %v744
          %v925 = vunpack.c.h.b16 %v744
          %v926 = vunpack.c.l.b16 %v745
          %v927 = vunpack.c.h.b16 %v745
          %v928 = vunpack.c.l.b16 %v746
          %v929 = vunpack.c.h.b16 %v746
          %v930 = vunpack.c.l.b16 %v747
          %v931 = vunpack.c.h.b16 %v747
          %v932 = vunpack.c.l.b16 %v748
          %v933 = vunpack.c.h.b16 %v748
          %v934 = vunpack.c.l.b16 %v749
          %v935 = vunpack.c.h.b16 %v749
          %v936 = vunpack.c.l.b16 %v750
          %v937 = vunpack.c.h.b16 %v750
          %v938 = vunpack.c.l.b16 %v751
          %v939 = vunpack.c.h.b16 %v751
          %v940 = vpack.c.b16 %v878, %v876
          %v941 = vpack.c.b16 %v879, %v877
          %v942 = vpack.c.b16 %v882, %v880
          %v943 = vpack.c.b16 %v883, %v881
          %v944 = vpack.c.b16 %v886, %v884
          %v945 = vpack.c.b16 %v887, %v885
          %v946 = vpack.c.b16 %v890, %v888
          %v947 = vpack.c.b16 %v891, %v889
          %v948 = vpack.c.b16 %v894, %v892
          %v949 = vpack.c.b16 %v895, %v893
          %v950 = vpack.c.b16 %v898, %v896
          %v951 = vpack.c.b16 %v899, %v897
          %v952 = vpack.c.b16 %v902, %v900
          %v953 = vpack.c.b16 %v903, %v901
          %v954 = vpack.c.b16 %v906, %v904
          %v955 = vpack.c.b16 %v907, %v905
          %v956 = vpack.c.b16 %v910, %v908
          %v957 = vpack.c.b16 %v911, %v909
          %v958 = vpack.c.b16 %v914, %v912
          %v959 = vpack.c.b16 %v915, %v913
          %v960 = vpack.c.b16 %v918, %v916
          %v961 = vpack.c.b16 %v919, %v917
          %v962 = vpack.c.b16 %v922, %v920
          %v963 = vpack.c.b16 %v923, %v921
          %v964 = vpack.c.b16 %v926, %v924
          %v965 = vpack.c.b16 %v927, %v925
          %v966 = vpack.c.b16 %v930, %v928
          %v967 = vpack.c.b16 %v931, %v929
          %v968 = vpack.c.b16 %v934, %v932
          %v969 = vpack.c.b16 %v935, %v933
          %v970 = vpack.c.b16 %v938, %v936
          %v971 = vpack.c.b16 %v939, %v937
          %1004 = vmatprep.subr.bf16.mxu0 %v941
          %1005 = vmatpush1.bf16.msra.mxu0 %v940
          %1006 = vmatprep.subr.bf16.mxu0 %v943
          %1007 = vmatpush1.bf16.msra.mxu0 %v942
          %1008 = vmatprep.subr.bf16.mxu0 %v945
          %1009 = vmatpush1.bf16.msra.mxu0 %v944
          %1010 = vmatprep.subr.bf16.mxu0 %v947
          %1011 = vmatpush1.bf16.msra.mxu0 %v946
          %1012 = vmatprep.subr.bf16.mxu0 %v949
          %1013 = vmatpush1.bf16.msra.mxu0 %v948
          %1014 = vmatprep.subr.bf16.mxu0 %v951
          %1015 = vmatpush1.bf16.msra.mxu0 %v950
          %1016 = vmatprep.subr.bf16.mxu0 %v953
          %1017 = vmatpush1.bf16.msra.mxu0 %v952
          %1018 = vmatprep.subr.bf16.mxu0 %v955
          %1019 = vmatpush1.bf16.msra.mxu0 %v954
          %1020 = vmatprep.subr.bf16.mxu0 %v957
          %1021 = vmatpush1.bf16.msra.mxu0 %v956
          %1022 = vmatprep.subr.bf16.mxu0 %v959
          %1023 = vmatpush1.bf16.msra.mxu0 %v958
          %1024 = vmatprep.subr.bf16.mxu0 %v961
          %1025 = vmatpush1.bf16.msra.mxu0 %v960
          %1026 = vmatprep.subr.bf16.mxu0 %v963
          %1027 = vmatpush1.bf16.msra.mxu0 %v962
          %1028 = vmatprep.subr.bf16.mxu0 %v965
          %1029 = vmatpush1.bf16.msra.mxu0 %v964
          %1030 = vmatprep.subr.bf16.mxu0 %v967
          %1031 = vmatpush1.bf16.msra.mxu0 %v966
          %1032 = vmatprep.subr.bf16.mxu0 %v969
          %1033 = vmatpush1.bf16.msra.mxu0 %v968
          %1034 = vmatprep.subr.bf16.mxu0 %v971
          %1035 = vmatpush1.bf16.msra.mxu0 %v970
          %1036 = vmatprep.mubr.bf16.mxu0 %v813
          %1037 = vmatmul.mubr.bf16.gmra.mrb[0].mxu0 %v812
          %v1038 = vpop.f32.mrb[0].mxu0
          %v1039 = vadd.f32 %v757, %v1038
          %v1040 = vpop.f32.mrb[0].mxu0
          %v1041 = vadd.f32 %v761, %v1040
          %v1042 = vpop.f32.mrb[0].mxu0
          %v1043 = vadd.f32 %v757, %v1042
          %v1044 = vpop.f32.mrb[0].mxu0
          %v1045 = vadd.f32 %v761, %v1044
          %1046 = vmatprep.mubr.bf16.mxu0 %v815
          %1047 = vmatmul.mubr.bf16.gmra.mrb[0].mxu0 %v814
          %v1048 = vpop.f32.mrb[0].mxu0
          %v1049 = vadd.f32 %v757, %v1048
          %v1050 = vpop.f32.mrb[0].mxu0
          %v1051 = vadd.f32 %v761, %v1050
          %v1052 = vpop.f32.mrb[0].mxu0
          %v1053 = vadd.f32 %v757, %v1052
          %v1054 = vpop.f32.mrb[0].mxu0
          %v1055 = vadd.f32 %v761, %v1054
          %1056 = vmatprep.mubr.bf16.mxu0 %v817
          %1057 = vmatmul.mubr.bf16.gmra.mrb[0].mxu0 %v816
          %v1058 = vpop.f32.mrb[0].mxu0
          %v1059 = vadd.f32 %v757, %v1058
          %v1060 = vpop.f32.mrb[0].mxu0
          %v1061 = vadd.f32 %v761, %v1060
          %v1062 = vpop.f32.mrb[0].mxu0
          %v1063 = vadd.f32 %v757, %v1062
          %v1064 = vpop.f32.mrb[0].mxu0
          %v1065 = vadd.f32 %v761, %v1064
          %1066 = vmatprep.mubr.bf16.mxu0 %v819
          %1067 = vmatmul.mubr.bf16.gmra.mrb[0].mxu0 %v818
          %v1068 = vpop.f32.mrb[0].mxu0
          %v1069 = vadd.f32 %v757, %v1068
          %v1070 = vpop.f32.mrb[0].mxu0
          %v1071 = vadd.f32 %v761, %v1070
          %v1072 = vpop.f32.mrb[0].mxu0
          %v1073 = vadd.f32 %v757, %v1072
          %v1074 = vpop.f32.mrb[0].mxu0
          %v1075 = vadd.f32 %v761, %v1074
          %1076 = vmatprep.mubr.bf16.mxu0 %v821
          %1077 = vmatmul.mubr.bf16.gmra.mrb[0].mxu0 %v820
          %v1078 = vpop.f32.mrb[0].mxu0
          %v1079 = vadd.f32 %v757, %v1078
          %v1080 = vpop.f32.mrb[0].mxu0
          %v1081 = vadd.f32 %v761, %v1080
          %v1082 = vpop.f32.mrb[0].mxu0
          %v1083 = vadd.f32 %v757, %v1082
          %v1084 = vpop.f32.mrb[0].mxu0
          %v1085 = vadd.f32 %v761, %v1084
          %1086 = vmatprep.mubr.bf16.mxu0 %v823
          %1087 = vmatmul.mubr.bf16.gmra.mrb[0].mxu0 %v822
          %v1088 = vpop.f32.mrb[0].mxu0
          %v1089 = vadd.f32 %v757, %v1088
          %v1090 = vpop.f32.mrb[0].mxu0
          %v1091 = vadd.f32 %v761, %v1090
          %v1092 = vpop.f32.mrb[0].mxu0
          %v1093 = vadd.f32 %v757, %v1092
          %v1094 = vpop.f32.mrb[0].mxu0
          %v1095 = vadd.f32 %v761, %v1094
          %1096 = vmatprep.mubr.bf16.mxu0 %v825
          %1097 = vmatmul.mubr.bf16.gmra.mrb[0].mxu0 %v824
          %v1098 = vpop.f32.mrb[0].mxu0
          %v1099 = vadd.f32 %v757, %v1098
          %v1100 = vpop.f32.mrb[0].mxu0
          %v1101 = vadd.f32 %v761, %v1100
          %v1102 = vpop.f32.mrb[0].mxu0
          %v1103 = vadd.f32 %v757, %v1102
          %v1104 = vpop.f32.mrb[0].mxu0
          %v1105 = vadd.f32 %v761, %v1104
          %1106 = vmatprep.mubr.bf16.mxu0 %v827
          %1107 = vmatmul.mubr.bf16.gmra.mrb[0].mxu0 %v826
          %v1108 = vpop.f32.mrb[0].mxu0
          %v1109 = vadd.f32 %v757, %v1108
          %v1110 = vpop.f32.mrb[0].mxu0
          %v1111 = vadd.f32 %v761, %v1110
          %v1112 = vpop.f32.mrb[0].mxu0
          %v1113 = vadd.f32 %v757, %v1112
          %v1114 = vpop.f32.mrb[0].mxu0
          %v1115 = vadd.f32 %v761, %v1114
          %1116 = vdwg.mxu0
          %v1117 = vmul.f32 %v1039, 0.5
          %v1118 = vmul.f32 %v1041, 0.5
          %v1119 = vmul.f32 %v1043, 0.5
          %v1120 = vmul.f32 %v1045, 0.5
          %v1121 = vmul.f32 %v1049, 0.5
          %v1122 = vmul.f32 %v1051, 0.5
          %v1123 = vmul.f32 %v1053, 0.5
          %v1124 = vmul.f32 %v1055, 0.5
          %v1125 = vmul.f32 %v1059, 0.5
          %v1126 = vmul.f32 %v1061, 0.5
          %v1127 = vmul.f32 %v1063, 0.5
          %v1128 = vmul.f32 %v1065, 0.5
          %v1129 = vmul.f32 %v1069, 0.5
          %v1130 = vmul.f32 %v1071, 0.5
          %v1131 = vmul.f32 %v1073, 0.5
          %v1132 = vmul.f32 %v1075, 0.5
          %v1133 = vmul.f32 %v1079, 0.5
          %v1134 = vmul.f32 %v1081, 0.5
          %v1135 = vmul.f32 %v1083, 0.5
          %v1136 = vmul.f32 %v1085, 0.5
          %v1137 = vmul.f32 %v1089, 0.5
          %v1138 = vmul.f32 %v1091, 0.5
          %v1139 = vmul.f32 %v1093, 0.5
          %v1140 = vmul.f32 %v1095, 0.5
          %v1141 = vmul.f32 %v1099, 0.5
          %v1142 = vmul.f32 %v1101, 0.5
          %v1143 = vmul.f32 %v1103, 0.5
          %v1144 = vmul.f32 %v1105, 0.5
          %v1145 = vmul.f32 %v1109, 0.5
          %v1146 = vmul.f32 %v1111, 0.5
          %v1147 = vmul.f32 %v1113, 0.5
          %v1148 = vmul.f32 %v1115, 0.5
          %v1149 = vmul.f32 %v1039, 0.044715
          %v1150 = vmul.f32 %v1041, 0.044715
          %v1151 = vmul.f32 %v1043, 0.044715
          %v1152 = vmul.f32 %v1045, 0.044715
          %v1153 = vmul.f32 %v1049, 0.044715
          %v1154 = vmul.f32 %v1051, 0.044715
          %v1155 = vmul.f32 %v1053, 0.044715
          %v1156 = vmul.f32 %v1055, 0.044715
          %v1157 = vmul.f32 %v1059, 0.044715
          %v1158 = vmul.f32 %v1061, 0.044715
          %v1159 = vmul.f32 %v1063, 0.044715
          %v1160 = vmul.f32 %v1065, 0.044715
          %v1161 = vmul.f32 %v1069, 0.044715
          %v1162 = vmul.f32 %v1071, 0.044715
          %v1163 = vmul.f32 %v1073, 0.044715
          %v1164 = vmul.f32 %v1075, 0.044715
          %v1165 = vmul.f32 %v1079, 0.044715
          %v1166 = vmul.f32 %v1081, 0.044715
          %v1167 = vmul.f32 %v1083, 0.044715
          %v1168 = vmul.f32 %v1085, 0.044715
          %v1169 = vmul.f32 %v1089, 0.044715
          %v1170 = vmul.f32 %v1091, 0.044715
          %v1171 = vmul.f32 %v1093, 0.044715
          %v1172 = vmul.f32 %v1095, 0.044715
          %v1173 = vmul.f32 %v1099, 0.044715
          %v1174 = vmul.f32 %v1101, 0.044715
          %v1175 = vmul.f32 %v1103, 0.044715
          %v1176 = vmul.f32 %v1105, 0.044715
          %v1177 = vmul.f32 %v1109, 0.044715
          %v1178 = vmul.f32 %v1111, 0.044715
          %v1179 = vmul.f32 %v1113, 0.044715
          %v1180 = vmul.f32 %v1115, 0.044715
          %v1181 = vmul.f32 %v1149, %v1039
          %v1182 = vmul.f32 %v1150, %v1041
          %v1183 = vmul.f32 %v1151, %v1043
          %v1184 = vmul.f32 %v1152, %v1045
          %v1185 = vmul.f32 %v1153, %v1049
          %v1186 = vmul.f32 %v1154, %v1051
          %v1187 = vmul.f32 %v1155, %v1053
          %v1188 = vmul.f32 %v1156, %v1055
          %v1189 = vmul.f32 %v1157, %v1059
          %v1190 = vmul.f32 %v1158, %v1061
          %v1191 = vmul.f32 %v1159, %v1063
          %v1192 = vmul.f32 %v1160, %v1065
          %v1193 = vmul.f32 %v1161, %v1069
          %v1194 = vmul.f32 %v1162, %v1071
          %v1195 = vmul.f32 %v1163, %v1073
          %v1196 = vmul.f32 %v1164, %v1075
          %v1197 = vmul.f32 %v1165, %v1079
          %v1198 = vmul.f32 %v1166, %v1081
          %v1199 = vmul.f32 %v1167, %v1083
          %v1200 = vmul.f32 %v1168, %v1085
          %v1201 = vmul.f32 %v1169, %v1089
          %v1202 = vmul.f32 %v1170, %v1091
          %v1203 = vmul.f32 %v1171, %v1093
          %v1204 = vmul.f32 %v1172, %v1095
          %v1205 = vmul.f32 %v1173, %v1099
          %v1206 = vmul.f32 %v1174, %v1101
          %v1207 = vmul.f32 %v1175, %v1103
          %v1208 = vmul.f32 %v1176, %v1105
          %v1209 = vmul.f32 %v1177, %v1109
          %v1210 = vmul.f32 %v1178, %v1111
          %v1211 = vmul.f32 %v1179, %v1113
          %v1212 = vmul.f32 %v1180, %v1115
          %v1213 = vmul.f32 %v1181, %v1039
          %v1214 = vmul.f32 %v1182, %v1041
          %v1215 = vmul.f32 %v1183, %v1043
          %v1216 = vmul.f32 %v1184, %v1045
          %v1217 = vmul.f32 %v1185, %v1049
          %v1218 = vmul.f32 %v1186, %v1051
          %v1219 = vmul.f32 %v1187, %v1053
          %v1220 = vmul.f32 %v1188, %v1055
          %v1221 = vmul.f32 %v1189, %v1059
          %v1222 = vmul.f32 %v1190, %v1061
          %v1223 = vmul.f32 %v1191, %v1063
          %v1224 = vmul.f32 %v1192, %v1065
          %v1225 = vmul.f32 %v1193, %v1069
          %v1226 = vmul.f32 %v1194, %v1071
          %v1227 = vmul.f32 %v1195, %v1073
          %v1228 = vmul.f32 %v1196, %v1075
          %v1229 = vmul.f32 %v1197, %v1079
          %v1230 = vmul.f32 %v1198, %v1081
          %v1231 = vmul.f32 %v1199, %v1083
          %v1232 = vmul.f32 %v1200, %v1085
          %v1233 = vmul.f32 %v1201, %v1089
          %v1234 = vmul.f32 %v1202, %v1091
          %v1235 = vmul.f32 %v1203, %v1093
          %v1236 = vmul.f32 %v1204, %v1095
          %v1237 = vmul.f32 %v1205, %v1099
          %v1238 = vmul.f32 %v1206, %v1101
          %v1239 = vmul.f32 %v1207, %v1103
          %v1240 = vmul.f32 %v1208, %v1105
          %v1241 = vmul.f32 %v1209, %v1109
          %v1242 = vmul.f32 %v1210, %v1111
          %v1243 = vmul.f32 %v1211, %v1113
          %v1244 = vmul.f32 %v1212, %v1115
          %v1245 = vadd.f32 %v1039, %v1213
          %v1246 = vadd.f32 %v1041, %v1214
          %v1247 = vadd.f32 %v1043, %v1215
          %v1248 = vadd.f32 %v1045, %v1216
          %v1249 = vadd.f32 %v1049, %v1217
          %v1250 = vadd.f32 %v1051, %v1218
          %v1251 = vadd.f32 %v1053, %v1219
          %v1252 = vadd.f32 %v1055, %v1220
          %v1253 = vadd.f32 %v1059, %v1221
          %v1254 = vadd.f32 %v1061, %v1222
          %v1255 = vadd.f32 %v1063, %v1223
          %v1256 = vadd.f32 %v1065, %v1224
          %v1257 = vadd.f32 %v1069, %v1225
          %v1258 = vadd.f32 %v1071, %v1226
          %v1259 = vadd.f32 %v1073, %v1227
          %v1260 = vadd.f32 %v1075, %v1228
          %v1261 = vadd.f32 %v1079, %v1229
          %v1262 = vadd.f32 %v1081, %v1230
          %v1263 = vadd.f32 %v1083, %v1231
          %v1264 = vadd.f32 %v1085, %v1232
          %v1265 = vadd.f32 %v1089, %v1233
          %v1266 = vadd.f32 %v1091, %v1234
          %v1267 = vadd.f32 %v1093, %v1235
          %v1268 = vadd.f32 %v1095, %v1236
          %v1269 = vadd.f32 %v1099, %v1237
          %v1270 = vadd.f32 %v1101, %v1238
          %v1271 = vadd.f32 %v1103, %v1239
          %v1272 = vadd.f32 %v1105, %v1240
          %v1273 = vadd.f32 %v1109, %v1241
          %v1274 = vadd.f32 %v1111, %v1242
          %v1275 = vadd.f32 %v1113, %v1243
          %v1276 = vadd.f32 %v1115, %v1244
          %v1277 = vmul.f32 %v1245, 0.7978846
          %v1278 = vmul.f32 %v1246, 0.7978846
          %v1279 = vmul.f32 %v1247, 0.7978846
          %v1280 = vmul.f32 %v1248, 0.7978846
          %v1281 = vmul.f32 %v1249, 0.7978846
          %v1282 = vmul.f32 %v1250, 0.7978846
          %v1283 = vmul.f32 %v1251, 0.7978846
          %v1284 = vmul.f32 %v1252, 0.7978846
          %v1285 = vmul.f32 %v1253, 0.7978846
          %v1286 = vmul.f32 %v1254, 0.7978846
          %v1287 = vmul.f32 %v1255, 0.7978846
          %v1288 = vmul.f32 %v1256, 0.7978846
          %v1289 = vmul.f32 %v1257, 0.7978846
          %v1290 = vmul.f32 %v1258, 0.7978846
          %v1291 = vmul.f32 %v1259, 0.7978846
          %v1292 = vmul.f32 %v1260, 0.7978846
          %v1293 = vmul.f32 %v1261, 0.7978846
          %v1294 = vmul.f32 %v1262, 0.7978846
          %v1295 = vmul.f32 %v1263, 0.7978846
          %v1296 = vmul.f32 %v1264, 0.7978846
          %v1297 = vmul.f32 %v1265, 0.7978846
          %v1298 = vmul.f32 %v1266, 0.7978846
          %v1299 = vmul.f32 %v1267, 0.7978846
          %v1300 = vmul.f32 %v1268, 0.7978846
          %v1301 = vmul.f32 %v1269, 0.7978846
          %v1302 = vmul.f32 %v1270, 0.7978846
          %v1303 = vmul.f32 %v1271, 0.7978846
          %v1304 = vmul.f32 %v1272, 0.7978846
          %v1305 = vmul.f32 %v1273, 0.7978846
          %v1306 = vmul.f32 %v1274, 0.7978846
          %v1307 = vmul.f32 %v1275, 0.7978846
          %v1308 = vmul.f32 %v1276, 0.7978846
          %v1309 = vtanh.pop %v1277
          %v1310 = vtanh.pop %v1278
          %v1311 = vtanh.pop %v1279
          %v1312 = vtanh.pop %v1280
          %v1313 = vtanh.pop %v1281
          %v1314 = vtanh.pop %v1282
          %v1315 = vtanh.pop %v1283
          %v1316 = vtanh.pop %v1284
          %v1317 = vtanh.pop %v1285
          %v1318 = vtanh.pop %v1286
          %v1319 = vtanh.pop %v1287
          %v1320 = vtanh.pop %v1288
          %v1321 = vtanh.pop %v1289
          %v1322 = vtanh.pop %v1290
          %v1323 = vtanh.pop %v1291
          %v1324 = vtanh.pop %v1292
          %v1325 = vtanh.pop %v1293
          %v1326 = vtanh.pop %v1294
          %v1327 = vtanh.pop %v1295
          %v1328 = vtanh.pop %v1296
          %v1329 = vtanh.pop %v1297
          %v1330 = vtanh.pop %v1298
          %v1331 = vtanh.pop %v1299
          %v1332 = vtanh.pop %v1300
          %v1333 = vtanh.pop %v1301
          %v1334 = vtanh.pop %v1302
          %v1335 = vtanh.pop %v1303
          %v1336 = vtanh.pop %v1304
          %v1337 = vtanh.pop %v1305
          %v1338 = vtanh.pop %v1306
          %v1339 = vtanh.pop %v1307
          %v1340 = vtanh.pop %v1308
          %v1341 = vadd.f32 %v1309, 1.0
          %v1342 = vadd.f32 %v1310, 1.0
          %v1343 = vadd.f32 %v1311, 1.0
          %v1344 = vadd.f32 %v1312, 1.0
          %v1345 = vadd.f32 %v1313, 1.0
          %v1346 = vadd.f32 %v1314, 1.0
          %v1347 = vadd.f32 %v1315, 1.0
          %v1348 = vadd.f32 %v1316, 1.0
          %v1349 = vadd.f32 %v1317, 1.0
          %v1350 = vadd.f32 %v1318, 1.0
          %v1351 = vadd.f32 %v1319, 1.0
          %v1352 = vadd.f32 %v1320, 1.0
          %v1353 = vadd.f32 %v1321, 1.0
          %v1354 = vadd.f32 %v1322, 1.0
          %v1355 = vadd.f32 %v1323, 1.0
          %v1356 = vadd.f32 %v1324, 1.0
          %v1357 = vadd.f32 %v1325, 1.0
          %v1358 = vadd.f32 %v1326, 1.0
          %v1359 = vadd.f32 %v1327, 1.0
          %v1360 = vadd.f32 %v1328, 1.0
          %v1361 = vadd.f32 %v1329, 1.0
          %v1362 = vadd.f32 %v1330, 1.0
          %v1363 = vadd.f32 %v1331, 1.0
          %v1364 = vadd.f32 %v1332, 1.0
          %v1365 = vadd.f32 %v1333, 1.0
          %v1366 = vadd.f32 %v1334, 1.0
          %v1367 = vadd.f32 %v1335, 1.0
          %v1368 = vadd.f32 %v1336, 1.0
          %v1369 = vadd.f32 %v1337, 1.0
          %v1370 = vadd.f32 %v1338, 1.0
          %v1371 = vadd.f32 %v1339, 1.0
          %v1372 = vadd.f32 %v1340, 1.0
          %v1373 = vmul.f32 %v1117, %v1341
          %v1374 = vmul.f32 %v1118, %v1342
          %v1375 = vmul.f32 %v1119, %v1343
          %v1376 = vmul.f32 %v1120, %v1344
          %v1377 = vmul.f32 %v1121, %v1345
          %v1378 = vmul.f32 %v1122, %v1346
          %v1379 = vmul.f32 %v1123, %v1347
          %v1380 = vmul.f32 %v1124, %v1348
          %v1381 = vmul.f32 %v1125, %v1349
          %v1382 = vmul.f32 %v1126, %v1350
          %v1383 = vmul.f32 %v1127, %v1351
          %v1384 = vmul.f32 %v1128, %v1352
          %v1385 = vmul.f32 %v1129, %v1353
          %v1386 = vmul.f32 %v1130, %v1354
          %v1387 = vmul.f32 %v1131, %v1355
          %v1388 = vmul.f32 %v1132, %v1356
          %v1389 = vmul.f32 %v1133, %v1357
          %v1390 = vmul.f32 %v1134, %v1358
          %v1391 = vmul.f32 %v1135, %v1359
          %v1392 = vmul.f32 %v1136, %v1360
          %v1393 = vmul.f32 %v1137, %v1361
          %v1394 = vmul.f32 %v1138, %v1362
          %v1395 = vmul.f32 %v1139, %v1363
          %v1396 = vmul.f32 %v1140, %v1364
          %v1397 = vmul.f32 %v1141, %v1365
          %v1398 = vmul.f32 %v1142, %v1366
          %v1399 = vmul.f32 %v1143, %v1367
          %v1400 = vmul.f32 %v1144, %v1368
          %v1401 = vmul.f32 %v1145, %v1369
          %v1402 = vmul.f32 %v1146, %v1370
          %v1403 = vmul.f32 %v1147, %v1371
          %v1404 = vmul.f32 %v1148, %v1372
          %v1405 = vpack.c.bf16 %v1375, %v1373
          %v1406 = vpack.c.bf16 %v1376, %v1374
          %v1407 = vpack.c.bf16 %v1379, %v1377
          %v1408 = vpack.c.bf16 %v1380, %v1378
          %v1409 = vpack.c.bf16 %v1383, %v1381
          %v1410 = vpack.c.bf16 %v1384, %v1382
          %v1411 = vpack.c.bf16 %v1387, %v1385
          %v1412 = vpack.c.bf16 %v1388, %v1386
          %v1413 = vpack.c.bf16 %v1391, %v1389
          %v1414 = vpack.c.bf16 %v1392, %v1390
          %v1415 = vpack.c.bf16 %v1395, %v1393
          %v1416 = vpack.c.bf16 %v1396, %v1394
          %v1417 = vpack.c.bf16 %v1399, %v1397
          %v1418 = vpack.c.bf16 %v1400, %v1398
          %v1419 = vpack.c.bf16 %v1403, %v1401
          %v1420 = vpack.c.bf16 %v1404, %v1402
          %s1421 = smul.u32 %s45, 16
          %s1422 = smul.addr %s1421, 8
          %s1423 = scalar_lea.vmem [#allocation2], %s1422
          %1424 = vst [vmem:[%s1423] sm:$0xff] %v1405
          %1425 = vst [vmem:[%s1423 + $0x8] sm:$0xff] %v1406
          %1426 = vst [vmem:[%s1423 + $0x10] sm:$0xff] %v1407
          %1427 = vst [vmem:[%s1423 + $0x18] sm:$0xff] %v1408
          %1428 = vst [vmem:[%s1423 + $0x20] sm:$0xff] %v1409
          %1429 = vst [vmem:[%s1423 + $0x28] sm:$0xff] %v1410
          %1430 = vst [vmem:[%s1423 + $0x30] sm:$0xff] %v1411
          %1431 = vst [vmem:[%s1423 + $0x38] sm:$0xff] %v1412
          %1432 = vst [vmem:[%s1423 + $0x40] sm:$0xff] %v1413
          %1433 = vst [vmem:[%s1423 + $0x48] sm:$0xff] %v1414
          %1434 = vst [vmem:[%s1423 + $0x50] sm:$0xff] %v1415
          %1435 = vst [vmem:[%s1423 + $0x58] sm:$0xff] %v1416
          %1436 = vst [vmem:[%s1423 + $0x60] sm:$0xff] %v1417
          %1437 = vst [vmem:[%s1423 + $0x68] sm:$0xff] %v1418
          %1438 = vst [vmem:[%s1423 + $0x70] sm:$0xff] %v1419
          %1439 = vst [vmem:[%s1423 + $0x78] sm:$0xff] %v1420
          %v1440 = vld [vmem:[%s590] sm:$0xff]
          %v1441 = vld [vmem:[%s590 + $0x8] sm:$0xff]
          %v1442 = vld [vmem:[%s590 + $0x10] sm:$0xff]
          %v1443 = vld [vmem:[%s590 + $0x18] sm:$0xff]
          %v1444 = vld [vmem:[%s590 + $0x20] sm:$0xff]
          %v1445 = vld [vmem:[%s590 + $0x28] sm:$0xff]
          %v1446 = vld [vmem:[%s590 + $0x30] sm:$0xff]
          %v1447 = vld [vmem:[%s590 + $0x38] sm:$0xff]
          %v1448 = vld [vmem:[%s590 + $0x40] sm:$0xff]
          %v1449 = vld [vmem:[%s590 + $0x48] sm:$0xff]
          %v1450 = vld [vmem:[%s590 + $0x50] sm:$0xff]
          %v1451 = vld [vmem:[%s590 + $0x58] sm:$0xff]
          %v1452 = vld [vmem:[%s590 + $0x60] sm:$0xff]
          %v1453 = vld [vmem:[%s590 + $0x68] sm:$0xff]
          %v1454 = vld [vmem:[%s590 + $0x70] sm:$0xff]
          %v1455 = vld [vmem:[%s590 + $0x78] sm:$0xff]
          %v1456 = vld [vmem:[%s590 + $0x80] sm:$0xff]
          %v1457 = vld [vmem:[%s590 + $0x88] sm:$0xff]
          %v1458 = vld [vmem:[%s590 + $0x90] sm:$0xff]
          %v1459 = vld [vmem:[%s590 + $0x98] sm:$0xff]
          %v1460 = vld [vmem:[%s590 + $0xa0] sm:$0xff]
          %v1461 = vld [vmem:[%s590 + $0xa8] sm:$0xff]
          %v1462 = vld [vmem:[%s590 + $0xb0] sm:$0xff]
          %v1463 = vld [vmem:[%s590 + $0xb8] sm:$0xff]
          %v1464 = vld [vmem:[%s590 + $0xc0] sm:$0xff]
          %v1465 = vld [vmem:[%s590 + $0xc8] sm:$0xff]
          %v1466 = vld [vmem:[%s590 + $0xd0] sm:$0xff]
          %v1467 = vld [vmem:[%s590 + $0xd8] sm:$0xff]
          %v1468 = vld [vmem:[%s590 + $0xe0] sm:$0xff]
          %v1469 = vld [vmem:[%s590 + $0xe8] sm:$0xff]
          %v1470 = vld [vmem:[%s590 + $0xf0] sm:$0xff]
          %v1471 = vld [vmem:[%s590 + $0xf8] sm:$0xff]
          %v1472 = vld [vmem:[%s599] sm:$0x3]
          %v1474 = vlaneseq
          %v1475 = vshrl.u32 %v1474, 7
          %v1476 = vsub.s32 0, %v1475
          %v1477 = vrot.slane %v1472, %v1476
          %v1478 = vlaneseq
          %v1479 = vshrl.u32 %v1478, 7
          %v1480 = vsub.s32 1, %v1479
          %v1481 = vrot.slane %v1472, %v1480
          %v1516 = vunpack.c.l.b16 %v1440
          %v1517 = vunpack.c.h.b16 %v1440
          %v1518 = vunpack.c.l.b16 %v1441
          %v1519 = vunpack.c.h.b16 %v1441
          %v1520 = vunpack.c.l.b16 %v1442
          %v1521 = vunpack.c.h.b16 %v1442
          %v1522 = vunpack.c.l.b16 %v1443
          %v1523 = vunpack.c.h.b16 %v1443
          %v1524 = vunpack.c.l.b16 %v1444
          %v1525 = vunpack.c.h.b16 %v1444
          %v1526 = vunpack.c.l.b16 %v1445
          %v1527 = vunpack.c.h.b16 %v1445
          %v1528 = vunpack.c.l.b16 %v1446
          %v1529 = vunpack.c.h.b16 %v1446
          %v1530 = vunpack.c.l.b16 %v1447
          %v1531 = vunpack.c.h.b16 %v1447
          %v1532 = vunpack.c.l.b16 %v1448
          %v1533 = vunpack.c.h.b16 %v1448
          %v1534 = vunpack.c.l.b16 %v1449
          %v1535 = vunpack.c.h.b16 %v1449
          %v1536 = vunpack.c.l.b16 %v1450
          %v1537 = vunpack.c.h.b16 %v1450
          %v1538 = vunpack.c.l.b16 %v1451
          %v1539 = vunpack.c.h.b16 %v1451
          %v1540 = vunpack.c.l.b16 %v1452
          %v1541 = vunpack.c.h.b16 %v1452
          %v1542 = vunpack.c.l.b16 %v1453
          %v1543 = vunpack.c.h.b16 %v1453
          %v1544 = vunpack.c.l.b16 %v1454
          %v1545 = vunpack.c.h.b16 %v1454
          %v1546 = vunpack.c.l.b16 %v1455
          %v1547 = vunpack.c.h.b16 %v1455
          %v1548 = vunpack.c.l.b16 %v1456
          %v1549 = vunpack.c.h.b16 %v1456
          %v1550 = vunpack.c.l.b16 %v1457
          %v1551 = vunpack.c.h.b16 %v1457
          %v1552 = vunpack.c.l.b16 %v1458
          %v1553 = vunpack.c.h.b16 %v1458
          %v1554 = vunpack.c.l.b16 %v1459
          %v1555 = vunpack.c.h.b16 %v1459
          %v1556 = vunpack.c.l.b16 %v1460
          %v1557 = vunpack.c.h.b16 %v1460
          %v1558 = vunpack.c.l.b16 %v1461
          %v1559 = vunpack.c.h.b16 %v1461
          %v1560 = vunpack.c.l.b16 %v1462
          %v1561 = vunpack.c.h.b16 %v1462
          %v1562 = vunpack.c.l.b16 %v1463
          %v1563 = vunpack.c.h.b16 %v1463
          %v1564 = vunpack.c.l.b16 %v1464
          %v1565 = vunpack.c.h.b16 %v1464
          %v1566 = vunpack.c.l.b16 %v1465
          %v1567 = vunpack.c.h.b16 %v1465
          %v1568 = vunpack.c.l.b16 %v1466
          %v1569 = vunpack.c.h.b16 %v1466
          %v1570 = vunpack.c.l.b16 %v1467
          %v1571 = vunpack.c.h.b16 %v1467
          %v1572 = vunpack.c.l.b16 %v1468
          %v1573 = vunpack.c.h.b16 %v1468
          %v1574 = vunpack.c.l.b16 %v1469
          %v1575 = vunpack.c.h.b16 %v1469
          %v1576 = vunpack.c.l.b16 %v1470
          %v1577 = vunpack.c.h.b16 %v1470
          %v1578 = vunpack.c.l.b16 %v1471
          %v1579 = vunpack.c.h.b16 %v1471
          %v1580 = vpack.c.b16 %v1518, %v1516
          %v1581 = vpack.c.b16 %v1519, %v1517
          %v1582 = vpack.c.b16 %v1522, %v1520
          %v1583 = vpack.c.b16 %v1523, %v1521
          %v1584 = vpack.c.b16 %v1526, %v1524
          %v1585 = vpack.c.b16 %v1527, %v1525
          %v1586 = vpack.c.b16 %v1530, %v1528
          %v1587 = vpack.c.b16 %v1531, %v1529
          %v1588 = vpack.c.b16 %v1534, %v1532
          %v1589 = vpack.c.b16 %v1535, %v1533
          %v1590 = vpack.c.b16 %v1538, %v1536
          %v1591 = vpack.c.b16 %v1539, %v1537
          %v1592 = vpack.c.b16 %v1542, %v1540
          %v1593 = vpack.c.b16 %v1543, %v1541
          %v1594 = vpack.c.b16 %v1546, %v1544
          %v1595 = vpack.c.b16 %v1547, %v1545
          %v1596 = vpack.c.b16 %v1550, %v1548
          %v1597 = vpack.c.b16 %v1551, %v1549
          %v1598 = vpack.c.b16 %v1554, %v1552
          %v1599 = vpack.c.b16 %v1555, %v1553
          %v1600 = vpack.c.b16 %v1558, %v1556
          %v1601 = vpack.c.b16 %v1559, %v1557
          %v1602 = vpack.c.b16 %v1562, %v1560
          %v1603 = vpack.c.b16 %v1563, %v1561
          %v1604 = vpack.c.b16 %v1566, %v1564
          %v1605 = vpack.c.b16 %v1567, %v1565
          %v1606 = vpack.c.b16 %v1570, %v1568
          %v1607 = vpack.c.b16 %v1571, %v1569
          %v1608 = vpack.c.b16 %v1574, %v1572
          %v1609 = vpack.c.b16 %v1575, %v1573
          %v1610 = vpack.c.b16 %v1578, %v1576
          %v1611 = vpack.c.b16 %v1579, %v1577
          %1644 = vmatprep.subr.bf16.mxu0 %v1581
          %1645 = vmatpush1.bf16.msra.mxu0 %v1580
          %1646 = vmatprep.subr.bf16.mxu0 %v1583
          %1647 = vmatpush1.bf16.msra.mxu0 %v1582
          %1648 = vmatprep.subr.bf16.mxu0 %v1585
          %1649 = vmatpush1.bf16.msra.mxu0 %v1584
          %1650 = vmatprep.subr.bf16.mxu0 %v1587
          %1651 = vmatpush1.bf16.msra.mxu0 %v1586
          %1652 = vmatprep.subr.bf16.mxu0 %v1589
          %1653 = vmatpush1.bf16.msra.mxu0 %v1588
          %1654 = vmatprep.subr.bf16.mxu0 %v1591
          %1655 = vmatpush1.bf16.msra.mxu0 %v1590
          %1656 = vmatprep.subr.bf16.mxu0 %v1593
          %1657 = vmatpush1.bf16.msra.mxu0 %v1592
          %1658 = vmatprep.subr.bf16.mxu0 %v1595
          %1659 = vmatpush1.bf16.msra.mxu0 %v1594
          %1660 = vmatprep.subr.bf16.mxu0 %v1597
          %1661 = vmatpush1.bf16.msra.mxu0 %v1596
          %1662 = vmatprep.subr.bf16.mxu0 %v1599
          %1663 = vmatpush1.bf16.msra.mxu0 %v1598
          %1664 = vmatprep.subr.bf16.mxu0 %v1601
          %1665 = vmatpush1.bf16.msra.mxu0 %v1600
          %1666 = vmatprep.subr.bf16.mxu0 %v1603
          %1667 = vmatpush1.bf16.msra.mxu0 %v1602
          %1668 = vmatprep.subr.bf16.mxu0 %v1605
          %1669 = vmatpush1.bf16.msra.mxu0 %v1604
          %1670 = vmatprep.subr.bf16.mxu0 %v1607
          %1671 = vmatpush1.bf16.msra.mxu0 %v1606
          %1672 = vmatprep.subr.bf16.mxu0 %v1609
          %1673 = vmatpush1.bf16.msra.mxu0 %v1608
          %1674 = vmatprep.subr.bf16.mxu0 %v1611
          %1675 = vmatpush1.bf16.msra.mxu0 %v1610
          %1676 = vmatprep.mubr.bf16.mxu0 %v813
          %1677 = vmatmul.mubr.bf16.gmra.mrb[0].mxu0 %v812
          %v1678 = vpop.f32.mrb[0].mxu0
          %v1679 = vadd.f32 %v1477, %v1678
          %v1680 = vpop.f32.mrb[0].mxu0
          %v1681 = vadd.f32 %v1481, %v1680
          %v1682 = vpop.f32.mrb[0].mxu0
          %v1683 = vadd.f32 %v1477, %v1682
          %v1684 = vpop.f32.mrb[0].mxu0
          %v1685 = vadd.f32 %v1481, %v1684
          %1686 = vmatprep.mubr.bf16.mxu0 %v815
          %1687 = vmatmul.mubr.bf16.gmra.mrb[0].mxu0 %v814
          %v1688 = vpop.f32.mrb[0].mxu0
          %v1689 = vadd.f32 %v1477, %v1688
          %v1690 = vpop.f32.mrb[0].mxu0
          %v1691 = vadd.f32 %v1481, %v1690
          %v1692 = vpop.f32.mrb[0].mxu0
          %v1693 = vadd.f32 %v1477, %v1692
          %v1694 = vpop.f32.mrb[0].mxu0
          %v1695 = vadd.f32 %v1481, %v1694
          %1696 = vmatprep.mubr.bf16.mxu0 %v817
          %1697 = vmatmul.mubr.bf16.gmra.mrb[0].mxu0 %v816
          %v1698 = vpop.f32.mrb[0].mxu0
          %v1699 = vadd.f32 %v1477, %v1698
          %v1700 = vpop.f32.mrb[0].mxu0
          %v1701 = vadd.f32 %v1481, %v1700
          %v1702 = vpop.f32.mrb[0].mxu0
          %v1703 = vadd.f32 %v1477, %v1702
          %v1704 = vpop.f32.mrb[0].mxu0
          %v1705 = vadd.f32 %v1481, %v1704
          %1706 = vmatprep.mubr.bf16.mxu0 %v819
          %1707 = vmatmul.mubr.bf16.gmra.mrb[0].mxu0 %v818
          %v1708 = vpop.f32.mrb[0].mxu0
          %v1709 = vadd.f32 %v1477, %v1708
          %v1710 = vpop.f32.mrb[0].mxu0
          %v1711 = vadd.f32 %v1481, %v1710
          %v1712 = vpop.f32.mrb[0].mxu0
          %v1713 = vadd.f32 %v1477, %v1712
          %v1714 = vpop.f32.mrb[0].mxu0
          %v1715 = vadd.f32 %v1481, %v1714
          %1716 = vmatprep.mubr.bf16.mxu0 %v821
          %1717 = vmatmul.mubr.bf16.gmra.mrb[0].mxu0 %v820
          %v1718 = vpop.f32.mrb[0].mxu0
          %v1719 = vadd.f32 %v1477, %v1718
          %v1720 = vpop.f32.mrb[0].mxu0
          %v1721 = vadd.f32 %v1481, %v1720
          %v1722 = vpop.f32.mrb[0].mxu0
          %v1723 = vadd.f32 %v1477, %v1722
          %v1724 = vpop.f32.mrb[0].mxu0
          %v1725 = vadd.f32 %v1481, %v1724
          %1726 = vmatprep.mubr.bf16.mxu0 %v823
          %1727 = vmatmul.mubr.bf16.gmra.mrb[0].mxu0 %v822
          %v1728 = vpop.f32.mrb[0].mxu0
          %v1729 = vadd.f32 %v1477, %v1728
          %v1730 = vpop.f32.mrb[0].mxu0
          %v1731 = vadd.f32 %v1481, %v1730
          %v1732 = vpop.f32.mrb[0].mxu0
          %v1733 = vadd.f32 %v1477, %v1732
          %v1734 = vpop.f32.mrb[0].mxu0
          %v1735 = vadd.f32 %v1481, %v1734
          %1736 = vmatprep.mubr.bf16.mxu0 %v825
          %1737 = vmatmul.mubr.bf16.gmra.mrb[0].mxu0 %v824
          %v1738 = vpop.f32.mrb[0].mxu0
          %v1739 = vadd.f32 %v1477, %v1738
          %v1740 = vpop.f32.mrb[0].mxu0
          %v1741 = vadd.f32 %v1481, %v1740
          %v1742 = vpop.f32.mrb[0].mxu0
          %v1743 = vadd.f32 %v1477, %v1742
          %v1744 = vpop.f32.mrb[0].mxu0
          %v1745 = vadd.f32 %v1481, %v1744
          %1746 = vmatprep.mubr.bf16.mxu0 %v827
          %1747 = vmatmul.mubr.bf16.gmra.mrb[0].mxu0 %v826
          %v1748 = vpop.f32.mrb[0].mxu0
          %v1749 = vadd.f32 %v1477, %v1748
          %v1750 = vpop.f32.mrb[0].mxu0
          %v1751 = vadd.f32 %v1481, %v1750
          %v1752 = vpop.f32.mrb[0].mxu0
          %v1753 = vadd.f32 %v1477, %v1752
          %v1754 = vpop.f32.mrb[0].mxu0
          %v1755 = vadd.f32 %v1481, %v1754
          %1756 = vdwg.mxu0
          %v1757 = vmul.f32 %v1679, 0.5
          %v1758 = vmul.f32 %v1681, 0.5
          %v1759 = vmul.f32 %v1683, 0.5
          %v1760 = vmul.f32 %v1685, 0.5
          %v1761 = vmul.f32 %v1689, 0.5
          %v1762 = vmul.f32 %v1691, 0.5
          %v1763 = vmul.f32 %v1693, 0.5
          %v1764 = vmul.f32 %v1695, 0.5
          %v1765 = vmul.f32 %v1699, 0.5
          %v1766 = vmul.f32 %v1701, 0.5
          %v1767 = vmul.f32 %v1703, 0.5
          %v1768 = vmul.f32 %v1705, 0.5
          %v1769 = vmul.f32 %v1709, 0.5
          %v1770 = vmul.f32 %v1711, 0.5
          %v1771 = vmul.f32 %v1713, 0.5
          %v1772 = vmul.f32 %v1715, 0.5
          %v1773 = vmul.f32 %v1719, 0.5
          %v1774 = vmul.f32 %v1721, 0.5
          %v1775 = vmul.f32 %v1723, 0.5
          %v1776 = vmul.f32 %v1725, 0.5
          %v1777 = vmul.f32 %v1729, 0.5
          %v1778 = vmul.f32 %v1731, 0.5
          %v1779 = vmul.f32 %v1733, 0.5
          %v1780 = vmul.f32 %v1735, 0.5
          %v1781 = vmul.f32 %v1739, 0.5
          %v1782 = vmul.f32 %v1741, 0.5
          %v1783 = vmul.f32 %v1743, 0.5
          %v1784 = vmul.f32 %v1745, 0.5
          %v1785 = vmul.f32 %v1749, 0.5
          %v1786 = vmul.f32 %v1751, 0.5
          %v1787 = vmul.f32 %v1753, 0.5
          %v1788 = vmul.f32 %v1755, 0.5
          %v1789 = vmul.f32 %v1679, 0.044715
          %v1790 = vmul.f32 %v1681, 0.044715
          %v1791 = vmul.f32 %v1683, 0.044715
          %v1792 = vmul.f32 %v1685, 0.044715
          %v1793 = vmul.f32 %v1689, 0.044715
          %v1794 = vmul.f32 %v1691, 0.044715
          %v1795 = vmul.f32 %v1693, 0.044715
          %v1796 = vmul.f32 %v1695, 0.044715
          %v1797 = vmul.f32 %v1699, 0.044715
          %v1798 = vmul.f32 %v1701, 0.044715
          %v1799 = vmul.f32 %v1703, 0.044715
          %v1800 = vmul.f32 %v1705, 0.044715
          %v1801 = vmul.f32 %v1709, 0.044715
          %v1802 = vmul.f32 %v1711, 0.044715
          %v1803 = vmul.f32 %v1713, 0.044715
          %v1804 = vmul.f32 %v1715, 0.044715
          %v1805 = vmul.f32 %v1719, 0.044715
          %v1806 = vmul.f32 %v1721, 0.044715
          %v1807 = vmul.f32 %v1723, 0.044715
          %v1808 = vmul.f32 %v1725, 0.044715
          %v1809 = vmul.f32 %v1729, 0.044715
          %v1810 = vmul.f32 %v1731, 0.044715
          %v1811 = vmul.f32 %v1733, 0.044715
          %v1812 = vmul.f32 %v1735, 0.044715
          %v1813 = vmul.f32 %v1739, 0.044715
          %v1814 = vmul.f32 %v1741, 0.044715
          %v1815 = vmul.f32 %v1743, 0.044715
          %v1816 = vmul.f32 %v1745, 0.044715
          %v1817 = vmul.f32 %v1749, 0.044715
          %v1818 = vmul.f32 %v1751, 0.044715
          %v1819 = vmul.f32 %v1753, 0.044715
          %v1820 = vmul.f32 %v1755, 0.044715
          %v1821 = vmul.f32 %v1789, %v1679
          %v1822 = vmul.f32 %v1790, %v1681
          %v1823 = vmul.f32 %v1791, %v1683
          %v1824 = vmul.f32 %v1792, %v1685
          %v1825 = vmul.f32 %v1793, %v1689
          %v1826 = vmul.f32 %v1794, %v1691
          %v1827 = vmul.f32 %v1795, %v1693
          %v1828 = vmul.f32 %v1796, %v1695
          %v1829 = vmul.f32 %v1797, %v1699
          %v1830 = vmul.f32 %v1798, %v1701
          %v1831 = vmul.f32 %v1799, %v1703
          %v1832 = vmul.f32 %v1800, %v1705
          %v1833 = vmul.f32 %v1801, %v1709
          %v1834 = vmul.f32 %v1802, %v1711
          %v1835 = vmul.f32 %v1803, %v1713
          %v1836 = vmul.f32 %v1804, %v1715
          %v1837 = vmul.f32 %v1805, %v1719
          %v1838 = vmul.f32 %v1806, %v1721
          %v1839 = vmul.f32 %v1807, %v1723
          %v1840 = vmul.f32 %v1808, %v1725
          %v1841 = vmul.f32 %v1809, %v1729
          %v1842 = vmul.f32 %v1810, %v1731
          %v1843 = vmul.f32 %v1811, %v1733
          %v1844 = vmul.f32 %v1812, %v1735
          %v1845 = vmul.f32 %v1813, %v1739
          %v1846 = vmul.f32 %v1814, %v1741
          %v1847 = vmul.f32 %v1815, %v1743
          %v1848 = vmul.f32 %v1816, %v1745
          %v1849 = vmul.f32 %v1817, %v1749
          %v1850 = vmul.f32 %v1818, %v1751
          %v1851 = vmul.f32 %v1819, %v1753
          %v1852 = vmul.f32 %v1820, %v1755
          %v1853 = vmul.f32 %v1821, %v1679
          %v1854 = vmul.f32 %v1822, %v1681
          %v1855 = vmul.f32 %v1823, %v1683
          %v1856 = vmul.f32 %v1824, %v1685
          %v1857 = vmul.f32 %v1825, %v1689
          %v1858 = vmul.f32 %v1826, %v1691
          %v1859 = vmul.f32 %v1827, %v1693
          %v1860 = vmul.f32 %v1828, %v1695
          %v1861 = vmul.f32 %v1829, %v1699
          %v1862 = vmul.f32 %v1830, %v1701
          %v1863 = vmul.f32 %v1831, %v1703
          %v1864 = vmul.f32 %v1832, %v1705
          %v1865 = vmul.f32 %v1833, %v1709
          %v1866 = vmul.f32 %v1834, %v1711
          %v1867 = vmul.f32 %v1835, %v1713
          %v1868 = vmul.f32 %v1836, %v1715
          %v1869 = vmul.f32 %v1837, %v1719
          %v1870 = vmul.f32 %v1838, %v1721
          %v1871 = vmul.f32 %v1839, %v1723
          %v1872 = vmul.f32 %v1840, %v1725
          %v1873 = vmul.f32 %v1841, %v1729
          %v1874 = vmul.f32 %v1842, %v1731
          %v1875 = vmul.f32 %v1843, %v1733
          %v1876 = vmul.f32 %v1844, %v1735
          %v1877 = vmul.f32 %v1845, %v1739
          %v1878 = vmul.f32 %v1846, %v1741
          %v1879 = vmul.f32 %v1847, %v1743
          %v1880 = vmul.f32 %v1848, %v1745
          %v1881 = vmul.f32 %v1849, %v1749
          %v1882 = vmul.f32 %v1850, %v1751
          %v1883 = vmul.f32 %v1851, %v1753
          %v1884 = vmul.f32 %v1852, %v1755
          %v1885 = vadd.f32 %v1679, %v1853
          %v1886 = vadd.f32 %v1681, %v1854
          %v1887 = vadd.f32 %v1683, %v1855
          %v1888 = vadd.f32 %v1685, %v1856
          %v1889 = vadd.f32 %v1689, %v1857
          %v1890 = vadd.f32 %v1691, %v1858
          %v1891 = vadd.f32 %v1693, %v1859
          %v1892 = vadd.f32 %v1695, %v1860
          %v1893 = vadd.f32 %v1699, %v1861
          %v1894 = vadd.f32 %v1701, %v1862
          %v1895 = vadd.f32 %v1703, %v1863
          %v1896 = vadd.f32 %v1705, %v1864
          %v1897 = vadd.f32 %v1709, %v1865
          %v1898 = vadd.f32 %v1711, %v1866
          %v1899 = vadd.f32 %v1713, %v1867
          %v1900 = vadd.f32 %v1715, %v1868
          %v1901 = vadd.f32 %v1719, %v1869
          %v1902 = vadd.f32 %v1721, %v1870
          %v1903 = vadd.f32 %v1723, %v1871
          %v1904 = vadd.f32 %v1725, %v1872
          %v1905 = vadd.f32 %v1729, %v1873
          %v1906 = vadd.f32 %v1731, %v1874
          %v1907 = vadd.f32 %v1733, %v1875
          %v1908 = vadd.f32 %v1735, %v1876
          %v1909 = vadd.f32 %v1739, %v1877
          %v1910 = vadd.f32 %v1741, %v1878
          %v1911 = vadd.f32 %v1743, %v1879
          %v1912 = vadd.f32 %v1745, %v1880
          %v1913 = vadd.f32 %v1749, %v1881
          %v1914 = vadd.f32 %v1751, %v1882
          %v1915 = vadd.f32 %v1753, %v1883
          %v1916 = vadd.f32 %v1755, %v1884
          %v1917 = vmul.f32 %v1885, 0.7978846
          %v1918 = vmul.f32 %v1886, 0.7978846
          %v1919 = vmul.f32 %v1887, 0.7978846
          %v1920 = vmul.f32 %v1888, 0.7978846
          %v1921 = vmul.f32 %v1889, 0.7978846
          %v1922 = vmul.f32 %v1890, 0.7978846
          %v1923 = vmul.f32 %v1891, 0.7978846
          %v1924 = vmul.f32 %v1892, 0.7978846
          %v1925 = vmul.f32 %v1893, 0.7978846
          %v1926 = vmul.f32 %v1894, 0.7978846
          %v1927 = vmul.f32 %v1895, 0.7978846
          %v1928 = vmul.f32 %v1896, 0.7978846
          %v1929 = vmul.f32 %v1897, 0.7978846
          %v1930 = vmul.f32 %v1898, 0.7978846
          %v1931 = vmul.f32 %v1899, 0.7978846
          %v1932 = vmul.f32 %v1900, 0.7978846
          %v1933 = vmul.f32 %v1901, 0.7978846
          %v1934 = vmul.f32 %v1902, 0.7978846
          %v1935 = vmul.f32 %v1903, 0.7978846
          %v1936 = vmul.f32 %v1904, 0.7978846
          %v1937 = vmul.f32 %v1905, 0.7978846
          %v1938 = vmul.f32 %v1906, 0.7978846
          %v1939 = vmul.f32 %v1907, 0.7978846
          %v1940 = vmul.f32 %v1908, 0.7978846
          %v1941 = vmul.f32 %v1909, 0.7978846
          %v1942 = vmul.f32 %v1910, 0.7978846
          %v1943 = vmul.f32 %v1911, 0.7978846
          %v1944 = vmul.f32 %v1912, 0.7978846
          %v1945 = vmul.f32 %v1913, 0.7978846
          %v1946 = vmul.f32 %v1914, 0.7978846
          %v1947 = vmul.f32 %v1915, 0.7978846
          %v1948 = vmul.f32 %v1916, 0.7978846
          %v1949 = vtanh.pop %v1917
          %v1950 = vtanh.pop %v1918
          %v1951 = vtanh.pop %v1919
          %v1952 = vtanh.pop %v1920
          %v1953 = vtanh.pop %v1921
          %v1954 = vtanh.pop %v1922
          %v1955 = vtanh.pop %v1923
          %v1956 = vtanh.pop %v1924
          %v1957 = vtanh.pop %v1925
          %v1958 = vtanh.pop %v1926
          %v1959 = vtanh.pop %v1927
          %v1960 = vtanh.pop %v1928
          %v1961 = vtanh.pop %v1929
          %v1962 = vtanh.pop %v1930
          %v1963 = vtanh.pop %v1931
          %v1964 = vtanh.pop %v1932
          %v1965 = vtanh.pop %v1933
          %v1966 = vtanh.pop %v1934
          %v1967 = vtanh.pop %v1935
          %v1968 = vtanh.pop %v1936
          %v1969 = vtanh.pop %v1937
          %v1970 = vtanh.pop %v1938
          %v1971 = vtanh.pop %v1939
          %v1972 = vtanh.pop %v1940
          %v1973 = vtanh.pop %v1941
          %v1974 = vtanh.pop %v1942
          %v1975 = vtanh.pop %v1943
          %v1976 = vtanh.pop %v1944
          %v1977 = vtanh.pop %v1945
          %v1978 = vtanh.pop %v1946
          %v1979 = vtanh.pop %v1947
          %v1980 = vtanh.pop %v1948
          %v1981 = vadd.f32 %v1949, 1.0
          %v1982 = vadd.f32 %v1950, 1.0
          %v1983 = vadd.f32 %v1951, 1.0
          %v1984 = vadd.f32 %v1952, 1.0
          %v1985 = vadd.f32 %v1953, 1.0
          %v1986 = vadd.f32 %v1954, 1.0
          %v1987 = vadd.f32 %v1955, 1.0
          %v1988 = vadd.f32 %v1956, 1.0
          %v1989 = vadd.f32 %v1957, 1.0
          %v1990 = vadd.f32 %v1958, 1.0
          %v1991 = vadd.f32 %v1959, 1.0
          %v1992 = vadd.f32 %v1960, 1.0
          %v1993 = vadd.f32 %v1961, 1.0
          %v1994 = vadd.f32 %v1962, 1.0
          %v1995 = vadd.f32 %v1963, 1.0
          %v1996 = vadd.f32 %v1964, 1.0
          %v1997 = vadd.f32 %v1965, 1.0
          %v1998 = vadd.f32 %v1966, 1.0
          %v1999 = vadd.f32 %v1967, 1.0
          %v2000 = vadd.f32 %v1968, 1.0
          %v2001 = vadd.f32 %v1969, 1.0
          %v2002 = vadd.f32 %v1970, 1.0
          %v2003 = vadd.f32 %v1971, 1.0
          %v2004 = vadd.f32 %v1972, 1.0
          %v2005 = vadd.f32 %v1973, 1.0
          %v2006 = vadd.f32 %v1974, 1.0
          %v2007 = vadd.f32 %v1975, 1.0
          %v2008 = vadd.f32 %v1976, 1.0
          %v2009 = vadd.f32 %v1977, 1.0
          %v2010 = vadd.f32 %v1978, 1.0
          %v2011 = vadd.f32 %v1979, 1.0
          %v2012 = vadd.f32 %v1980, 1.0
          %v2013 = vmul.f32 %v1757, %v1981
          %v2014 = vmul.f32 %v1758, %v1982
          %v2015 = vmul.f32 %v1759, %v1983
          %v2016 = vmul.f32 %v1760, %v1984
          %v2017 = vmul.f32 %v1761, %v1985
          %v2018 = vmul.f32 %v1762, %v1986
          %v2019 = vmul.f32 %v1763, %v1987
          %v2020 = vmul.f32 %v1764, %v1988
          %v2021 = vmul.f32 %v1765, %v1989
          %v2022 = vmul.f32 %v1766, %v1990
          %v2023 = vmul.f32 %v1767, %v1991
          %v2024 = vmul.f32 %v1768, %v1992
          %v2025 = vmul.f32 %v1769, %v1993
          %v2026 = vmul.f32 %v1770, %v1994
          %v2027 = vmul.f32 %v1771, %v1995
          %v2028 = vmul.f32 %v1772, %v1996
          %v2029 = vmul.f32 %v1773, %v1997
          %v2030 = vmul.f32 %v1774, %v1998
          %v2031 = vmul.f32 %v1775, %v1999
          %v2032 = vmul.f32 %v1776, %v2000
          %v2033 = vmul.f32 %v1777, %v2001
          %v2034 = vmul.f32 %v1778, %v2002
          %v2035 = vmul.f32 %v1779, %v2003
          %v2036 = vmul.f32 %v1780, %v2004
          %v2037 = vmul.f32 %v1781, %v2005
          %v2038 = vmul.f32 %v1782, %v2006
          %v2039 = vmul.f32 %v1783, %v2007
          %v2040 = vmul.f32 %v1784, %v2008
          %v2041 = vmul.f32 %v1785, %v2009
          %v2042 = vmul.f32 %v1786, %v2010
          %v2043 = vmul.f32 %v1787, %v2011
          %v2044 = vmul.f32 %v1788, %v2012
          %v2045 = vld [vmem:[%s608] sm:$0x3]
          %v2047 = vlaneseq
          %v2048 = vshrl.u32 %v2047, 7
          %v2049 = vsub.s32 0, %v2048
          %v2050 = vrot.slane %v2045, %v2049
          %v2051 = vlaneseq
          %v2052 = vshrl.u32 %v2051, 7
          %v2053 = vsub.s32 1, %v2052
          %v2054 = vrot.slane %v2045, %v2053
          %v2057 = vmul.f32 %v2013, %v2050
          %v2058 = vmul.f32 %v2014, %v2054
          %v2059 = vmul.f32 %v2015, %v2050
          %v2060 = vmul.f32 %v2016, %v2054
          %v2061 = vmul.f32 %v2017, %v2050
          %v2062 = vmul.f32 %v2018, %v2054
          %v2063 = vmul.f32 %v2019, %v2050
          %v2064 = vmul.f32 %v2020, %v2054
          %v2065 = vmul.f32 %v2021, %v2050
          %v2066 = vmul.f32 %v2022, %v2054
          %v2067 = vmul.f32 %v2023, %v2050
          %v2068 = vmul.f32 %v2024, %v2054
          %v2069 = vmul.f32 %v2025, %v2050
          %v2070 = vmul.f32 %v2026, %v2054
          %v2071 = vmul.f32 %v2027, %v2050
          %v2072 = vmul.f32 %v2028, %v2054
          %v2073 = vmul.f32 %v2029, %v2050
          %v2074 = vmul.f32 %v2030, %v2054
          %v2075 = vmul.f32 %v2031, %v2050
          %v2076 = vmul.f32 %v2032, %v2054
          %v2077 = vmul.f32 %v2033, %v2050
          %v2078 = vmul.f32 %v2034, %v2054
          %v2079 = vmul.f32 %v2035, %v2050
          %v2080 = vmul.f32 %v2036, %v2054
          %v2081 = vmul.f32 %v2037, %v2050
          %v2082 = vmul.f32 %v2038, %v2054
          %v2083 = vmul.f32 %v2039, %v2050
          %v2084 = vmul.f32 %v2040, %v2054
          %v2085 = vmul.f32 %v2041, %v2050
          %v2086 = vmul.f32 %v2042, %v2054
          %v2087 = vmul.f32 %v2043, %v2050
          %v2088 = vmul.f32 %v2044, %v2054
          %v2089 = vadd.f32 %v2057, %v2058
          %2090 = vadd.xlane.f32.xlu0 %v2089
          %v2091 = vpop.xlane.xlu0 %2090
          %v2092 = vadd.f32 %v2059, %v2060
          %2093 = vadd.xlane.f32.xlu0 %v2092
          %v2094 = vpop.xlane.xlu0 %2093
          %v2095 = vadd.f32 %v2061, %v2062
          %2096 = vadd.xlane.f32.xlu0 %v2095
          %v2097 = vpop.xlane.xlu0 %2096
          %v2098 = vadd.f32 %v2063, %v2064
          %2099 = vadd.xlane.f32.xlu0 %v2098
          %v2100 = vpop.xlane.xlu0 %2099
          %v2101 = vadd.f32 %v2065, %v2066
          %2102 = vadd.xlane.f32.xlu0 %v2101
          %v2103 = vpop.xlane.xlu0 %2102
          %v2104 = vadd.f32 %v2067, %v2068
          %2105 = vadd.xlane.f32.xlu0 %v2104
          %v2106 = vpop.xlane.xlu0 %2105
          %v2107 = vadd.f32 %v2069, %v2070
          %2108 = vadd.xlane.f32.xlu0 %v2107
          %v2109 = vpop.xlane.xlu0 %2108
          %v2110 = vadd.f32 %v2071, %v2072
          %2111 = vadd.xlane.f32.xlu0 %v2110
          %v2112 = vpop.xlane.xlu0 %2111
          %v2113 = vadd.f32 %v2073, %v2074
          %2114 = vadd.xlane.f32.xlu0 %v2113
          %v2115 = vpop.xlane.xlu0 %2114
          %v2116 = vadd.f32 %v2075, %v2076
          %2117 = vadd.xlane.f32.xlu0 %v2116
          %v2118 = vpop.xlane.xlu0 %2117
          %v2119 = vadd.f32 %v2077, %v2078
          %2120 = vadd.xlane.f32.xlu0 %v2119
          %v2121 = vpop.xlane.xlu0 %2120
          %v2122 = vadd.f32 %v2079, %v2080
          %2123 = vadd.xlane.f32.xlu0 %v2122
          %v2124 = vpop.xlane.xlu0 %2123
          %v2125 = vadd.f32 %v2081, %v2082
          %2126 = vadd.xlane.f32.xlu0 %v2125
          %v2127 = vpop.xlane.xlu0 %2126
          %v2128 = vadd.f32 %v2083, %v2084
          %2129 = vadd.xlane.f32.xlu0 %v2128
          %v2130 = vpop.xlane.xlu0 %2129
          %v2131 = vadd.f32 %v2085, %v2086
          %2132 = vadd.xlane.f32.xlu0 %v2131
          %v2133 = vpop.xlane.xlu0 %2132
          %v2134 = vadd.f32 %v2087, %v2088
          %2135 = vadd.xlane.f32.xlu0 %v2134
          %v2136 = vpop.xlane.xlu0 %2135
          %p2137 = scmp.eq.s32.totalorder %s45, 0
          %v2138 = vld [vmem:[#allocation4] sm:$0xff]
          %v2139 = vld [vmem:[#allocation4 + $0x8] sm:$0xff]
          %v2140 = vld [vmem:[#allocation4 + $0x10] sm:$0xff]
          %v2141 = vld [vmem:[#allocation4 + $0x18] sm:$0xff]
          %v2142 = vld [vmem:[#allocation4 + $0x20] sm:$0xff]
          %v2143 = vld [vmem:[#allocation4 + $0x28] sm:$0xff]
          %v2144 = vld [vmem:[#allocation4 + $0x30] sm:$0xff]
          %v2145 = vld [vmem:[#allocation4 + $0x38] sm:$0xff]
          %v2146 = vld [vmem:[#allocation4 + $0x40] sm:$0xff]
          %v2147 = vld [vmem:[#allocation4 + $0x48] sm:$0xff]
          %v2148 = vld [vmem:[#allocation4 + $0x50] sm:$0xff]
          %v2149 = vld [vmem:[#allocation4 + $0x58] sm:$0xff]
          %v2150 = vld [vmem:[#allocation4 + $0x60] sm:$0xff]
          %v2151 = vld [vmem:[#allocation4 + $0x68] sm:$0xff]
          %v2152 = vld [vmem:[#allocation4 + $0x70] sm:$0xff]
          %v2153 = vld [vmem:[#allocation4 + $0x78] sm:$0xff]
          %s2154 = scalar_select %p2137, 1, 0
          %v2155 = vstv %s2154
          %vm2156 = vcmp.eq.s32.totalorder %v2155, 1
          %v2157 = vsel %vm2156, 0.0, %v2138
          %v2158 = vsel %vm2156, 0.0, %v2139
          %v2159 = vsel %vm2156, 0.0, %v2140
          %v2160 = vsel %vm2156, 0.0, %v2141
          %v2161 = vsel %vm2156, 0.0, %v2142
          %v2162 = vsel %vm2156, 0.0, %v2143
          %v2163 = vsel %vm2156, 0.0, %v2144
          %v2164 = vsel %vm2156, 0.0, %v2145
          %v2165 = vsel %vm2156, 0.0, %v2146
          %v2166 = vsel %vm2156, 0.0, %v2147
          %v2167 = vsel %vm2156, 0.0, %v2148
          %v2168 = vsel %vm2156, 0.0, %v2149
          %v2169 = vsel %vm2156, 0.0, %v2150
          %v2170 = vsel %vm2156, 0.0, %v2151
          %v2171 = vsel %vm2156, 0.0, %v2152
          %v2172 = vsel %vm2156, 0.0, %v2153
          %v2173 = vadd.f32 %v2157, %v2091
          %v2174 = vadd.f32 %v2158, %v2094
          %v2175 = vadd.f32 %v2159, %v2097
          %v2176 = vadd.f32 %v2160, %v2100
          %v2177 = vadd.f32 %v2161, %v2103
          %v2178 = vadd.f32 %v2162, %v2106
          %v2179 = vadd.f32 %v2163, %v2109
          %v2180 = vadd.f32 %v2164, %v2112
          %v2181 = vadd.f32 %v2165, %v2115
          %v2182 = vadd.f32 %v2166, %v2118
          %v2183 = vadd.f32 %v2167, %v2121
          %v2184 = vadd.f32 %v2168, %v2124
          %v2185 = vadd.f32 %v2169, %v2127
          %v2186 = vadd.f32 %v2170, %v2130
          %v2187 = vadd.f32 %v2171, %v2133
          %v2188 = vadd.f32 %v2172, %v2136
          %vm2189 = vcmask 7168
          %2190 = vst.msk [vmem:[#allocation4] sm:$0xff] %vm2189, %v2173
          %2191 = vst.msk [vmem:[#allocation4 + $0x8] sm:$0xff] %vm2189, %v2174
          %2192 = vst.msk [vmem:[#allocation4 + $0x10] sm:$0xff] %vm2189, %v2175
          %2193 = vst.msk [vmem:[#allocation4 + $0x18] sm:$0xff] %vm2189, %v2176
          %2194 = vst.msk [vmem:[#allocation4 + $0x20] sm:$0xff] %vm2189, %v2177
          %2195 = vst.msk [vmem:[#allocation4 + $0x28] sm:$0xff] %vm2189, %v2178
          %2196 = vst.msk [vmem:[#allocation4 + $0x30] sm:$0xff] %vm2189, %v2179
          %2197 = vst.msk [vmem:[#allocation4 + $0x38] sm:$0xff] %vm2189, %v2180
          %2198 = vst.msk [vmem:[#allocation4 + $0x40] sm:$0xff] %vm2189, %v2181
          %2199 = vst.msk [vmem:[#allocation4 + $0x48] sm:$0xff] %vm2189, %v2182
          %2200 = vst.msk [vmem:[#allocation4 + $0x50] sm:$0xff] %vm2189, %v2183
          %2201 = vst.msk [vmem:[#allocation4 + $0x58] sm:$0xff] %vm2189, %v2184
          %2202 = vst.msk [vmem:[#allocation4 + $0x60] sm:$0xff] %vm2189, %v2185
          %2203 = vst.msk [vmem:[#allocation4 + $0x68] sm:$0xff] %vm2189, %v2186
          %2204 = vst.msk [vmem:[#allocation4 + $0x70] sm:$0xff] %vm2189, %v2187
          %2205 = vst.msk [vmem:[#allocation4 + $0x78] sm:$0xff] %vm2189, %v2188
        $region88: #{tpu_custom_call.1} parent=51 // pred_fallthru
          _
        %p2206 = scmp.eq.s32.totalorder %s45, 0
        // Predicated region
        $region89: #{tpu_custom_call.1} parent=51 // pred_check
          %p2207 = pneg %p2206
        $region90: #{tpu_custom_call.1} parent=51 // pred_check_branch
          %2209 = sbr.rel (%p2207) target = $region92
        $region91: #{tpu_custom_call.1} parent=51 // pred_region
          %2210 = vst [vmem:[#allocation3] sm:$0xff] 0.0
          %2211 = vst [vmem:[#allocation3 + $0x8] sm:$0xff] 0.0
          %2212 = vst [vmem:[#allocation3 + $0x10] sm:$0xff] 0.0
          %2213 = vst [vmem:[#allocation3 + $0x18] sm:$0xff] 0.0
          %2214 = vst [vmem:[#allocation3 + $0x20] sm:$0xff] 0.0
          %2215 = vst [vmem:[#allocation3 + $0x28] sm:$0xff] 0.0
          %2216 = vst [vmem:[#allocation3 + $0x30] sm:$0xff] 0.0
          %2217 = vst [vmem:[#allocation3 + $0x38] sm:$0xff] 0.0
          %2218 = vst [vmem:[#allocation3 + $0x40] sm:$0xff] 0.0
          %2219 = vst [vmem:[#allocation3 + $0x48] sm:$0xff] 0.0
          %2220 = vst [vmem:[#allocation3 + $0x50] sm:$0xff] 0.0
          %2221 = vst [vmem:[#allocation3 + $0x58] sm:$0xff] 0.0
          %2222 = vst [vmem:[#allocation3 + $0x60] sm:$0xff] 0.0
          %2223 = vst [vmem:[#allocation3 + $0x68] sm:$0xff] 0.0
          %2224 = vst [vmem:[#allocation3 + $0x70] sm:$0xff] 0.0
          %2225 = vst [vmem:[#allocation3 + $0x78] sm:$0xff] 0.0
          %2226 = vst [vmem:[#allocation3 + $0x80] sm:$0xff] 0.0
          %2227 = vst [vmem:[#allocation3 + $0x88] sm:$0xff] 0.0
          %2228 = vst [vmem:[#allocation3 + $0x90] sm:$0xff] 0.0
          %2229 = vst [vmem:[#allocation3 + $0x98] sm:$0xff] 0.0
          %2230 = vst [vmem:[#allocation3 + $0xa0] sm:$0xff] 0.0
          %2231 = vst [vmem:[#allocation3 + $0xa8] sm:$0xff] 0.0
          %2232 = vst [vmem:[#allocation3 + $0xb0] sm:$0xff] 0.0
          %2233 = vst [vmem:[#allocation3 + $0xb8] sm:$0xff] 0.0
          %2234 = vst [vmem:[#allocation3 + $0xc0] sm:$0xff] 0.0
          %2235 = vst [vmem:[#allocation3 + $0xc8] sm:$0xff] 0.0
          %2236 = vst [vmem:[#allocation3 + $0xd0] sm:$0xff] 0.0
          %2237 = vst [vmem:[#allocation3 + $0xd8] sm:$0xff] 0.0
          %2238 = vst [vmem:[#allocation3 + $0xe0] sm:$0xff] 0.0
          %2239 = vst [vmem:[#allocation3 + $0xe8] sm:$0xff] 0.0
          %2240 = vst [vmem:[#allocation3 + $0xf0] sm:$0xff] 0.0
          %2241 = vst [vmem:[#allocation3 + $0xf8] sm:$0xff] 0.0
        $region92: #{tpu_custom_call.1} parent=51 // pred_fallthru
          _
        %v2242 = vld [vmem:[#allocation3] sm:$0xff]
        %v2243 = vld [vmem:[#allocation3 + $0x8] sm:$0xff]
        %v2244 = vld [vmem:[#allocation3 + $0x10] sm:$0xff]
        %v2245 = vld [vmem:[#allocation3 + $0x18] sm:$0xff]
        %v2246 = vld [vmem:[#allocation3 + $0x20] sm:$0xff]
        %v2247 = vld [vmem:[#allocation3 + $0x28] sm:$0xff]
        %v2248 = vld [vmem:[#allocation3 + $0x30] sm:$0xff]
        %v2249 = vld [vmem:[#allocation3 + $0x38] sm:$0xff]
        %v2250 = vld [vmem:[#allocation3 + $0x40] sm:$0xff]
        %v2251 = vld [vmem:[#allocation3 + $0x48] sm:$0xff]
        %v2252 = vld [vmem:[#allocation3 + $0x50] sm:$0xff]
        %v2253 = vld [vmem:[#allocation3 + $0x58] sm:$0xff]
        %v2254 = vld [vmem:[#allocation3 + $0x60] sm:$0xff]
        %v2255 = vld [vmem:[#allocation3 + $0x68] sm:$0xff]
        %v2256 = vld [vmem:[#allocation3 + $0x70] sm:$0xff]
        %v2257 = vld [vmem:[#allocation3 + $0x78] sm:$0xff]
        %v2258 = vld [vmem:[#allocation3 + $0x80] sm:$0xff]
        %v2259 = vld [vmem:[#allocation3 + $0x88] sm:$0xff]
        %v2260 = vld [vmem:[#allocation3 + $0x90] sm:$0xff]
        %v2261 = vld [vmem:[#allocation3 + $0x98] sm:$0xff]
        %v2262 = vld [vmem:[#allocation3 + $0xa0] sm:$0xff]
        %v2263 = vld [vmem:[#allocation3 + $0xa8] sm:$0xff]
        %v2264 = vld [vmem:[#allocation3 + $0xb0] sm:$0xff]
        %v2265 = vld [vmem:[#allocation3 + $0xb8] sm:$0xff]
        %v2266 = vld [vmem:[#allocation3 + $0xc0] sm:$0xff]
        %v2267 = vld [vmem:[#allocation3 + $0xc8] sm:$0xff]
        %v2268 = vld [vmem:[#allocation3 + $0xd0] sm:$0xff]
        %v2269 = vld [vmem:[#allocation3 + $0xd8] sm:$0xff]
        %v2270 = vld [vmem:[#allocation3 + $0xe0] sm:$0xff]
        %v2271 = vld [vmem:[#allocation3 + $0xe8] sm:$0xff]
        %v2272 = vld [vmem:[#allocation3 + $0xf0] sm:$0xff]
        %v2273 = vld [vmem:[#allocation3 + $0xf8] sm:$0xff]
        %s2274 = smul.u32 %s45, 16
        %s2275 = smul.addr %s2274, 8
        %s2276 = scalar_lea.vmem [#allocation2], %s2275
        %v2277 = vld [vmem:[%s2276] sm:$0xff]
        %v2278 = vld [vmem:[%s2276 + $0x8] sm:$0xff]
        %v2279 = vld [vmem:[%s2276 + $0x10] sm:$0xff]
        %v2280 = vld [vmem:[%s2276 + $0x18] sm:$0xff]
        %v2281 = vld [vmem:[%s2276 + $0x20] sm:$0xff]
        %v2282 = vld [vmem:[%s2276 + $0x28] sm:$0xff]
        %v2283 = vld [vmem:[%s2276 + $0x30] sm:$0xff]
        %v2284 = vld [vmem:[%s2276 + $0x38] sm:$0xff]
        %v2285 = vld [vmem:[%s2276 + $0x40] sm:$0xff]
        %v2286 = vld [vmem:[%s2276 + $0x48] sm:$0xff]
        %v2287 = vld [vmem:[%s2276 + $0x50] sm:$0xff]
        %v2288 = vld [vmem:[%s2276 + $0x58] sm:$0xff]
        %v2289 = vld [vmem:[%s2276 + $0x60] sm:$0xff]
        %v2290 = vld [vmem:[%s2276 + $0x68] sm:$0xff]
        %v2291 = vld [vmem:[%s2276 + $0x70] sm:$0xff]
        %v2292 = vld [vmem:[%s2276 + $0x78] sm:$0xff]
        %v2293 = vld [vmem:[%s572] sm:$0xff]
        %v2294 = vld [vmem:[%s572 + $0x8] sm:$0xff]
        %v2295 = vld [vmem:[%s572 + $0x10] sm:$0xff]
        %v2296 = vld [vmem:[%s572 + $0x18] sm:$0xff]
        %v2297 = vld [vmem:[%s572 + $0x20] sm:$0xff]
        %v2298 = vld [vmem:[%s572 + $0x28] sm:$0xff]
        %v2299 = vld [vmem:[%s572 + $0x30] sm:$0xff]
        %v2300 = vld [vmem:[%s572 + $0x38] sm:$0xff]
        %v2301 = vld [vmem:[%s572 + $0x40] sm:$0xff]
        %v2302 = vld [vmem:[%s572 + $0x48] sm:$0xff]
        %v2303 = vld [vmem:[%s572 + $0x50] sm:$0xff]
        %v2304 = vld [vmem:[%s572 + $0x58] sm:$0xff]
        %v2305 = vld [vmem:[%s572 + $0x60] sm:$0xff]
        %v2306 = vld [vmem:[%s572 + $0x68] sm:$0xff]
        %v2307 = vld [vmem:[%s572 + $0x70] sm:$0xff]
        %v2308 = vld [vmem:[%s572 + $0x78] sm:$0xff]
        %v2309 = vld [vmem:[%s572 + $0x80] sm:$0xff]
        %v2310 = vld [vmem:[%s572 + $0x88] sm:$0xff]
        %v2311 = vld [vmem:[%s572 + $0x90] sm:$0xff]
        %v2312 = vld [vmem:[%s572 + $0x98] sm:$0xff]
        %v2313 = vld [vmem:[%s572 + $0xa0] sm:$0xff]
        %v2314 = vld [vmem:[%s572 + $0xa8] sm:$0xff]
        %v2315 = vld [vmem:[%s572 + $0xb0] sm:$0xff]
        %v2316 = vld [vmem:[%s572 + $0xb8] sm:$0xff]
        %v2317 = vld [vmem:[%s572 + $0xc0] sm:$0xff]
        %v2318 = vld [vmem:[%s572 + $0xc8] sm:$0xff]
        %v2319 = vld [vmem:[%s572 + $0xd0] sm:$0xff]
        %v2320 = vld [vmem:[%s572 + $0xd8] sm:$0xff]
        %v2321 = vld [vmem:[%s572 + $0xe0] sm:$0xff]
        %v2322 = vld [vmem:[%s572 + $0xe8] sm:$0xff]
        %v2323 = vld [vmem:[%s572 + $0xf0] sm:$0xff]
        %v2324 = vld [vmem:[%s572 + $0xf8] sm:$0xff]
        %v2357 = vunpack.c.l.b16 %v2293
        %v2358 = vunpack.c.h.b16 %v2293
        %v2359 = vunpack.c.l.b16 %v2294
        %v2360 = vunpack.c.h.b16 %v2294
        %v2361 = vunpack.c.l.b16 %v2295
        %v2362 = vunpack.c.h.b16 %v2295
        %v2363 = vunpack.c.l.b16 %v2296
        %v2364 = vunpack.c.h.b16 %v2296
        %v2365 = vunpack.c.l.b16 %v2297
        %v2366 = vunpack.c.h.b16 %v2297
        %v2367 = vunpack.c.l.b16 %v2298
        %v2368 = vunpack.c.h.b16 %v2298
        %v2369 = vunpack.c.l.b16 %v2299
        %v2370 = vunpack.c.h.b16 %v2299
        %v2371 = vunpack.c.l.b16 %v2300
        %v2372 = vunpack.c.h.b16 %v2300
        %v2373 = vunpack.c.l.b16 %v2301
        %v2374 = vunpack.c.h.b16 %v2301
        %v2375 = vunpack.c.l.b16 %v2302
        %v2376 = vunpack.c.h.b16 %v2302
        %v2377 = vunpack.c.l.b16 %v2303
        %v2378 = vunpack.c.h.b16 %v2303
        %v2379 = vunpack.c.l.b16 %v2304
        %v2380 = vunpack.c.h.b16 %v2304
        %v2381 = vunpack.c.l.b16 %v2305
        %v2382 = vunpack.c.h.b16 %v2305
        %v2383 = vunpack.c.l.b16 %v2306
        %v2384 = vunpack.c.h.b16 %v2306
        %v2385 = vunpack.c.l.b16 %v2307
        %v2386 = vunpack.c.h.b16 %v2307
        %v2387 = vunpack.c.l.b16 %v2308
        %v2388 = vunpack.c.h.b16 %v2308
        %v2389 = vunpack.c.l.b16 %v2309
        %v2390 = vunpack.c.h.b16 %v2309
        %v2391 = vunpack.c.l.b16 %v2310
        %v2392 = vunpack.c.h.b16 %v2310
        %v2393 = vunpack.c.l.b16 %v2311
        %v2394 = vunpack.c.h.b16 %v2311
        %v2395 = vunpack.c.l.b16 %v2312
        %v2396 = vunpack.c.h.b16 %v2312
        %v2397 = vunpack.c.l.b16 %v2313
        %v2398 = vunpack.c.h.b16 %v2313
        %v2399 = vunpack.c.l.b16 %v2314
        %v2400 = vunpack.c.h.b16 %v2314
        %v2401 = vunpack.c.l.b16 %v2315
        %v2402 = vunpack.c.h.b16 %v2315
        %v2403 = vunpack.c.l.b16 %v2316
        %v2404 = vunpack.c.h.b16 %v2316
        %v2405 = vunpack.c.l.b16 %v2317
        %v2406 = vunpack.c.h.b16 %v2317
        %v2407 = vunpack.c.l.b16 %v2318
        %v2408 = vunpack.c.h.b16 %v2318
        %v2409 = vunpack.c.l.b16 %v2319
        %v2410 = vunpack.c.h.b16 %v2319
        %v2411 = vunpack.c.l.b16 %v2320
        %v2412 = vunpack.c.h.b16 %v2320
        %v2413 = vunpack.c.l.b16 %v2321
        %v2414 = vunpack.c.h.b16 %v2321
        %v2415 = vunpack.c.l.b16 %v2322
        %v2416 = vunpack.c.h.b16 %v2322
        %v2417 = vunpack.c.l.b16 %v2323
        %v2418 = vunpack.c.h.b16 %v2323
        %v2419 = vunpack.c.l.b16 %v2324
        %v2420 = vunpack.c.h.b16 %v2324
        %v2421 = vpack.c.b16 %v2359, %v2357
        %v2422 = vpack.c.b16 %v2360, %v2358
        %v2423 = vpack.c.b16 %v2363, %v2361
        %v2424 = vpack.c.b16 %v2364, %v2362
        %v2425 = vpack.c.b16 %v2367, %v2365
        %v2426 = vpack.c.b16 %v2368, %v2366
        %v2427 = vpack.c.b16 %v2371, %v2369
        %v2428 = vpack.c.b16 %v2372, %v2370
        %v2429 = vpack.c.b16 %v2375, %v2373
        %v2430 = vpack.c.b16 %v2376, %v2374
        %v2431 = vpack.c.b16 %v2379, %v2377
        %v2432 = vpack.c.b16 %v2380, %v2378
        %v2433 = vpack.c.b16 %v2383, %v2381
        %v2434 = vpack.c.b16 %v2384, %v2382
        %v2435 = vpack.c.b16 %v2387, %v2385
        %v2436 = vpack.c.b16 %v2388, %v2386
        %v2437 = vpack.c.b16 %v2391, %v2389
        %v2438 = vpack.c.b16 %v2392, %v2390
        %v2439 = vpack.c.b16 %v2395, %v2393
        %v2440 = vpack.c.b16 %v2396, %v2394
        %v2441 = vpack.c.b16 %v2399, %v2397
        %v2442 = vpack.c.b16 %v2400, %v2398
        %v2443 = vpack.c.b16 %v2403, %v2401
        %v2444 = vpack.c.b16 %v2404, %v2402
        %v2445 = vpack.c.b16 %v2407, %v2405
        %v2446 = vpack.c.b16 %v2408, %v2406
        %v2447 = vpack.c.b16 %v2411, %v2409
        %v2448 = vpack.c.b16 %v2412, %v2410
        %v2449 = vpack.c.b16 %v2415, %v2413
        %v2450 = vpack.c.b16 %v2416, %v2414
        %v2451 = vpack.c.b16 %v2419, %v2417
        %v2452 = vpack.c.b16 %v2420, %v2418
        %2485 = vmatprep.subr.bf16.mxu0 %v2422
        %2486 = vmatpush1.bf16.msra.mxu0 %v2421
        %2487 = vmatprep.subr.bf16.mxu0 %v2424
        %2488 = vmatpush1.bf16.msra.mxu0 %v2423
        %2489 = vmatprep.subr.bf16.mxu0 %v2426
        %2490 = vmatpush1.bf16.msra.mxu0 %v2425
        %2491 = vmatprep.subr.bf16.mxu0 %v2428
        %2492 = vmatpush1.bf16.msra.mxu0 %v2427
        %2493 = vmatprep.subr.bf16.mxu0 %v2430
        %2494 = vmatpush1.bf16.msra.mxu0 %v2429
        %2495 = vmatprep.subr.bf16.mxu0 %v2432
        %2496 = vmatpush1.bf16.msra.mxu0 %v2431
        %2497 = vmatprep.subr.bf16.mxu0 %v2434
        %2498 = vmatpush1.bf16.msra.mxu0 %v2433
        %2499 = vmatprep.subr.bf16.mxu0 %v2436
        %2500 = vmatpush1.bf16.msra.mxu0 %v2435
        %2501 = vmatprep.subr.bf16.mxu0 %v2438
        %2502 = vmatpush1.bf16.msra.mxu0 %v2437
        %2503 = vmatprep.subr.bf16.mxu0 %v2440
        %2504 = vmatpush1.bf16.msra.mxu0 %v2439
        %2505 = vmatprep.subr.bf16.mxu0 %v2442
        %2506 = vmatpush1.bf16.msra.mxu0 %v2441
        %2507 = vmatprep.subr.bf16.mxu0 %v2444
        %2508 = vmatpush1.bf16.msra.mxu0 %v2443
        %2509 = vmatprep.subr.bf16.mxu0 %v2446
        %2510 = vmatpush1.bf16.msra.mxu0 %v2445
        %2511 = vmatprep.subr.bf16.mxu0 %v2448
        %2512 = vmatpush1.bf16.msra.mxu0 %v2447
        %2513 = vmatprep.subr.bf16.mxu0 %v2450
        %2514 = vmatpush1.bf16.msra.mxu0 %v2449
        %2515 = vmatprep.subr.bf16.mxu0 %v2452
        %2516 = vmatpush1.bf16.msra.mxu0 %v2451
        %2517 = vmatprep.mubr.bf16.mxu0 %v2278
        %2518 = vmatmul.mubr.bf16.gmra.mrb[0].mxu0 %v2277
        %v2519 = vpop.f32.mrb[0].mxu0
        %v2520 = vadd.f32 0.0, %v2519
        %v2521 = vpop.f32.mrb[0].mxu0
        %v2522 = vadd.f32 0.0, %v2521
        %v2523 = vpop.f32.mrb[0].mxu0
        %v2524 = vadd.f32 0.0, %v2523
        %v2525 = vpop.f32.mrb[0].mxu0
        %v2526 = vadd.f32 0.0, %v2525
        %2527 = vmatprep.mubr.bf16.mxu0 %v2280
        %2528 = vmatmul.mubr.bf16.gmra.mrb[0].mxu0 %v2279
        %v2529 = vpop.f32.mrb[0].mxu0
        %v2530 = vadd.f32 0.0, %v2529
        %v2531 = vpop.f32.mrb[0].mxu0
        %v2532 = vadd.f32 0.0, %v2531
        %v2533 = vpop.f32.mrb[0].mxu0
        %v2534 = vadd.f32 0.0, %v2533
        %v2535 = vpop.f32.mrb[0].mxu0
        %v2536 = vadd.f32 0.0, %v2535
        %2537 = vmatprep.mubr.bf16.mxu0 %v2282
        %2538 = vmatmul.mubr.bf16.gmra.mrb[0].mxu0 %v2281
        %v2539 = vpop.f32.mrb[0].mxu0
        %v2540 = vadd.f32 0.0, %v2539
        %v2541 = vpop.f32.mrb[0].mxu0
        %v2542 = vadd.f32 0.0, %v2541
        %v2543 = vpop.f32.mrb[0].mxu0
        %v2544 = vadd.f32 0.0, %v2543
        %v2545 = vpop.f32.mrb[0].mxu0
        %v2546 = vadd.f32 0.0, %v2545
        %2547 = vmatprep.mubr.bf16.mxu0 %v2284
        %2548 = vmatmul.mubr.bf16.gmra.mrb[0].mxu0 %v2283
        %v2549 = vpop.f32.mrb[0].mxu0
        %v2550 = vadd.f32 0.0, %v2549
        %v2551 = vpop.f32.mrb[0].mxu0
        %v2552 = vadd.f32 0.0, %v2551
        %v2553 = vpop.f32.mrb[0].mxu0
        %v2554 = vadd.f32 0.0, %v2553
        %v2555 = vpop.f32.mrb[0].mxu0
        %v2556 = vadd.f32 0.0, %v2555
        %2557 = vmatprep.mubr.bf16.mxu0 %v2286
        %2558 = vmatmul.mubr.bf16.gmra.mrb[0].mxu0 %v2285
        %v2559 = vpop.f32.mrb[0].mxu0
        %v2560 = vadd.f32 0.0, %v2559
        %v2561 = vpop.f32.mrb[0].mxu0
        %v2562 = vadd.f32 0.0, %v2561
        %v2563 = vpop.f32.mrb[0].mxu0
        %v2564 = vadd.f32 0.0, %v2563
        %v2565 = vpop.f32.mrb[0].mxu0
        %v2566 = vadd.f32 0.0, %v2565
        %2567 = vmatprep.mubr.bf16.mxu0 %v2288
        %2568 = vmatmul.mubr.bf16.gmra.mrb[0].mxu0 %v2287
        %v2569 = vpop.f32.mrb[0].mxu0
        %v2570 = vadd.f32 0.0, %v2569
        %v2571 = vpop.f32.mrb[0].mxu0
        %v2572 = vadd.f32 0.0, %v2571
        %v2573 = vpop.f32.mrb[0].mxu0
        %v2574 = vadd.f32 0.0, %v2573
        %v2575 = vpop.f32.mrb[0].mxu0
        %v2576 = vadd.f32 0.0, %v2575
        %2577 = vmatprep.mubr.bf16.mxu0 %v2290
        %2578 = vmatmul.mubr.bf16.gmra.mrb[0].mxu0 %v2289
        %v2579 = vpop.f32.mrb[0].mxu0
        %v2580 = vadd.f32 0.0, %v2579
        %v2581 = vpop.f32.mrb[0].mxu0
        %v2582 = vadd.f32 0.0, %v2581
        %v2583 = vpop.f32.mrb[0].mxu0
        %v2584 = vadd.f32 0.0, %v2583
        %v2585 = vpop.f32.mrb[0].mxu0
        %v2586 = vadd.f32 0.0, %v2585
        %2587 = vmatprep.mubr.bf16.mxu0 %v2292
        %2588 = vmatmul.mubr.bf16.gmra.mrb[0].mxu0 %v2291
        %v2589 = vpop.f32.mrb[0].mxu0
        %v2590 = vadd.f32 0.0, %v2589
        %v2591 = vpop.f32.mrb[0].mxu0
        %v2592 = vadd.f32 0.0, %v2591
        %v2593 = vpop.f32.mrb[0].mxu0
        %v2594 = vadd.f32 0.0, %v2593
        %v2595 = vpop.f32.mrb[0].mxu0
        %v2596 = vadd.f32 0.0, %v2595
        %2597 = vdwg.mxu0
        %v2598 = vadd.f32 %v2242, %v2520
        %v2599 = vadd.f32 %v2243, %v2522
        %v2600 = vadd.f32 %v2244, %v2524
        %v2601 = vadd.f32 %v2245, %v2526
        %v2602 = vadd.f32 %v2246, %v2530
        %v2603 = vadd.f32 %v2247, %v2532
        %v2604 = vadd.f32 %v2248, %v2534
        %v2605 = vadd.f32 %v2249, %v2536
        %v2606 = vadd.f32 %v2250, %v2540
        %v2607 = vadd.f32 %v2251, %v2542
        %v2608 = vadd.f32 %v2252, %v2544
        %v2609 = vadd.f32 %v2253, %v2546
        %v2610 = vadd.f32 %v2254, %v2550
        %v2611 = vadd.f32 %v2255, %v2552
        %v2612 = vadd.f32 %v2256, %v2554
        %v2613 = vadd.f32 %v2257, %v2556
        %v2614 = vadd.f32 %v2258, %v2560
        %v2615 = vadd.f32 %v2259, %v2562
        %v2616 = vadd.f32 %v2260, %v2564
        %v2617 = vadd.f32 %v2261, %v2566
        %v2618 = vadd.f32 %v2262, %v2570
        %v2619 = vadd.f32 %v2263, %v2572
        %v2620 = vadd.f32 %v2264, %v2574
        %v2621 = vadd.f32 %v2265, %v2576
        %v2622 = vadd.f32 %v2266, %v2580
        %v2623 = vadd.f32 %v2267, %v2582
        %v2624 = vadd.f32 %v2268, %v2584
        %v2625 = vadd.f32 %v2269, %v2586
        %v2626 = vadd.f32 %v2270, %v2590
        %v2627 = vadd.f32 %v2271, %v2592
        %v2628 = vadd.f32 %v2272, %v2594
        %v2629 = vadd.f32 %v2273, %v2596
        %2630 = vst [vmem:[#allocation3] sm:$0xff] %v2598
        %2631 = vst [vmem:[#allocation3 + $0x8] sm:$0xff] %v2599
        %2632 = vst [vmem:[#allocation3 + $0x10] sm:$0xff] %v2600
        %2633 = vst [vmem:[#allocation3 + $0x18] sm:$0xff] %v2601
        %2634 = vst [vmem:[#allocation3 + $0x20] sm:$0xff] %v2602
        %2635 = vst [vmem:[#allocation3 + $0x28] sm:$0xff] %v2603
        %2636 = vst [vmem:[#allocation3 + $0x30] sm:$0xff] %v2604
        %2637 = vst [vmem:[#allocation3 + $0x38] sm:$0xff] %v2605
        %2638 = vst [vmem:[#allocation3 + $0x40] sm:$0xff] %v2606
        %2639 = vst [vmem:[#allocation3 + $0x48] sm:$0xff] %v2607
        %2640 = vst [vmem:[#allocation3 + $0x50] sm:$0xff] %v2608
        %2641 = vst [vmem:[#allocation3 + $0x58] sm:$0xff] %v2609
        %2642 = vst [vmem:[#allocation3 + $0x60] sm:$0xff] %v2610
        %2643 = vst [vmem:[#allocation3 + $0x68] sm:$0xff] %v2611
        %2644 = vst [vmem:[#allocation3 + $0x70] sm:$0xff] %v2612
        %2645 = vst [vmem:[#allocation3 + $0x78] sm:$0xff] %v2613
        %2646 = vst [vmem:[#allocation3 + $0x80] sm:$0xff] %v2614
        %2647 = vst [vmem:[#allocation3 + $0x88] sm:$0xff] %v2615
        %2648 = vst [vmem:[#allocation3 + $0x90] sm:$0xff] %v2616
        %2649 = vst [vmem:[#allocation3 + $0x98] sm:$0xff] %v2617
        %2650 = vst [vmem:[#allocation3 + $0xa0] sm:$0xff] %v2618
        %2651 = vst [vmem:[#allocation3 + $0xa8] sm:$0xff] %v2619
        %2652 = vst [vmem:[#allocation3 + $0xb0] sm:$0xff] %v2620
        %2653 = vst [vmem:[#allocation3 + $0xb8] sm:$0xff] %v2621
        %2654 = vst [vmem:[#allocation3 + $0xc0] sm:$0xff] %v2622
        %2655 = vst [vmem:[#allocation3 + $0xc8] sm:$0xff] %v2623
        %2656 = vst [vmem:[#allocation3 + $0xd0] sm:$0xff] %v2624
        %2657 = vst [vmem:[#allocation3 + $0xd8] sm:$0xff] %v2625
        %2658 = vst [vmem:[#allocation3 + $0xe0] sm:$0xff] %v2626
        %2659 = vst [vmem:[#allocation3 + $0xe8] sm:$0xff] %v2627
        %2660 = vst [vmem:[#allocation3 + $0xf0] sm:$0xff] %v2628
        %2661 = vst [vmem:[#allocation3 + $0xf8] sm:$0xff] %v2629
        // Predicated region
        $region93: #{tpu_custom_call.1} parent=51 // pred_check
          %p2662 = pneg %p2206
        $region94: #{tpu_custom_call.1} parent=51 // pred_check_branch
          %2664 = sbr.rel (%p2662) target = $region96
        $region95: #{tpu_custom_call.1} parent=51 // pred_region
          %v2665 = vld [vmem:[#allocation3] sm:$0xff]
          %v2666 = vld [vmem:[#allocation3 + $0x8] sm:$0xff]
          %v2667 = vld [vmem:[#allocation3 + $0x10] sm:$0xff]
          %v2668 = vld [vmem:[#allocation3 + $0x18] sm:$0xff]
          %v2669 = vld [vmem:[#allocation3 + $0x20] sm:$0xff]
          %v2670 = vld [vmem:[#allocation3 + $0x28] sm:$0xff]
          %v2671 = vld [vmem:[#allocation3 + $0x30] sm:$0xff]
          %v2672 = vld [vmem:[#allocation3 + $0x38] sm:$0xff]
          %v2673 = vld [vmem:[#allocation3 + $0x40] sm:$0xff]
          %v2674 = vld [vmem:[#allocation3 + $0x48] sm:$0xff]
          %v2675 = vld [vmem:[#allocation3 + $0x50] sm:$0xff]
          %v2676 = vld [vmem:[#allocation3 + $0x58] sm:$0xff]
          %v2677 = vld [vmem:[#allocation3 + $0x60] sm:$0xff]
          %v2678 = vld [vmem:[#allocation3 + $0x68] sm:$0xff]
          %v2679 = vld [vmem:[#allocation3 + $0x70] sm:$0xff]
          %v2680 = vld [vmem:[#allocation3 + $0x78] sm:$0xff]
          %v2681 = vld [vmem:[#allocation3 + $0x80] sm:$0xff]
          %v2682 = vld [vmem:[#allocation3 + $0x88] sm:$0xff]
          %v2683 = vld [vmem:[#allocation3 + $0x90] sm:$0xff]
          %v2684 = vld [vmem:[#allocation3 + $0x98] sm:$0xff]
          %v2685 = vld [vmem:[#allocation3 + $0xa0] sm:$0xff]
          %v2686 = vld [vmem:[#allocation3 + $0xa8] sm:$0xff]
          %v2687 = vld [vmem:[#allocation3 + $0xb0] sm:$0xff]
          %v2688 = vld [vmem:[#allocation3 + $0xb8] sm:$0xff]
          %v2689 = vld [vmem:[#allocation3 + $0xc0] sm:$0xff]
          %v2690 = vld [vmem:[#allocation3 + $0xc8] sm:$0xff]
          %v2691 = vld [vmem:[#allocation3 + $0xd0] sm:$0xff]
          %v2692 = vld [vmem:[#allocation3 + $0xd8] sm:$0xff]
          %v2693 = vld [vmem:[#allocation3 + $0xe0] sm:$0xff]
          %v2694 = vld [vmem:[#allocation3 + $0xe8] sm:$0xff]
          %v2695 = vld [vmem:[#allocation3 + $0xf0] sm:$0xff]
          %v2696 = vld [vmem:[#allocation3 + $0xf8] sm:$0xff]
          %v2697 = vld [vmem:[%s581] sm:$0x3]
          %v2699 = vlaneseq
          %v2700 = vshrl.u32 %v2699, 7
          %v2701 = vsub.s32 0, %v2700
          %v2702 = vrot.slane %v2697, %v2701
          %v2703 = vlaneseq
          %v2704 = vshrl.u32 %v2703, 7
          %v2705 = vsub.s32 1, %v2704
          %v2706 = vrot.slane %v2697, %v2705
          %v2709 = vadd.f32 %v2665, %v2702
          %v2710 = vadd.f32 %v2666, %v2706
          %v2711 = vadd.f32 %v2667, %v2702
          %v2712 = vadd.f32 %v2668, %v2706
          %v2713 = vadd.f32 %v2669, %v2702
          %v2714 = vadd.f32 %v2670, %v2706
          %v2715 = vadd.f32 %v2671, %v2702
          %v2716 = vadd.f32 %v2672, %v2706
          %v2717 = vadd.f32 %v2673, %v2702
          %v2718 = vadd.f32 %v2674, %v2706
          %v2719 = vadd.f32 %v2675, %v2702
          %v2720 = vadd.f32 %v2676, %v2706
          %v2721 = vadd.f32 %v2677, %v2702
          %v2722 = vadd.f32 %v2678, %v2706
          %v2723 = vadd.f32 %v2679, %v2702
          %v2724 = vadd.f32 %v2680, %v2706
          %v2725 = vadd.f32 %v2681, %v2702
          %v2726 = vadd.f32 %v2682, %v2706
          %v2727 = vadd.f32 %v2683, %v2702
          %v2728 = vadd.f32 %v2684, %v2706
          %v2729 = vadd.f32 %v2685, %v2702
          %v2730 = vadd.f32 %v2686, %v2706
          %v2731 = vadd.f32 %v2687, %v2702
          %v2732 = vadd.f32 %v2688, %v2706
          %v2733 = vadd.f32 %v2689, %v2702
          %v2734 = vadd.f32 %v2690, %v2706
          %v2735 = vadd.f32 %v2691, %v2702
          %v2736 = vadd.f32 %v2692, %v2706
          %v2737 = vadd.f32 %v2693, %v2702
          %v2738 = vadd.f32 %v2694, %v2706
          %v2739 = vadd.f32 %v2695, %v2702
          %v2740 = vadd.f32 %v2696, %v2706
          %v2741 = vpack.c.bf16 %v2711, %v2709
          %v2742 = vpack.c.bf16 %v2712, %v2710
          %v2743 = vpack.c.bf16 %v2715, %v2713
          %v2744 = vpack.c.bf16 %v2716, %v2714
          %v2745 = vpack.c.bf16 %v2719, %v2717
          %v2746 = vpack.c.bf16 %v2720, %v2718
          %v2747 = vpack.c.bf16 %v2723, %v2721
          %v2748 = vpack.c.bf16 %v2724, %v2722
          %v2749 = vpack.c.bf16 %v2727, %v2725
          %v2750 = vpack.c.bf16 %v2728, %v2726
          %v2751 = vpack.c.bf16 %v2731, %v2729
          %v2752 = vpack.c.bf16 %v2732, %v2730
          %v2753 = vpack.c.bf16 %v2735, %v2733
          %v2754 = vpack.c.bf16 %v2736, %v2734
          %v2755 = vpack.c.bf16 %v2739, %v2737
          %v2756 = vpack.c.bf16 %v2740, %v2738
          %v2773 = vunpack.c.l.b16 %v2741
          %v2774 = vunpack.c.l.b16 %v2742
          %v2775 = vunpack.c.h.b16 %v2741
          %v2776 = vunpack.c.h.b16 %v2742
          %v2777 = vunpack.c.l.b16 %v2743
          %v2778 = vunpack.c.l.b16 %v2744
          %v2779 = vunpack.c.h.b16 %v2743
          %v2780 = vunpack.c.h.b16 %v2744
          %v2781 = vunpack.c.l.b16 %v2745
          %v2782 = vunpack.c.l.b16 %v2746
          %v2783 = vunpack.c.h.b16 %v2745
          %v2784 = vunpack.c.h.b16 %v2746
          %v2785 = vunpack.c.l.b16 %v2747
          %v2786 = vunpack.c.l.b16 %v2748
          %v2787 = vunpack.c.h.b16 %v2747
          %v2788 = vunpack.c.h.b16 %v2748
          %v2789 = vunpack.c.l.b16 %v2749
          %v2790 = vunpack.c.l.b16 %v2750
          %v2791 = vunpack.c.h.b16 %v2749
          %v2792 = vunpack.c.h.b16 %v2750
          %v2793 = vunpack.c.l.b16 %v2751
          %v2794 = vunpack.c.l.b16 %v2752
          %v2795 = vunpack.c.h.b16 %v2751
          %v2796 = vunpack.c.h.b16 %v2752
          %v2797 = vunpack.c.l.b16 %v2753
          %v2798 = vunpack.c.l.b16 %v2754
          %v2799 = vunpack.c.h.b16 %v2753
          %v2800 = vunpack.c.h.b16 %v2754
          %v2801 = vunpack.c.l.b16 %v2755
          %v2802 = vunpack.c.l.b16 %v2756
          %v2803 = vunpack.c.h.b16 %v2755
          %v2804 = vunpack.c.h.b16 %v2756
          %v2805 = vpack.c.b16 %v2774, %v2773
          %v2806 = vpack.c.b16 %v2776, %v2775
          %v2807 = vpack.c.b16 %v2778, %v2777
          %v2808 = vpack.c.b16 %v2780, %v2779
          %v2809 = vpack.c.b16 %v2782, %v2781
          %v2810 = vpack.c.b16 %v2784, %v2783
          %v2811 = vpack.c.b16 %v2786, %v2785
          %v2812 = vpack.c.b16 %v2788, %v2787
          %v2813 = vpack.c.b16 %v2790, %v2789
          %v2814 = vpack.c.b16 %v2792, %v2791
          %v2815 = vpack.c.b16 %v2794, %v2793
          %v2816 = vpack.c.b16 %v2796, %v2795
          %v2817 = vpack.c.b16 %v2798, %v2797
          %v2818 = vpack.c.b16 %v2800, %v2799
          %v2819 = vpack.c.b16 %v2802, %v2801
          %v2820 = vpack.c.b16 %v2804, %v2803
          %2837 = vst [vmem:[%s670] sm:$0xff] %v2805
          %2838 = vst [vmem:[%s670 + $0x8] sm:$0xff] %v2806
          %2839 = vst [vmem:[%s670 + $0x10] sm:$0xff] %v2807
          %2840 = vst [vmem:[%s670 + $0x18] sm:$0xff] %v2808
          %2841 = vst [vmem:[%s670 + $0x20] sm:$0xff] %v2809
          %2842 = vst [vmem:[%s670 + $0x28] sm:$0xff] %v2810
          %2843 = vst [vmem:[%s670 + $0x30] sm:$0xff] %v2811
          %2844 = vst [vmem:[%s670 + $0x38] sm:$0xff] %v2812
          %2845 = vst [vmem:[%s670 + $0x40] sm:$0xff] %v2813
          %2846 = vst [vmem:[%s670 + $0x48] sm:$0xff] %v2814
          %2847 = vst [vmem:[%s670 + $0x50] sm:$0xff] %v2815
          %2848 = vst [vmem:[%s670 + $0x58] sm:$0xff] %v2816
          %2849 = vst [vmem:[%s670 + $0x60] sm:$0xff] %v2817
          %2850 = vst [vmem:[%s670 + $0x68] sm:$0xff] %v2818
          %2851 = vst [vmem:[%s670 + $0x70] sm:$0xff] %v2819
          %2852 = vst [vmem:[%s670 + $0x78] sm:$0xff] %v2820
          %v2853 = vld [vmem:[#allocation4] sm:$0xff]
          %v2854 = vld [vmem:[#allocation4 + $0x8] sm:$0xff]
          %v2855 = vld [vmem:[#allocation4 + $0x10] sm:$0xff]
          %v2856 = vld [vmem:[#allocation4 + $0x18] sm:$0xff]
          %v2857 = vld [vmem:[#allocation4 + $0x20] sm:$0xff]
          %v2858 = vld [vmem:[#allocation4 + $0x28] sm:$0xff]
          %v2859 = vld [vmem:[#allocation4 + $0x30] sm:$0xff]
          %v2860 = vld [vmem:[#allocation4 + $0x38] sm:$0xff]
          %v2861 = vld [vmem:[#allocation4 + $0x40] sm:$0xff]
          %v2862 = vld [vmem:[#allocation4 + $0x48] sm:$0xff]
          %v2863 = vld [vmem:[#allocation4 + $0x50] sm:$0xff]
          %v2864 = vld [vmem:[#allocation4 + $0x58] sm:$0xff]
          %v2865 = vld [vmem:[#allocation4 + $0x60] sm:$0xff]
          %v2866 = vld [vmem:[#allocation4 + $0x68] sm:$0xff]
          %v2867 = vld [vmem:[#allocation4 + $0x70] sm:$0xff]
          %v2868 = vld [vmem:[#allocation4 + $0x78] sm:$0xff]
          %2870 = vset.pattern.permute.xlu0 0
          %2871 = vperm.xlu0 %2870, %v2853
          %v2872 = vpop.permute.xlu0 %2871
          %2875 = vset.pattern.permute.xlu0 0
          %2876 = vperm.xlu0 %2875, %v2854
          %v2877 = vpop.permute.xlu0 %2876
          %2880 = vset.pattern.permute.xlu0 0
          %2881 = vperm.xlu0 %2880, %v2855
          %v2882 = vpop.permute.xlu0 %2881
          %2885 = vset.pattern.permute.xlu0 0
          %2886 = vperm.xlu0 %2885, %v2856
          %v2887 = vpop.permute.xlu0 %2886
          %2890 = vset.pattern.permute.xlu0 0
          %2891 = vperm.xlu0 %2890, %v2857
          %v2892 = vpop.permute.xlu0 %2891
          %2895 = vset.pattern.permute.xlu0 0
          %2896 = vperm.xlu0 %2895, %v2858
          %v2897 = vpop.permute.xlu0 %2896
          %2900 = vset.pattern.permute.xlu0 0
          %2901 = vperm.xlu0 %2900, %v2859
          %v2902 = vpop.permute.xlu0 %2901
          %2905 = vset.pattern.permute.xlu0 0
          %2906 = vperm.xlu0 %2905, %v2860
          %v2907 = vpop.permute.xlu0 %2906
          %2910 = vset.pattern.permute.xlu0 0
          %2911 = vperm.xlu0 %2910, %v2861
          %v2912 = vpop.permute.xlu0 %2911
          %2915 = vset.pattern.permute.xlu0 0
          %2916 = vperm.xlu0 %2915, %v2862
          %v2917 = vpop.permute.xlu0 %2916
          %2920 = vset.pattern.permute.xlu0 0
          %2921 = vperm.xlu0 %2920, %v2863
          %v2922 = vpop.permute.xlu0 %2921
          %2925 = vset.pattern.permute.xlu0 0
          %2926 = vperm.xlu0 %2925, %v2864
          %v2927 = vpop.permute.xlu0 %2926
          %2930 = vset.pattern.permute.xlu0 0
          %2931 = vperm.xlu0 %2930, %v2865
          %v2932 = vpop.permute.xlu0 %2931
          %2935 = vset.pattern.permute.xlu0 0
          %2936 = vperm.xlu0 %2935, %v2866
          %v2937 = vpop.permute.xlu0 %2936
          %2940 = vset.pattern.permute.xlu0 0
          %2941 = vperm.xlu0 %2940, %v2867
          %v2942 = vpop.permute.xlu0 %2941
          %2945 = vset.pattern.permute.xlu0 0
          %2946 = vperm.xlu0 %2945, %v2868
          %v2947 = vpop.permute.xlu0 %2946
          %2949 = vst [vmem:[#allocation20] sm:$0xff] %v2872
          %2950 = vst [vmem:[#allocation20 + $0x8] sm:$0xff] %v2877
          %2951 = vst [vmem:[#allocation20 + $0x10] sm:$0xff] %v2882
          %2952 = vst [vmem:[#allocation20 + $0x18] sm:$0xff] %v2887
          %2953 = vst [vmem:[#allocation20 + $0x20] sm:$0xff] %v2892
          %2954 = vst [vmem:[#allocation20 + $0x28] sm:$0xff] %v2897
          %2955 = vst [vmem:[#allocation20 + $0x30] sm:$0xff] %v2902
          %2956 = vst [vmem:[#allocation20 + $0x38] sm:$0xff] %v2907
          %2957 = vst [vmem:[#allocation20 + $0x40] sm:$0xff] %v2912
          %2958 = vst [vmem:[#allocation20 + $0x48] sm:$0xff] %v2917
          %2959 = vst [vmem:[#allocation20 + $0x50] sm:$0xff] %v2922
          %2960 = vst [vmem:[#allocation20 + $0x58] sm:$0xff] %v2927
          %2961 = vst [vmem:[#allocation20 + $0x60] sm:$0xff] %v2932
          %2962 = vst [vmem:[#allocation20 + $0x68] sm:$0xff] %v2937
          %2963 = vst [vmem:[#allocation20 + $0x70] sm:$0xff] %v2942
          %2964 = vst [vmem:[#allocation20 + $0x78] sm:$0xff] %v2947
        $region96: #{tpu_custom_call.1} parent=51 // pred_fallthru
          _
        %s2965 = sand.u32 %s307, 1
        %s2966 = scalar_lea.sflag [#allocation7], %s2965
        %s2967 = sand.u32 %s307, 1
        %s2968 = smul.addr %s2967, 128
        %s2969 = scalar_lea.vmem [#allocation19], %s2968
        // Predicated region
        $region97: #{tpu_custom_call.1} parent=51 // pred_check
          %p2970 = pneg %p317
        $region98: #{tpu_custom_call.1} parent=51 // pred_check_branch
          %2972 = sbr.rel (%p2970) target = $region100
        $region99: #{tpu_custom_call.1} parent=51 // pred_region
          %s2973 = smul.u32 16, %s43
          %s2974 = smul.u32 2, %s44
          %s2976 = ssub.s32 2048, 2048
          %2977 = vsyncadd %s2966, %s2976
          %s2978 = smul.addr %s2973, 4
          %s2979 = sadd.s32 %s2974, %s2978
          %s2980 = smul.addr %s2979, 64
          %s2981 = scalar_lea.hbm %s8, %s2980
          %s2982 = sshll.u32 %s2969, 4
          %s2983 = int_to_ptr.vmem [resolvable:$true] %s2982
          %2988 = dma.vmem_to_hbm [thread:$0]  %s2983, 2048, %s2981, %s2966, 128, 256, 8
        $region100: #{tpu_custom_call.1} parent=51 // pred_fallthru
          _
        // Predicated region
        $region101: #{tpu_custom_call.1} parent=51 // pred_check
          %p2989 = pneg %p343
        $region102: #{tpu_custom_call.1} parent=51 // pred_check_branch
          %2991 = sbr.rel (%p2989) target = $region104
        $region103: #{tpu_custom_call.1} parent=51 // pred_region
          %s2992 = smul.u32 16, %s43
          %s2994 = ssub.s32 2048, 2048
          %2995 = vsyncadd [#allocation21], %s2994
          %s2996 = smul.addr %s2992, 128
          %s2997 = scalar_lea.hbm %s9, %s2996
          %s2998 = sshll.u32 [#allocation20], 4
          %s2999 = int_to_ptr.vmem [resolvable:$true] %s2998
          %3004 = dma.vmem_to_hbm [thread:$0]  %s2999, 2048, %s2997, [#allocation21], 128, 128, 8
        $region104: #{tpu_custom_call.1} parent=51 // pred_fallthru
          _
        // Predicated region
        $region105: #{tpu_custom_call.1} parent=51 // pred_check
          %p3005 = pneg %p343
        $region106: #{tpu_custom_call.1} parent=51 // pred_check_branch
          %3007 = sbr.rel (%p3005) target = $region108
        $region107: #{tpu_custom_call.1} parent=51 // pred_region
          %3008 = dma.done [#allocation21], 2048
        $region108: #{tpu_custom_call.1} parent=51 // pred_fallthru
          _
      $region52: #{tpu_custom_call.1} parent=5 // pred_fallthru
        _
      %p3009 = scmp.le.s32.totalorder 2, %s33
      // Predicated region
      $region109: #{tpu_custom_call.1} parent=5 // pred_check
        %p3010 = pneg %p3009
      $region110: #{tpu_custom_call.1} parent=5 // pred_check_branch
        %3012 = sbr.rel (%p3010) target = $region112
      $region111: #{tpu_custom_call.1} parent=5 // pred_region
        %s3013 = ssub.s32 %s33, 2
        // Predicated region
        $region113: #{tpu_custom_call.1} parent=111 // pred_check
          %p3014 = pneg %p323
        $region114: #{tpu_custom_call.1} parent=111 // pred_check_branch
          %3016 = sbr.rel (%p3014) target = $region116
        $region115: #{tpu_custom_call.1} parent=111 // pred_region
          %s3017 = sand.u32 %s308, 1
          %s3018 = scalar_lea.sflag [#allocation7], %s3017
          %s3019 = sand.u32 %s308, 1
          %s3020 = smul.addr %s3019, 128
          %s3021 = scalar_lea.vmem [#allocation19], %s3020
          %3022 = dma.done %s3018, 2048
        $region116: #{tpu_custom_call.1} parent=111 // pred_fallthru
          _
      $region112: #{tpu_custom_call.1} parent=5 // pred_fallthru
        _
    $region6: #{tpu_custom_call.1} parent=1 // loop_footer
      %s37 = sadd.s32 1, %s33
    $region7: #{tpu_custom_call.1} parent=1 // loop_footer_branch
      %32 = sbr.rel target = $region3
    $region8: #{tpu_custom_call.1} parent=1 // loop_exit
      _
    %3023 = vsyncpa [#allocation6], 1
    %s3024 = scalar_lea.sflag [#allocation6], 1
    %3025 = vsyncpa %s3024, 1
    %3026 = vsyncpa [#allocation9], 1
    %s3027 = scalar_lea.sflag [#allocation9], 1
    %3028 = vsyncpa %s3027, 1
    %3029 = vsyncpa [#allocation12], 1
    %s3030 = scalar_lea.sflag [#allocation12], 1
    %3031 = vsyncpa %s3030, 1
    %3032 = vsyncpa [#allocation15], 1
    %s3033 = scalar_lea.sflag [#allocation15], 1
    %3034 = vsyncpa %s3033, 1
    %3035 = vsyncpa [#allocation18], 1
    %s3036 = scalar_lea.sflag [#allocation18], 1
    %3037 = vsyncpa %s3036, 1
    %3038 = vsyncpa [#allocation7], 1
    %s3039 = scalar_lea.sflag [#allocation7], 1
    %3040 = vsyncpa %s3039, 1
    %3041 = vsyncpa [#allocation21], 1

</llo_original>
